<compile_context>
chip_gen: v6e
topology: v6e:2x2x1
jax: 0.10.0
libtpu: 0.0.40
codegen_flags: <defaults>
</compile_context>

<pallas_src>
import functools
import math

import jax
import jax.numpy as jnp
from jax.experimental import pallas as pl
from jax.experimental.pallas import tpu as pltpu

# ---------------- model config (small stand-in for bert-base + 'dc' head) ---
VOCAB = 50
HIDDEN = 32
N_LAYERS = 2
N_HEADS = 4
HEAD_DIM = HIDDEN // N_HEADS
INTERMEDIATE = 64
MAX_POS = 16
TYPE_VOCAB = 2
N_CLASSES = 2          # head = nn.Linear(hidden_size, nclasses), nclasses=2
LN_EPS = 1e-12

BATCH = 2
SEQ = 8


# ----------------------------- in-kernel helpers ----------------------------
def _layernorm(x, g, b):
    # Single-pass variance; clamp to >= 0 so rsqrt never sees a negative value
    # caused by fp32 cancellation on near-constant rows.
    mu = jnp.mean(x, axis=-1, keepdims=True)
    var = jnp.maximum(jnp.mean(x * x, axis=-1, keepdims=True) - mu * mu, 0.0)
    return (x - mu) * jax.lax.rsqrt(var + LN_EPS) * g + b


def _gelu(y):
    # Exact erf-GELU (matches HF BERT); erf lowers under Mosaic.
    return 0.5 * y * (1.0 + jax.lax.erf(y * (1.0 / math.sqrt(2.0))))


# ----------------------------- the fused kernel ------------------------------
def _bert_stack_kernel(emb_ref, mask_ref,
                       embg_ref, embb_ref,
                       qkvw_ref, qkvb_ref,
                       ow_ref, ob_ref,
                       ln1g_ref, ln1b_ref,
                       fiw_ref, fib_ref,
                       fow_ref, fob_ref,
                       ln2g_ref, ln2b_ref,
                       hw_ref, hb_ref,
                       out1_ref, out2_ref,
                       h_sc,
                       *, batch, seq, n_heads, head_dim):
    """Whole BERT encoder stack + CLS head; grid axis 0 = layer index.

    emb_ref:  (B*S, D)      summed embeddings (pre-LN)
    mask_ref: (B*H, 1, S)   additive attention bias, b-major over heads
    h_sc:     (B*S, D) f32  hidden-state carry (VMEM, persists across layers)
    out1_ref: (B, D)        CLS hidden state        (written on last layer)
    out2_ref: (B, C)        classifier-head logits  (written on last layer)
    """
    l = pl.program_id(0)
    d = n_heads * head_dim
    bf16 = jnp.bfloat16
    f32 = jnp.float32

    # ---- layer 0: embedding LayerNorm seeds the carry ----
    @pl.when(l == 0)
    def _():
        h_sc[...] = _layernorm(emb_ref[...], embg_ref[...], embb_ref[...])

    x = h_sc[...]                                                  # (B*S, D) f32

    # ---- fused QKV projection (bf16 MXU operands, f32 accumulate) ----
    qkv = jnp.dot(x.astype(bf16), qkvw_ref[...],
                  preferred_element_type=f32) + qkvb_ref[...]      # (B*S, 3D)

    # ---- multi-head self-attention, batched over all (batch, head) pairs ----
    scale = 1.0 / math.sqrt(head_dim)
    q_all = qkv[:, 0 * d:1 * d] * scale
    k_all = qkv[:, 1 * d:2 * d]
    v_all = qkv[:, 2 * d:3 * d]

    def to_heads(slab):
        # (B*S, D) -> (B*H, S, Dh), b-major then h-major, matching mask_ref.
        return jnp.stack(
            [slab[b * seq:(b + 1) * seq, h * head_dim:(h + 1) * head_dim]
             for b in range(batch) for h in range(n_heads)], axis=0)

    q3 = to_heads(q_all)                                           # (B*H, S, Dh)
    k3 = to_heads(k_all)
    v3 = to_heads(v_all)

    # No explicit K^T: dot_general contracts the last dim of both operands.
    s = jnp.einsum('nqd,nkd->nqk', q3, k3,
                   preferred_element_type=f32)                     # (B*H, S, S)
    s = s + mask_ref[...]                                          # broadcast (B*H,1,S)
    s = s - jnp.max(s, axis=-1, keepdims=True)
    p = jnp.exp(s)
    p = p * pl.reciprocal(jnp.sum(p, axis=-1, keepdims=True), approx=True)
    ctx3 = jnp.einsum('nqk,nkd->nqd', p, v3,
                      preferred_element_type=f32)                  # (B*H, S, Dh)

    # Merge heads lane-dense: one full-width (S, D) slab per batch, one
    # contiguous (B*S, D) value overall (no per-head masked column stores).
    ctx = jnp.concatenate(
        [jnp.concatenate([ctx3[b * n_heads + h] for h in range(n_heads)],
                         axis=-1)
         for b in range(batch)], axis=0)                           # (B*S, D)

    # ---- attention output projection + residual + LayerNorm ----
    attn = jnp.dot(ctx.astype(bf16), ow_ref[...],
                   preferred_element_type=f32) + ob_ref[...]
    h1 = _layernorm(attn + x, ln1g_ref[...], ln1b_ref[...])

    # ---- feed-forward (exact GELU) + residual + LayerNorm ----
    y = jnp.dot(h1.astype(bf16), fiw_ref[...],
                preferred_element_type=f32) + fib_ref[...]
    y = _gelu(y)
    y = jnp.dot(y.astype(bf16), fow_ref[...],
                preferred_element_type=f32) + fob_ref[...]
    h2 = _layernorm(y + h1, ln2g_ref[...], ln2b_ref[...])

    h_sc[...] = h2                                                 # carry to next layer

    # ---- last layer: CLS slice + classifier head ----
    @pl.when(l == pl.num_programs(0) - 1)
    def _():
        cls = jnp.concatenate(
            [h2[b * seq:b * seq + 1, :] for b in range(batch)], axis=0)  # (B, D)
        out1_ref[...] = cls
        out2_ref[...] = jnp.dot(cls.astype(bf16), hw_ref[...],
                                preferred_element_type=f32) + hb_ref[...]


# ----------------------------- parameters -----------------------------------
def init_params(key):
    def dense(k, fan_in, fan_out):
        return jax.random.normal(k, (fan_in, fan_out), jnp.float32) * 0.02

    keys = jax.random.split(key, 4 + N_LAYERS)
    p = {
        "word_emb": jax.random.normal(keys[0], (VOCAB, HIDDEN), jnp.float32) * 0.02,
        "pos_emb": jax.random.normal(keys[1], (MAX_POS, HIDDEN), jnp.float32) * 0.02,
        "type_emb": jax.random.normal(keys[2], (TYPE_VOCAB, HIDDEN), jnp.float32) * 0.02,
        "emb_ln_g": jnp.ones((1, HIDDEN), jnp.float32),
        "emb_ln_b": jnp.zeros((1, HIDDEN), jnp.float32),
        # Big matmul weights are stored bf16 (MXU operands); biases/LN stay f32.
        "head_w": dense(keys[3], HIDDEN, N_CLASSES).astype(jnp.bfloat16),
        "head_b": jnp.zeros((1, N_CLASSES), jnp.float32),
    }
    qkv_w, o_w, fi_w, fo_w = [], [], [], []
    for li in range(N_LAYERS):
        lk = jax.random.split(keys[4 + li], 6)
        qkv_w.append(jnp.concatenate(
            [dense(lk[0], HIDDEN, HIDDEN),
             dense(lk[1], HIDDEN, HIDDEN),
             dense(lk[2], HIDDEN, HIDDEN)], axis=1))               # (D, 3D)
        o_w.append(dense(lk[3], HIDDEN, HIDDEN))
        fi_w.append(dense(lk[4], HIDDEN, INTERMEDIATE))
        fo_w.append(dense(lk[5], INTERMEDIATE, HIDDEN))
    # Per-layer weights stacked on a leading layer axis for the layer grid.
    p["qkv_w"] = jnp.stack(qkv_w).astype(jnp.bfloat16)             # (L, D, 3D)
    p["qkv_b"] = jnp.zeros((N_LAYERS, 1, 3 * HIDDEN), jnp.float32)
    p["o_w"] = jnp.stack(o_w).astype(jnp.bfloat16)                 # (L, D, D)
    p["o_b"] = jnp.zeros((N_LAYERS, 1, HIDDEN), jnp.float32)
    p["ln1_g"] = jnp.ones((N_LAYERS, 1, HIDDEN), jnp.float32)
    p["ln1_b"] = jnp.zeros((N_LAYERS, 1, HIDDEN), jnp.float32)
    p["fi_w"] = jnp.stack(fi_w).astype(jnp.bfloat16)               # (L, D, I)
    p["fi_b"] = jnp.zeros((N_LAYERS, 1, INTERMEDIATE), jnp.float32)
    p["fo_w"] = jnp.stack(fo_w).astype(jnp.bfloat16)               # (L, I, D)
    p["fo_b"] = jnp.zeros((N_LAYERS, 1, HIDDEN), jnp.float32)
    p["ln2_g"] = jnp.ones((N_LAYERS, 1, HIDDEN), jnp.float32)
    p["ln2_b"] = jnp.zeros((N_LAYERS, 1, HIDDEN), jnp.float32)
    return p


# ----------------------------- forward ---------------------------------------
@jax.jit
def bert_forward(params, input_ids, token_type_ids, attention_mask):
    """Returns (out1, out2) matching BERT.forward with head type 'dc'."""
    b, s = input_ids.shape
    d = HIDDEN

    # Embedding gathers are plain-JAX glue (dynamic row gather; no clean
    # BlockSpec form at this size).  Everything after the gather runs in the
    # single fused Pallas kernel.
    positions = jnp.arange(s, dtype=jnp.int32)
    emb = (params["word_emb"][input_ids]
           + params["pos_emb"][positions][None, :, :]
           + params["type_emb"][token_type_ids])
    emb2d = emb.reshape(b * s, d).astype(jnp.float32)

    # Additive attention bias, replicated per head (b-major): (B*H, 1, S).
    mask_bias = (1.0 - attention_mask.astype(jnp.float32)) * -1e9   # (B, S)
    mask_bh = jnp.repeat(mask_bias, N_HEADS, axis=0)[:, None, :]    # (B*H, 1, S)

    const2 = lambda l: (0, 0)
    const3 = lambda l: (0, 0, 0)
    per_layer = lambda l: (l, 0, 0)

    in_specs = [
        pl.BlockSpec((b * s, d), const2),                       # emb2d
        pl.BlockSpec((b * N_HEADS, 1, s), const3),              # mask
        pl.BlockSpec((1, d), const2),                           # emb_ln_g
        pl.BlockSpec((1, d), const2),                           # emb_ln_b
        pl.BlockSpec((None, d, 3 * d), per_layer),              # qkv_w
        pl.BlockSpec((None, 1, 3 * d), per_layer),              # qkv_b
        pl.BlockSpec((None, d, d), per_layer),                  # o_w
        pl.BlockSpec((None, 1, d), per_layer),                  # o_b
        pl.BlockSpec((None, 1, d), per_layer),                  # ln1_g
        pl.BlockSpec((None, 1, d), per_layer),                  # ln1_b
        pl.BlockSpec((None, d, INTERMEDIATE), per_layer),       # fi_w
        pl.BlockSpec((None, 1, INTERMEDIATE), per_layer),       # fi_b
        pl.BlockSpec((None, INTERMEDIATE, d), per_layer),       # fo_w
        pl.BlockSpec((None, 1, d), per_layer),                  # fo_b
        pl.BlockSpec((None, 1, d), per_layer),                  # ln2_g
        pl.BlockSpec((None, 1, d), per_layer),                  # ln2_b
        pl.BlockSpec((d, N_CLASSES), const2),                   # head_w
        pl.BlockSpec((1, N_CLASSES), const2),                   # head_b
    ]
    out_specs = (
        pl.BlockSpec((b, d), const2),                           # out1 (CLS hidden)
        pl.BlockSpec((b, N_CLASSES), const2),                   # out2 (logits)
    )

    kern = functools.partial(_bert_stack_kernel, batch=b, seq=s,
                             n_heads=N_HEADS, head_dim=HEAD_DIM)

    out1, out2 = pl.pallas_call(
        kern,
        out_shape=(jax.ShapeDtypeStruct((b, d), jnp.float32),
                   jax.ShapeDtypeStruct((b, N_CLASSES), jnp.float32)),
        grid_spec=pltpu.PrefetchScalarGridSpec(
            num_scalar_prefetch=0,
            grid=(N_LAYERS,),
            in_specs=in_specs,
            out_specs=out_specs,
            scratch_shapes=[pltpu.VMEM((b * s, d), jnp.float32)],  # hidden carry
        ),
        # Layer axis is a sequential carry -> "arbitrary".
        compiler_params=pltpu.CompilerParams(dimension_semantics=("arbitrary",)),
    )(emb2d, mask_bh,
      params["emb_ln_g"], params["emb_ln_b"],
      params["qkv_w"], params["qkv_b"],
      params["o_w"], params["o_b"],
      params["ln1_g"], params["ln1_b"],
      params["fi_w"], params["fi_b"],
      params["fo_w"], params["fo_b"],
      params["ln2_g"], params["ln2_b"],
      params["head_w"], params["head_b"])
    return out1, out2


# ----------------------------- main ------------------------------------------
if __name__ == "__main__":
    key = jax.random.PRNGKey(0)
    pkey, ikey = jax.random.split(key)
    params = init_params(pkey)

    input_ids = jax.random.randint(ikey, (BATCH, SEQ), 0, VOCAB, dtype=jnp.int32)
    token_type_ids = jnp.zeros((BATCH, SEQ), dtype=jnp.int32)
    attention_mask = jnp.ones((BATCH, SEQ), dtype=jnp.int32)

    out1, out2 = bert_forward(params, input_ids, token_type_ids, attention_mask)
    jax.block_until_ready((out1, out2))

    assert out1.shape == (BATCH, HIDDEN)
    assert out2.shape == (BATCH, N_CLASSES)
    assert bool(jnp.all(jnp.isfinite(out1))) and bool(jnp.all(jnp.isfinite(out2)))
    print("KERNEL_OK")
</pallas_src>

<mosaic_0001>
module attributes {stable_mosaic.version = 11 : i64} {
  func.func @_bert_stack_kernel(%arg0: i32, %arg1: memref<16x32xf32, #tpu.memory_space<vmem>>, %arg2: memref<8x1x8xf32, #tpu.memory_space<vmem>>, %arg3: memref<1x32xf32, #tpu.memory_space<vmem>>, %arg4: memref<1x32xf32, #tpu.memory_space<vmem>>, %arg5: memref<1x32x96xbf16, #tpu.memory_space<vmem>>, %arg6: memref<1x1x96xf32, #tpu.memory_space<vmem>>, %arg7: memref<1x32x32xbf16, #tpu.memory_space<vmem>>, %arg8: memref<1x1x32xf32, #tpu.memory_space<vmem>>, %arg9: memref<1x1x32xf32, #tpu.memory_space<vmem>>, %arg10: memref<1x1x32xf32, #tpu.memory_space<vmem>>, %arg11: memref<1x32x64xbf16, #tpu.memory_space<vmem>>, %arg12: memref<1x1x64xf32, #tpu.memory_space<vmem>>, %arg13: memref<1x64x32xbf16, #tpu.memory_space<vmem>>, %arg14: memref<1x1x32xf32, #tpu.memory_space<vmem>>, %arg15: memref<1x1x32xf32, #tpu.memory_space<vmem>>, %arg16: memref<1x1x32xf32, #tpu.memory_space<vmem>>, %arg17: memref<32x2xbf16, #tpu.memory_space<vmem>>, %arg18: memref<1x2xf32, #tpu.memory_space<vmem>>, %arg19: memref<2x32xf32, #tpu.memory_space<vmem>>, %arg20: memref<2x2xf32, #tpu.memory_space<vmem>>, %arg21: memref<16x32xf32, #tpu.memory_space<vmem>>) attributes {dimension_semantics = [#tpu.dimension_semantics<arbitrary>], iteration_bounds = array<i64: 2>, scalar_prefetch = 0 : i64, scratch_operands = 1 : i64, tpu.core_type = #tpu.core_type<tc>, window_params = [{pipeline_mode = #tpu.pipeline_mode<synchronous>, transform_indices = @transform_0, window_bounds = array<i64: 16, 32>}, {pipeline_mode = #tpu.pipeline_mode<synchronous>, transform_indices = @transform_1, window_bounds = array<i64: 8, 1, 8>}, {pipeline_mode = #tpu.pipeline_mode<synchronous>, transform_indices = @transform_2, window_bounds = array<i64: 1, 32>}, {pipeline_mode = #tpu.pipeline_mode<synchronous>, transform_indices = @transform_3, window_bounds = array<i64: 1, 32>}, {transform_indices = @transform_4, window_bounds = array<i64: 1, 32, 96>}, {transform_indices = @transform_5, window_bounds = array<i64: 1, 1, 96>}, {transform_indices = @transform_6, window_bounds = array<i64: 1, 32, 32>}, {transform_indices = @transform_7, window_bounds = array<i64: 1, 1, 32>}, {transform_indices = @transform_8, window_bounds = array<i64: 1, 1, 32>}, {transform_indices = @transform_9, window_bounds = array<i64: 1, 1, 32>}, {transform_indices = @transform_10, window_bounds = array<i64: 1, 32, 64>}, {transform_indices = @transform_11, window_bounds = array<i64: 1, 1, 64>}, {transform_indices = @transform_12, window_bounds = array<i64: 1, 64, 32>}, {transform_indices = @transform_13, window_bounds = array<i64: 1, 1, 32>}, {transform_indices = @transform_14, window_bounds = array<i64: 1, 1, 32>}, {transform_indices = @transform_15, window_bounds = array<i64: 1, 1, 32>}, {pipeline_mode = #tpu.pipeline_mode<synchronous>, transform_indices = @transform_16, window_bounds = array<i64: 32, 2>}, {pipeline_mode = #tpu.pipeline_mode<synchronous>, transform_indices = @transform_17, window_bounds = array<i64: 1, 2>}, {pipeline_mode = #tpu.pipeline_mode<synchronous>, transform_indices = @transform_18, window_bounds = array<i64: 2, 32>}, {pipeline_mode = #tpu.pipeline_mode<synchronous>, transform_indices = @transform_19, window_bounds = array<i64: 2, 2>}]} {
    %c0_i32 = arith.constant 0 : i32
    %0 = arith.cmpi eq, %arg0, %c0_i32 : i32
    %1 = arith.extui %0 : i1 to i32
    %c0_i32_0 = arith.constant 0 : i32
    %2 = arith.cmpi ne, %1, %c0_i32_0 : i32
    scf.if %2 {
      %c0_67 = arith.constant 0 : index
      %c0_68 = arith.constant 0 : index
      %196 = vector.load %arg1[%c0_67, %c0_68] : memref<16x32xf32, #tpu.memory_space<vmem>>, vector<16x32xf32>
      %c0_69 = arith.constant 0 : index
      %c0_70 = arith.constant 0 : index
      %197 = vector.load %arg3[%c0_69, %c0_70] : memref<1x32xf32, #tpu.memory_space<vmem>>, vector<1x32xf32>
      %c0_71 = arith.constant 0 : index
      %c0_72 = arith.constant 0 : index
      %198 = vector.load %arg4[%c0_71, %c0_72] : memref<1x32xf32, #tpu.memory_space<vmem>>, vector<1x32xf32>
      %cst_73 = arith.constant dense<0.000000e+00> : vector<16xf32>
      %199 = vector.multi_reduction <add>, %196, %cst_73 [1] : vector<16x32xf32> to vector<16xf32>
      %200 = vector.shape_cast %199 : vector<16xf32> to vector<16x1xf32>
      %cst_74 = arith.constant 3.200000e+01 : f32
      %201 = vector.broadcast %cst_74 : f32 to vector<16x1xf32>
      %202 = arith.divf %200, %201 : vector<16x1xf32>
      %203 = arith.mulf %196, %196 : vector<16x32xf32>
      %cst_75 = arith.constant dense<0.000000e+00> : vector<16xf32>
      %204 = vector.multi_reduction <add>, %203, %cst_75 [1] : vector<16x32xf32> to vector<16xf32>
      %205 = vector.shape_cast %204 : vector<16xf32> to vector<16x1xf32>
      %cst_76 = arith.constant 3.200000e+01 : f32
      %206 = vector.broadcast %cst_76 : f32 to vector<16x1xf32>
      %207 = arith.divf %205, %206 : vector<16x1xf32>
      %208 = arith.mulf %202, %202 : vector<16x1xf32>
      %209 = arith.subf %207, %208 : vector<16x1xf32>
      %cst_77 = arith.constant 0.000000e+00 : f32
      %210 = vector.broadcast %cst_77 : f32 to vector<16x1xf32>
      %211 = arith.maximumf %209, %210 : vector<16x1xf32>
      %212 = vector.broadcast %202 : vector<16x1xf32> to vector<16x32xf32>
      %213 = arith.subf %196, %212 : vector<16x32xf32>
      %cst_78 = arith.constant 9.99999996E-13 : f32
      %214 = vector.broadcast %cst_78 : f32 to vector<16x1xf32>
      %215 = arith.addf %211, %214 : vector<16x1xf32>
      %216 = math.rsqrt %215 : vector<16x1xf32>
      %217 = vector.broadcast %216 : vector<16x1xf32> to vector<16x32xf32>
      %218 = arith.mulf %213, %217 : vector<16x32xf32>
      %219 = vector.broadcast %197 : vector<1x32xf32> to vector<16x32xf32>
      %220 = arith.mulf %218, %219 : vector<16x32xf32>
      %221 = vector.broadcast %198 : vector<1x32xf32> to vector<16x32xf32>
      %222 = arith.addf %220, %221 : vector<16x32xf32>
      %c0_79 = arith.constant 0 : index
      %c0_80 = arith.constant 0 : index
      %223 = vector.load %arg21[%c0_79, %c0_80] : memref<16x32xf32, #tpu.memory_space<vmem>>, vector<16x32xf32>
      tpu.vector_store %arg21[%c0_79, %c0_80], %222 {strides = array<i32>} : memref<16x32xf32, #tpu.memory_space<vmem>>, vector<16x32xf32>,
    } else {
    }
    %c0 = arith.constant 0 : index
    %c0_1 = arith.constant 0 : index
    %3 = vector.load %arg21[%c0, %c0_1] : memref<16x32xf32, #tpu.memory_space<vmem>>, vector<16x32xf32>
    %4 = arith.truncf %3 : vector<16x32xf32> to vector<16x32xbf16>
    %c0_2 = arith.constant 0 : index
    %c0_3 = arith.constant 0 : index
    %c0_4 = arith.constant 0 : index
    %5 = vector.load %arg5[%c0_2, %c0_3, %c0_4] : memref<1x32x96xbf16, #tpu.memory_space<vmem>>, vector<1x32x96xbf16>
    %6 = vector.shape_cast %5 : vector<1x32x96xbf16> to vector<32x96xbf16>
    %cst = arith.constant dense<0.000000e+00> : vector<16x96xf32>
    %7 = tpu.matmul %4, %6, %cst {dimension_numbers = #tpu.dot_dimension_numbers<[1], [0], [0], [1], [0, 0, 1, 1], [], []>} : vector<16x32xbf16>, vector<32x96xbf16>, vector<16x96xf32> -> vector<16x96xf32>
    %c0_5 = arith.constant 0 : index
    %c0_6 = arith.constant 0 : index
    %c0_7 = arith.constant 0 : index
    %8 = vector.load %arg6[%c0_5, %c0_6, %c0_7] : memref<1x1x96xf32, #tpu.memory_space<vmem>>, vector<1x1x96xf32>
    %9 = vector.shape_cast %8 : vector<1x1x96xf32> to vector<1x96xf32>
    %10 = vector.broadcast %9 : vector<1x96xf32> to vector<16x96xf32>
    %11 = arith.addf %7, %10 : vector<16x96xf32>
    %12 = vector.extract_strided_slice %11 {offsets = [0, 0], sizes = [16, 32], strides = [1, 1]} : vector<16x96xf32> to vector<16x32xf32>
    %cst_8 = arith.constant 0.353553385 : f32
    %13 = vector.broadcast %cst_8 : f32 to vector<16x32xf32>
    %14 = arith.mulf %12, %13 : vector<16x32xf32>
    %15 = vector.extract_strided_slice %11 {offsets = [0, 32], sizes = [16, 32], strides = [1, 1]} : vector<16x96xf32> to vector<16x32xf32>
    %16 = vector.extract_strided_slice %11 {offsets = [0, 64], sizes = [16, 32], strides = [1, 1]} : vector<16x96xf32> to vector<16x32xf32>
    %17 = vector.extract_strided_slice %14 {offsets = [0, 0], sizes = [8, 8], strides = [1, 1]} : vector<16x32xf32> to vector<8x8xf32>
    %18 = vector.extract_strided_slice %14 {offsets = [0, 8], sizes = [8, 8], strides = [1, 1]} : vector<16x32xf32> to vector<8x8xf32>
    %19 = vector.extract_strided_slice %14 {offsets = [0, 16], sizes = [8, 8], strides = [1, 1]} : vector<16x32xf32> to vector<8x8xf32>
    %20 = vector.extract_strided_slice %14 {offsets = [0, 24], sizes = [8, 8], strides = [1, 1]} : vector<16x32xf32> to vector<8x8xf32>
    %21 = vector.extract_strided_slice %14 {offsets = [8, 0], sizes = [8, 8], strides = [1, 1]} : vector<16x32xf32> to vector<8x8xf32>
    %22 = vector.extract_strided_slice %14 {offsets = [8, 8], sizes = [8, 8], strides = [1, 1]} : vector<16x32xf32> to vector<8x8xf32>
    %23 = vector.extract_strided_slice %14 {offsets = [8, 16], sizes = [8, 8], strides = [1, 1]} : vector<16x32xf32> to vector<8x8xf32>
    %24 = vector.extract_strided_slice %14 {offsets = [8, 24], sizes = [8, 8], strides = [1, 1]} : vector<16x32xf32> to vector<8x8xf32>
    %25 = vector.shape_cast %17 : vector<8x8xf32> to vector<1x8x8xf32>
    %26 = vector.shape_cast %18 : vector<8x8xf32> to vector<1x8x8xf32>
    %27 = vector.shape_cast %19 : vector<8x8xf32> to vector<1x8x8xf32>
    %28 = vector.shape_cast %20 : vector<8x8xf32> to vector<1x8x8xf32>
    %29 = vector.shape_cast %21 : vector<8x8xf32> to vector<1x8x8xf32>
    %30 = vector.shape_cast %22 : vector<8x8xf32> to vector<1x8x8xf32>
    %31 = vector.shape_cast %23 : vector<8x8xf32> to vector<1x8x8xf32>
    %32 = vector.shape_cast %24 : vector<8x8xf32> to vector<1x8x8xf32>
    %33 = tpu.concatenate %25, %26, %27, %28, %29, %30, %31, %32 in 0 : vector<1x8x8xf32>, vector<1x8x8xf32>, vector<1x8x8xf32>, vector<1x8x8xf32>, vector<1x8x8xf32>, vector<1x8x8xf32>, vector<1x8x8xf32>, vector<1x8x8xf32> -> vector<8x8x8xf32>
    %34 = vector.extract_strided_slice %15 {offsets = [0, 0], sizes = [8, 8], strides = [1, 1]} : vector<16x32xf32> to vector<8x8xf32>
    %35 = vector.extract_strided_slice %15 {offsets = [0, 8], sizes = [8, 8], strides = [1, 1]} : vector<16x32xf32> to vector<8x8xf32>
    %36 = vector.extract_strided_slice %15 {offsets = [0, 16], sizes = [8, 8], strides = [1, 1]} : vector<16x32xf32> to vector<8x8xf32>
    %37 = vector.extract_strided_slice %15 {offsets = [0, 24], sizes = [8, 8], strides = [1, 1]} : vector<16x32xf32> to vector<8x8xf32>
    %38 = vector.extract_strided_slice %15 {offsets = [8, 0], sizes = [8, 8], strides = [1, 1]} : vector<16x32xf32> to vector<8x8xf32>
    %39 = vector.extract_strided_slice %15 {offsets = [8, 8], sizes = [8, 8], strides = [1, 1]} : vector<16x32xf32> to vector<8x8xf32>
    %40 = vector.extract_strided_slice %15 {offsets = [8, 16], sizes = [8, 8], strides = [1, 1]} : vector<16x32xf32> to vector<8x8xf32>
    %41 = vector.extract_strided_slice %15 {offsets = [8, 24], sizes = [8, 8], strides = [1, 1]} : vector<16x32xf32> to vector<8x8xf32>
    %42 = vector.shape_cast %34 : vector<8x8xf32> to vector<1x8x8xf32>
    %43 = vector.shape_cast %35 : vector<8x8xf32> to vector<1x8x8xf32>
    %44 = vector.shape_cast %36 : vector<8x8xf32> to vector<1x8x8xf32>
    %45 = vector.shape_cast %37 : vector<8x8xf32> to vector<1x8x8xf32>
    %46 = vector.shape_cast %38 : vector<8x8xf32> to vector<1x8x8xf32>
    %47 = vector.shape_cast %39 : vector<8x8xf32> to vector<1x8x8xf32>
    %48 = vector.shape_cast %40 : vector<8x8xf32> to vector<1x8x8xf32>
    %49 = vector.shape_cast %41 : vector<8x8xf32> to vector<1x8x8xf32>
    %50 = tpu.concatenate %42, %43, %44, %45, %46, %47, %48, %49 in 0 : vector<1x8x8xf32>, vector<1x8x8xf32>, vector<1x8x8xf32>, vector<1x8x8xf32>, vector<1x8x8xf32>, vector<1x8x8xf32>, vector<1x8x8xf32>, vector<1x8x8xf32> -> vector<8x8x8xf32>
    %51 = vector.extract_strided_slice %16 {offsets = [0, 0], sizes = [8, 8], strides = [1, 1]} : vector<16x32xf32> to vector<8x8xf32>
    %52 = vector.extract_strided_slice %16 {offsets = [0, 8], sizes = [8, 8], strides = [1, 1]} : vector<16x32xf32> to vector<8x8xf32>
    %53 = vector.extract_strided_slice %16 {offsets = [0, 16], sizes = [8, 8], strides = [1, 1]} : vector<16x32xf32> to vector<8x8xf32>
    %54 = vector.extract_strided_slice %16 {offsets = [0, 24], sizes = [8, 8], strides = [1, 1]} : vector<16x32xf32> to vector<8x8xf32>
    %55 = vector.extract_strided_slice %16 {offsets = [8, 0], sizes = [8, 8], strides = [1, 1]} : vector<16x32xf32> to vector<8x8xf32>
    %56 = vector.extract_strided_slice %16 {offsets = [8, 8], sizes = [8, 8], strides = [1, 1]} : vector<16x32xf32> to vector<8x8xf32>
    %57 = vector.extract_strided_slice %16 {offsets = [8, 16], sizes = [8, 8], strides = [1, 1]} : vector<16x32xf32> to vector<8x8xf32>
    %58 = vector.extract_strided_slice %16 {offsets = [8, 24], sizes = [8, 8], strides = [1, 1]} : vector<16x32xf32> to vector<8x8xf32>
    %59 = vector.shape_cast %51 : vector<8x8xf32> to vector<1x8x8xf32>
    %60 = vector.shape_cast %52 : vector<8x8xf32> to vector<1x8x8xf32>
    %61 = vector.shape_cast %53 : vector<8x8xf32> to vector<1x8x8xf32>
    %62 = vector.shape_cast %54 : vector<8x8xf32> to vector<1x8x8xf32>
    %63 = vector.shape_cast %55 : vector<8x8xf32> to vector<1x8x8xf32>
    %64 = vector.shape_cast %56 : vector<8x8xf32> to vector<1x8x8xf32>
    %65 = vector.shape_cast %57 : vector<8x8xf32> to vector<1x8x8xf32>
    %66 = vector.shape_cast %58 : vector<8x8xf32> to vector<1x8x8xf32>
    %67 = tpu.concatenate %59, %60, %61, %62, %63, %64, %65, %66 in 0 : vector<1x8x8xf32>, vector<1x8x8xf32>, vector<1x8x8xf32>, vector<1x8x8xf32>, vector<1x8x8xf32>, vector<1x8x8xf32>, vector<1x8x8xf32>, vector<1x8x8xf32> -> vector<8x8x8xf32>
    "tpu.trace_start"() <{level = 10 : i32, message = "nqd,nkd->nqk"}> : () -> ()
    %cst_9 = arith.constant dense<0.000000e+00> : vector<8x8x8xf32>
    %68 = tpu.matmul %33, %50, %cst_9 {dimension_numbers = #tpu.dot_dimension_numbers<[2], [2], [1], [1], [0, 0, 0, 1, 1, 1], [0], [0]>} : vector<8x8x8xf32>, vector<8x8x8xf32>, vector<8x8x8xf32> -> vector<8x8x8xf32>
    "tpu.trace_stop"() : () -> ()
    %c0_10 = arith.constant 0 : index
    %c0_11 = arith.constant 0 : index
    %c0_12 = arith.constant 0 : index
    %69 = vector.load %arg2[%c0_10, %c0_11, %c0_12] : memref<8x1x8xf32, #tpu.memory_space<vmem>>, vector<8x1x8xf32>
    %70 = vector.broadcast %69 : vector<8x1x8xf32> to vector<8x8x8xf32>
    %71 = arith.addf %68, %70 : vector<8x8x8xf32>
    %cst_13 = arith.constant dense<0xFF800000> : vector<8x8xf32>
    %72 = vector.multi_reduction <maximumf>, %71, %cst_13 [2] : vector<8x8x8xf32> to vector<8x8xf32>
    %73 = vector.shape_cast %72 : vector<8x8xf32> to vector<8x8x1xf32>
    %74 = vector.broadcast %73 : vector<8x8x1xf32> to vector<8x8x8xf32>
    %75 = arith.subf %71, %74 : vector<8x8x8xf32>
    %76 = math.exp %75 : vector<8x8x8xf32>
    %cst_14 = arith.constant dense<0.000000e+00> : vector<8x8xf32>
    %77 = vector.multi_reduction <add>, %76, %cst_14 [2] : vector<8x8x8xf32> to vector<8x8xf32>
    %78 = vector.shape_cast %77 : vector<8x8xf32> to vector<8x8x1xf32>
    %79 = tpu.reciprocal %78 {approx = true} : vector<8x8x1xf32> -> vector<8x8x1xf32>
    %80 = vector.broadcast %79 : vector<8x8x1xf32> to vector<8x8x8xf32>
    %81 = arith.mulf %76, %80 : vector<8x8x8xf32>
    "tpu.trace_start"() <{level = 10 : i32, message = "nqk,nkd->nqd"}> : () -> ()
    %cst_15 = arith.constant dense<0.000000e+00> : vector<8x8x8xf32>
    %82 = tpu.matmul %81, %67, %cst_15 {dimension_numbers = #tpu.dot_dimension_numbers<[2], [1], [1], [2], [0, 0, 0, 1, 1, 2], [0], [0]>} : vector<8x8x8xf32>, vector<8x8x8xf32>, vector<8x8x8xf32> -> vector<8x8x8xf32>
    "tpu.trace_stop"() : () -> ()
    %83 = vector.extract_strided_slice %82 {offsets = [0, 0, 0], sizes = [1, 8, 8], strides = [1, 1, 1]} : vector<8x8x8xf32> to vector<1x8x8xf32>
    %84 = vector.shape_cast %83 : vector<1x8x8xf32> to vector<8x8xf32>
    %85 = vector.extract_strided_slice %82 {offsets = [1, 0, 0], sizes = [1, 8, 8], strides = [1, 1, 1]} : vector<8x8x8xf32> to vector<1x8x8xf32>
    %86 = vector.shape_cast %85 : vector<1x8x8xf32> to vector<8x8xf32>
    %87 = vector.extract_strided_slice %82 {offsets = [2, 0, 0], sizes = [1, 8, 8], strides = [1, 1, 1]} : vector<8x8x8xf32> to vector<1x8x8xf32>
    %88 = vector.shape_cast %87 : vector<1x8x8xf32> to vector<8x8xf32>
    %89 = vector.extract_strided_slice %82 {offsets = [3, 0, 0], sizes = [1, 8, 8], strides = [1, 1, 1]} : vector<8x8x8xf32> to vector<1x8x8xf32>
    %90 = vector.shape_cast %89 : vector<1x8x8xf32> to vector<8x8xf32>
    %91 = tpu.concatenate %84, %86, %88, %90 in 1 : vector<8x8xf32>, vector<8x8xf32>, vector<8x8xf32>, vector<8x8xf32> -> vector<8x32xf32>
    %92 = vector.extract_strided_slice %82 {offsets = [4, 0, 0], sizes = [1, 8, 8], strides = [1, 1, 1]} : vector<8x8x8xf32> to vector<1x8x8xf32>
    %93 = vector.shape_cast %92 : vector<1x8x8xf32> to vector<8x8xf32>
    %94 = vector.extract_strided_slice %82 {offsets = [5, 0, 0], sizes = [1, 8, 8], strides = [1, 1, 1]} : vector<8x8x8xf32> to vector<1x8x8xf32>
    %95 = vector.shape_cast %94 : vector<1x8x8xf32> to vector<8x8xf32>
    %96 = vector.extract_strided_slice %82 {offsets = [6, 0, 0], sizes = [1, 8, 8], strides = [1, 1, 1]} : vector<8x8x8xf32> to vector<1x8x8xf32>
    %97 = vector.shape_cast %96 : vector<1x8x8xf32> to vector<8x8xf32>
    %98 = vector.extract_strided_slice %82 {offsets = [7, 0, 0], sizes = [1, 8, 8], strides = [1, 1, 1]} : vector<8x8x8xf32> to vector<1x8x8xf32>
    %99 = vector.shape_cast %98 : vector<1x8x8xf32> to vector<8x8xf32>
    %100 = tpu.concatenate %93, %95, %97, %99 in 1 : vector<8x8xf32>, vector<8x8xf32>, vector<8x8xf32>, vector<8x8xf32> -> vector<8x32xf32>
    %101 = tpu.concatenate %91, %100 in 0 : vector<8x32xf32>, vector<8x32xf32> -> vector<16x32xf32>
    %102 = arith.truncf %101 : vector<16x32xf32> to vector<16x32xbf16>
    %c0_16 = arith.constant 0 : index
    %c0_17 = arith.constant 0 : index
    %c0_18 = arith.constant 0 : index
    %103 = vector.load %arg7[%c0_16, %c0_17, %c0_18] : memref<1x32x32xbf16, #tpu.memory_space<vmem>>, vector<1x32x32xbf16>
    %104 = vector.shape_cast %103 : vector<1x32x32xbf16> to vector<32x32xbf16>
    %cst_19 = arith.constant dense<0.000000e+00> : vector<16x32xf32>
    %105 = tpu.matmul %102, %104, %cst_19 {dimension_numbers = #tpu.dot_dimension_numbers<[1], [0], [0], [1], [0, 0, 1, 1], [], []>} : vector<16x32xbf16>, vector<32x32xbf16>, vector<16x32xf32> -> vector<16x32xf32>
    %c0_20 = arith.constant 0 : index
    %c0_21 = arith.constant 0 : index
    %c0_22 = arith.constant 0 : index
    %106 = vector.load %arg8[%c0_20, %c0_21, %c0_22] : memref<1x1x32xf32, #tpu.memory_space<vmem>>, vector<1x1x32xf32>
    %107 = vector.shape_cast %106 : vector<1x1x32xf32> to vector<1x32xf32>
    %108 = vector.broadcast %107 : vector<1x32xf32> to vector<16x32xf32>
    %109 = arith.addf %105, %108 : vector<16x32xf32>
    %110 = arith.addf %109, %3 : vector<16x32xf32>
    %c0_23 = arith.constant 0 : index
    %c0_24 = arith.constant 0 : index
    %c0_25 = arith.constant 0 : index
    %111 = vector.load %arg9[%c0_23, %c0_24, %c0_25] : memref<1x1x32xf32, #tpu.memory_space<vmem>>, vector<1x1x32xf32>
    %112 = vector.shape_cast %111 : vector<1x1x32xf32> to vector<1x32xf32>
    %c0_26 = arith.constant 0 : index
    %c0_27 = arith.constant 0 : index
    %c0_28 = arith.constant 0 : index
    %113 = vector.load %arg10[%c0_26, %c0_27, %c0_28] : memref<1x1x32xf32, #tpu.memory_space<vmem>>, vector<1x1x32xf32>
    %114 = vector.shape_cast %113 : vector<1x1x32xf32> to vector<1x32xf32>
    %cst_29 = arith.constant dense<0.000000e+00> : vector<16xf32>
    %115 = vector.multi_reduction <add>, %110, %cst_29 [1] : vector<16x32xf32> to vector<16xf32>
    %116 = vector.shape_cast %115 : vector<16xf32> to vector<16x1xf32>
    %cst_30 = arith.constant 3.200000e+01 : f32
    %117 = vector.broadcast %cst_30 : f32 to vector<16x1xf32>
    %118 = arith.divf %116, %117 : vector<16x1xf32>
    %119 = arith.mulf %110, %110 : vector<16x32xf32>
    %cst_31 = arith.constant dense<0.000000e+00> : vector<16xf32>
    %120 = vector.multi_reduction <add>, %119, %cst_31 [1] : vector<16x32xf32> to vector<16xf32>
    %121 = vector.shape_cast %120 : vector<16xf32> to vector<16x1xf32>
    %cst_32 = arith.constant 3.200000e+01 : f32
    %122 = vector.broadcast %cst_32 : f32 to vector<16x1xf32>
    %123 = arith.divf %121, %122 : vector<16x1xf32>
    %124 = arith.mulf %118, %118 : vector<16x1xf32>
    %125 = arith.subf %123, %124 : vector<16x1xf32>
    %cst_33 = arith.constant 0.000000e+00 : f32
    %126 = vector.broadcast %cst_33 : f32 to vector<16x1xf32>
    %127 = arith.maximumf %125, %126 : vector<16x1xf32>
    %128 = vector.broadcast %118 : vector<16x1xf32> to vector<16x32xf32>
    %129 = arith.subf %110, %128 : vector<16x32xf32>
    %cst_34 = arith.constant 9.99999996E-13 : f32
    %130 = vector.broadcast %cst_34 : f32 to vector<16x1xf32>
    %131 = arith.addf %127, %130 : vector<16x1xf32>
    %132 = math.rsqrt %131 : vector<16x1xf32>
    %133 = vector.broadcast %132 : vector<16x1xf32> to vector<16x32xf32>
    %134 = arith.mulf %129, %133 : vector<16x32xf32>
    %135 = vector.broadcast %112 : vector<1x32xf32> to vector<16x32xf32>
    %136 = arith.mulf %134, %135 : vector<16x32xf32>
    %137 = vector.broadcast %114 : vector<1x32xf32> to vector<16x32xf32>
    %138 = arith.addf %136, %137 : vector<16x32xf32>
    %139 = arith.truncf %138 : vector<16x32xf32> to vector<16x32xbf16>
    %c0_35 = arith.constant 0 : index
    %c0_36 = arith.constant 0 : index
    %c0_37 = arith.constant 0 : index
    %140 = vector.load %arg11[%c0_35, %c0_36, %c0_37] : memref<1x32x64xbf16, #tpu.memory_space<vmem>>, vector<1x32x64xbf16>
    %141 = vector.shape_cast %140 : vector<1x32x64xbf16> to vector<32x64xbf16>
    %cst_38 = arith.constant dense<0.000000e+00> : vector<16x64xf32>
    %142 = tpu.matmul %139, %141, %cst_38 {dimension_numbers = #tpu.dot_dimension_numbers<[1], [0], [0], [1], [0, 0, 1, 1], [], []>} : vector<16x32xbf16>, vector<32x64xbf16>, vector<16x64xf32> -> vector<16x64xf32>
    %c0_39 = arith.constant 0 : index
    %c0_40 = arith.constant 0 : index
    %c0_41 = arith.constant 0 : index
    %143 = vector.load %arg12[%c0_39, %c0_40, %c0_41] : memref<1x1x64xf32, #tpu.memory_space<vmem>>, vector<1x1x64xf32>
    %144 = vector.shape_cast %143 : vector<1x1x64xf32> to vector<1x64xf32>
    %145 = vector.broadcast %144 : vector<1x64xf32> to vector<16x64xf32>
    %146 = arith.addf %142, %145 : vector<16x64xf32>
    %cst_42 = arith.constant 5.000000e-01 : f32
    %147 = vector.broadcast %cst_42 : f32 to vector<16x64xf32>
    %148 = arith.mulf %147, %146 : vector<16x64xf32>
    %cst_43 = arith.constant 0.707106769 : f32
    %149 = vector.broadcast %cst_43 : f32 to vector<16x64xf32>
    %150 = arith.mulf %146, %149 : vector<16x64xf32>
    %151 = math.erf %150 : vector<16x64xf32>
    %cst_44 = arith.constant 1.000000e+00 : f32
    %152 = vector.broadcast %cst_44 : f32 to vector<16x64xf32>
    %153 = arith.addf %152, %151 : vector<16x64xf32>
    %154 = arith.mulf %148, %153 : vector<16x64xf32>
    %155 = arith.truncf %154 : vector<16x64xf32> to vector<16x64xbf16>
    %c0_45 = arith.constant 0 : index
    %c0_46 = arith.constant 0 : index
    %c0_47 = arith.constant 0 : index
    %156 = vector.load %arg13[%c0_45, %c0_46, %c0_47] : memref<1x64x32xbf16, #tpu.memory_space<vmem>>, vector<1x64x32xbf16>
    %157 = vector.shape_cast %156 : vector<1x64x32xbf16> to vector<64x32xbf16>
    %cst_48 = arith.constant dense<0.000000e+00> : vector<16x32xf32>
    %158 = tpu.matmul %155, %157, %cst_48 {dimension_numbers = #tpu.dot_dimension_numbers<[1], [0], [0], [1], [0, 0, 1, 1], [], []>} : vector<16x64xbf16>, vector<64x32xbf16>, vector<16x32xf32> -> vector<16x32xf32>
    %c0_49 = arith.constant 0 : index
    %c0_50 = arith.constant 0 : index
    %c0_51 = arith.constant 0 : index
    %159 = vector.load %arg14[%c0_49, %c0_50, %c0_51] : memref<1x1x32xf32, #tpu.memory_space<vmem>>, vector<1x1x32xf32>
    %160 = vector.shape_cast %159 : vector<1x1x32xf32> to vector<1x32xf32>
    %161 = vector.broadcast %160 : vector<1x32xf32> to vector<16x32xf32>
    %162 = arith.addf %158, %161 : vector<16x32xf32>
    %163 = arith.addf %162, %138 : vector<16x32xf32>
    %c0_52 = arith.constant 0 : index
    %c0_53 = arith.constant 0 : index
    %c0_54 = arith.constant 0 : index
    %164 = vector.load %arg15[%c0_52, %c0_53, %c0_54] : memref<1x1x32xf32, #tpu.memory_space<vmem>>, vector<1x1x32xf32>
    %165 = vector.shape_cast %164 : vector<1x1x32xf32> to vector<1x32xf32>
    %c0_55 = arith.constant 0 : index
    %c0_56 = arith.constant 0 : index
    %c0_57 = arith.constant 0 : index
    %166 = vector.load %arg16[%c0_55, %c0_56, %c0_57] : memref<1x1x32xf32, #tpu.memory_space<vmem>>, vector<1x1x32xf32>
    %167 = vector.shape_cast %166 : vector<1x1x32xf32> to vector<1x32xf32>
    %cst_58 = arith.constant dense<0.000000e+00> : vector<16xf32>
    %168 = vector.multi_reduction <add>, %163, %cst_58 [1] : vector<16x32xf32> to vector<16xf32>
    %169 = vector.shape_cast %168 : vector<16xf32> to vector<16x1xf32>
    %cst_59 = arith.constant 3.200000e+01 : f32
    %170 = vector.broadcast %cst_59 : f32 to vector<16x1xf32>
    %171 = arith.divf %169, %170 : vector<16x1xf32>
    %172 = arith.mulf %163, %163 : vector<16x32xf32>
    %cst_60 = arith.constant dense<0.000000e+00> : vector<16xf32>
    %173 = vector.multi_reduction <add>, %172, %cst_60 [1] : vector<16x32xf32> to vector<16xf32>
    %174 = vector.shape_cast %173 : vector<16xf32> to vector<16x1xf32>
    %cst_61 = arith.constant 3.200000e+01 : f32
    %175 = vector.broadcast %cst_61 : f32 to vector<16x1xf32>
    %176 = arith.divf %174, %175 : vector<16x1xf32>
    %177 = arith.mulf %171, %171 : vector<16x1xf32>
    %178 = arith.subf %176, %177 : vector<16x1xf32>
    %cst_62 = arith.constant 0.000000e+00 : f32
    %179 = vector.broadcast %cst_62 : f32 to vector<16x1xf32>
    %180 = arith.maximumf %178, %179 : vector<16x1xf32>
    %181 = vector.broadcast %171 : vector<16x1xf32> to vector<16x32xf32>
    %182 = arith.subf %163, %181 : vector<16x32xf32>
    %cst_63 = arith.constant 9.99999996E-13 : f32
    %183 = vector.broadcast %cst_63 : f32 to vector<16x1xf32>
    %184 = arith.addf %180, %183 : vector<16x1xf32>
    %185 = math.rsqrt %184 : vector<16x1xf32>
    %186 = vector.broadcast %185 : vector<16x1xf32> to vector<16x32xf32>
    %187 = arith.mulf %182, %186 : vector<16x32xf32>
    %188 = vector.broadcast %165 : vector<1x32xf32> to vector<16x32xf32>
    %189 = arith.mulf %187, %188 : vector<16x32xf32>
    %190 = vector.broadcast %167 : vector<1x32xf32> to vector<16x32xf32>
    %191 = arith.addf %189, %190 : vector<16x32xf32>
    %c0_64 = arith.constant 0 : index
    %c0_65 = arith.constant 0 : index
    %192 = vector.load %arg21[%c0_64, %c0_65] : memref<16x32xf32, #tpu.memory_space<vmem>>, vector<16x32xf32>
    tpu.vector_store %arg21[%c0_64, %c0_65], %191 {strides = array<i32>} : memref<16x32xf32, #tpu.memory_space<vmem>>, vector<16x32xf32>,
    %c1_i32 = arith.constant 1 : i32
    %193 = arith.cmpi eq, %arg0, %c1_i32 : i32
    %194 = arith.extui %193 : i1 to i32
    %c0_i32_66 = arith.constant 0 : i32
    %195 = arith.cmpi ne, %194, %c0_i32_66 : i32
    scf.if %195 {
      %196 = vector.extract_strided_slice %191 {offsets = [0, 0], sizes = [1, 32], strides = [1, 1]} : vector<16x32xf32> to vector<1x32xf32>
      %197 = vector.extract_strided_slice %191 {offsets = [8, 0], sizes = [1, 32], strides = [1, 1]} : vector<16x32xf32> to vector<1x32xf32>
      %198 = tpu.concatenate %196, %197 in 0 : vector<1x32xf32>, vector<1x32xf32> -> vector<2x32xf32>
      %c0_67 = arith.constant 0 : index
      %c0_68 = arith.constant 0 : index
      %199 = vector.load %arg19[%c0_67, %c0_68] : memref<2x32xf32, #tpu.memory_space<vmem>>, vector<2x32xf32>
      tpu.vector_store %arg19[%c0_67, %c0_68], %198 {strides = array<i32>} : memref<2x32xf32, #tpu.memory_space<vmem>>, vector<2x32xf32>,
      %200 = arith.truncf %198 : vector<2x32xf32> to vector<2x32xbf16>
      %c0_69 = arith.constant 0 : index
      %c0_70 = arith.constant 0 : index
      %201 = vector.load %arg17[%c0_69, %c0_70] : memref<32x2xbf16, #tpu.memory_space<vmem>>, vector<32x2xbf16>
      %cst_71 = arith.constant dense<0.000000e+00> : vector<2x2xf32>
      %202 = tpu.matmul %200, %201, %cst_71 {dimension_numbers = #tpu.dot_dimension_numbers<[1], [0], [0], [1], [0, 0, 1, 1], [], []>} : vector<2x32xbf16>, vector<32x2xbf16>, vector<2x2xf32> -> vector<2x2xf32>
      %c0_72 = arith.constant 0 : index
      %c0_73 = arith.constant 0 : index
      %203 = vector.load %arg18[%c0_72, %c0_73] : memref<1x2xf32, #tpu.memory_space<vmem>>, vector<1x2xf32>
      %204 = vector.broadcast %203 : vector<1x2xf32> to vector<2x2xf32>
      %205 = arith.addf %202, %204 : vector<2x2xf32>
      %c0_74 = arith.constant 0 : index
      %c0_75 = arith.constant 0 : index
      %206 = vector.load %arg20[%c0_74, %c0_75] : memref<2x2xf32, #tpu.memory_space<vmem>>, vector<2x2xf32>
      tpu.vector_store %arg20[%c0_74, %c0_75], %205 {strides = array<i32>} : memref<2x2xf32, #tpu.memory_space<vmem>>, vector<2x2xf32>,
    } else {
    }
    return
  }
  func.func @transform_0(%arg0: i32) -> (i32, i32) {
    %c0_i32 = arith.constant 0 : i32
    %c0_i32_0 = arith.constant 0 : i32
    %c0_i32_1 = arith.constant 0 : i32
    return %c0_i32, %c0_i32_0 : i32, i32
  }
  func.func @transform_1(%arg0: i32) -> (i32, i32, i32) {
    %c0_i32 = arith.constant 0 : i32
    %c0_i32_0 = arith.constant 0 : i32
    %c0_i32_1 = arith.constant 0 : i32
    %c0_i32_2 = arith.constant 0 : i32
    return %c0_i32, %c0_i32_0, %c0_i32_1 : i32, i32, i32
  }
  func.func @transform_2(%arg0: i32) -> (i32, i32) {
    %c0_i32 = arith.constant 0 : i32
    %c0_i32_0 = arith.constant 0 : i32
    %c0_i32_1 = arith.constant 0 : i32
    return %c0_i32, %c0_i32_0 : i32, i32
  }
  func.func @transform_3(%arg0: i32) -> (i32, i32) {
    %c0_i32 = arith.constant 0 : i32
    %c0_i32_0 = arith.constant 0 : i32
    %c0_i32_1 = arith.constant 0 : i32
    return %c0_i32, %c0_i32_0 : i32, i32
  }
  func.func @transform_4(%arg0: i32) -> (i32, i32, i32) {
    %c0_i32 = arith.constant 0 : i32
    %c0_i32_0 = arith.constant 0 : i32
    %c0_i32_1 = arith.constant 0 : i32
    return %arg0, %c0_i32, %c0_i32_0 : i32, i32, i32
  }
  func.func @transform_5(%arg0: i32) -> (i32, i32, i32) {
    %c0_i32 = arith.constant 0 : i32
    %c0_i32_0 = arith.constant 0 : i32
    %c0_i32_1 = arith.constant 0 : i32
    return %arg0, %c0_i32, %c0_i32_0 : i32, i32, i32
  }
  func.func @transform_6(%arg0: i32) -> (i32, i32, i32) {
    %c0_i32 = arith.constant 0 : i32
    %c0_i32_0 = arith.constant 0 : i32
    %c0_i32_1 = arith.constant 0 : i32
    return %arg0, %c0_i32, %c0_i32_0 : i32, i32, i32
  }
  func.func @transform_7(%arg0: i32) -> (i32, i32, i32) {
    %c0_i32 = arith.constant 0 : i32
    %c0_i32_0 = arith.constant 0 : i32
    %c0_i32_1 = arith.constant 0 : i32
    return %arg0, %c0_i32, %c0_i32_0 : i32, i32, i32
  }
  func.func @transform_8(%arg0: i32) -> (i32, i32, i32) {
    %c0_i32 = arith.constant 0 : i32
    %c0_i32_0 = arith.constant 0 : i32
    %c0_i32_1 = arith.constant 0 : i32
    return %arg0, %c0_i32, %c0_i32_0 : i32, i32, i32
  }
  func.func @transform_9(%arg0: i32) -> (i32, i32, i32) {
    %c0_i32 = arith.constant 0 : i32
    %c0_i32_0 = arith.constant 0 : i32
    %c0_i32_1 = arith.constant 0 : i32
    return %arg0, %c0_i32, %c0_i32_0 : i32, i32, i32
  }
  func.func @transform_10(%arg0: i32) -> (i32, i32, i32) {
    %c0_i32 = arith.constant 0 : i32
    %c0_i32_0 = arith.constant 0 : i32
    %c0_i32_1 = arith.constant 0 : i32
    return %arg0, %c0_i32, %c0_i32_0 : i32, i32, i32
  }
  func.func @transform_11(%arg0: i32) -> (i32, i32, i32) {
    %c0_i32 = arith.constant 0 : i32
    %c0_i32_0 = arith.constant 0 : i32
    %c0_i32_1 = arith.constant 0 : i32
    return %arg0, %c0_i32, %c0_i32_0 : i32, i32, i32
  }
  func.func @transform_12(%arg0: i32) -> (i32, i32, i32) {
    %c0_i32 = arith.constant 0 : i32
    %c0_i32_0 = arith.constant 0 : i32
    %c0_i32_1 = arith.constant 0 : i32
    return %arg0, %c0_i32, %c0_i32_0 : i32, i32, i32
  }
  func.func @transform_13(%arg0: i32) -> (i32, i32, i32) {
    %c0_i32 = arith.constant 0 : i32
    %c0_i32_0 = arith.constant 0 : i32
    %c0_i32_1 = arith.constant 0 : i32
    return %arg0, %c0_i32, %c0_i32_0 : i32, i32, i32
  }
  func.func @transform_14(%arg0: i32) -> (i32, i32, i32) {
    %c0_i32 = arith.constant 0 : i32
    %c0_i32_0 = arith.constant 0 : i32
    %c0_i32_1 = arith.constant 0 : i32
    return %arg0, %c0_i32, %c0_i32_0 : i32, i32, i32
  }
  func.func @transform_15(%arg0: i32) -> (i32, i32, i32) {
    %c0_i32 = arith.constant 0 : i32
    %c0_i32_0 = arith.constant 0 : i32
    %c0_i32_1 = arith.constant 0 : i32
    return %arg0, %c0_i32, %c0_i32_0 : i32, i32, i32
  }
  func.func @transform_16(%arg0: i32) -> (i32, i32) {
    %c0_i32 = arith.constant 0 : i32
    %c0_i32_0 = arith.constant 0 : i32
    %c0_i32_1 = arith.constant 0 : i32
    return %c0_i32, %c0_i32_0 : i32, i32
  }
  func.func @transform_17(%arg0: i32) -> (i32, i32) {
    %c0_i32 = arith.constant 0 : i32
    %c0_i32_0 = arith.constant 0 : i32
    %c0_i32_1 = arith.constant 0 : i32
    return %c0_i32, %c0_i32_0 : i32, i32
  }
  func.func @transform_18(%arg0: i32) -> (i32, i32) {
    %c0_i32 = arith.constant 0 : i32
    %c0_i32_0 = arith.constant 0 : i32
    %c0_i32_1 = arith.constant 0 : i32
    return %c0_i32, %c0_i32_0 : i32, i32
  }
  func.func @transform_19(%arg0: i32) -> (i32, i32) {
    %c0_i32 = arith.constant 0 : i32
    %c0_i32_0 = arith.constant 0 : i32
    %c0_i32_1 = arith.constant 0 : i32
    return %c0_i32, %c0_i32_0 : i32, i32
  }
}

</mosaic_0001>

<llo_original>
// kernel: bert_forward.1
$region0: #{bert_forward.1}
  #allocation0 [shape = 'u32[]', space=smem, size = 0x4, offset = 0x4, fixed_abs, tag = 'smem constant byte address 0x4 - core index']
  #allocation1 [shape = 'u32[144,128]{1,0:T(1,128)}', space=vmem, size = 0x12000, scoped, tag = 'internal scratch']
  #allocation2 [shape = 'f32[16,32]{1,0:T(8,128)}', space=vmem, size = 0x2000, scoped, tag = 'scratch operand']
  %s0 = inlined_call_operand.vmem [shape: f32[16,32], index: 0, kind: input, shape index: {}]
  %s1 = inlined_call_operand.vmem [shape: f32[8,1,8], index: 1, kind: input, shape index: {}]
  %s2 = inlined_call_operand.vmem [shape: f32[1,32], index: 2, kind: input, shape index: {}]
  %s3 = inlined_call_operand.vmem [shape: f32[1,32], index: 3, kind: input, shape index: {}]
  %s4 = inlined_call_operand.vmem [shape: bf16[2,32,96], index: 4, kind: input, shape index: {}]
  %s5 = inlined_call_operand.vmem [shape: f32[2,1,96], index: 5, kind: input, shape index: {}]
  %s6 = inlined_call_operand.vmem [shape: bf16[2,32,32], index: 6, kind: input, shape index: {}]
  %s7 = inlined_call_operand.vmem [shape: f32[2,1,32], index: 7, kind: input, shape index: {}]
  %s8 = inlined_call_operand.vmem [shape: f32[2,1,32], index: 8, kind: input, shape index: {}]
  %s9 = inlined_call_operand.vmem [shape: f32[2,1,32], index: 9, kind: input, shape index: {}]
  %s10 = inlined_call_operand.vmem [shape: bf16[2,32,64], index: 10, kind: input, shape index: {}]
  %s11 = inlined_call_operand.vmem [shape: f32[2,1,64], index: 11, kind: input, shape index: {}]
  %s12 = inlined_call_operand.vmem [shape: bf16[2,64,32], index: 12, kind: input, shape index: {}]
  %s13 = inlined_call_operand.vmem [shape: f32[2,1,32], index: 13, kind: input, shape index: {}]
  %s14 = inlined_call_operand.vmem [shape: f32[2,1,32], index: 14, kind: input, shape index: {}]
  %s15 = inlined_call_operand.vmem [shape: f32[2,1,32], index: 15, kind: input, shape index: {}]
  %s16 = inlined_call_operand.vmem [shape: bf16[32,2], index: 16, kind: input, shape index: {}]
  %s17 = inlined_call_operand.vmem [shape: f32[1,2], index: 17, kind: input, shape index: {}]
  %s18 = inlined_call_operand.hbm [shape: f32[2,32], index: 18, kind: output, shape index: {0}]
  %s19 = inlined_call_operand.hbm [shape: f32[2,2], index: 19, kind: output, shape index: {1}]
  %20 = xla_tuple %s18, %s19
  %s21 = sld [smem:[#allocation0]]
  $region121: #{bert_forward.1} parent=0
    _
  %s23 = ssub.s32 1, %s21
  %s24 = scalar_select 0, %s23, %s21
  $region1: #{bert_forward.1} parent=0
    #allocation3 [shape = 'u8[1024]{0}', space=vmem, size = 0x400, scoped, tag = 'output window, operand 0, single buffered']
    #allocation4 [shape = 's32[2]{0}', space=sflag, size = 0x8, scoped, tag = 'scoped memory for bert_forward.1']
    #allocation5 [shape = 'u8[1024]{0}', space=vmem, size = 0x400, scoped, tag = 'output window, operand 1, single buffered']
    #allocation6 [shape = 's32[1]{0}', space=sflag, size = 0x4, scoped, tag = 'scoped memory for bert_forward.1']
    %25 = vsyncpa [#allocation4], 0
    %26 = vsyncpa [#allocation6], 0
    loop: start=0, step=1, limit=4
    $region2: #{bert_forward.1} parent=1 // loop_pre_header
      _
    $region3: #{bert_forward.1} parent=1 // loop_header
      %s28 = sphi 0, %s32
      %p29 = scmp.ge.s32.totalorder %s28, 4
      %s36 = sphi 0, %s36
      %s38 = sphi 0, %s36
      %s39 = sphi 0, %s38
      %s53 = sphi 0, %s39
      %s57 = sphi 0, %s57
      %s59 = sphi 0, %s57
      %s60 = sphi 0, %s59
      %s74 = sphi 0, %s60
      %s78 = sphi 0, %s78
      %s80 = sphi 0, %s78
      %s81 = sphi 0, %s80
      %s95 = sphi 0, %s81
      %s99 = sphi 0, %s99
      %s101 = sphi 0, %s99
      %s102 = sphi 0, %s101
      %s116 = sphi 0, %s102
      %s122 = sphi 0, %s124
      %s125 = sphi 0, %s122
      %s126 = sphi 0, %s125
      %s142 = sphi 0, %s126
      %s148 = sphi 0, %s150
      %s151 = sphi 0, %s148
      %s152 = sphi 0, %s151
      %s168 = sphi 0, %s152
      %s174 = sphi 0, %s176
      %s177 = sphi 0, %s174
      %s178 = sphi 0, %s177
      %s194 = sphi 0, %s178
      %s200 = sphi 0, %s202
      %s203 = sphi 0, %s200
      %s204 = sphi 0, %s203
      %s220 = sphi 0, %s204
      %s226 = sphi 0, %s228
      %s229 = sphi 0, %s226
      %s230 = sphi 0, %s229
      %s246 = sphi 0, %s230
      %s252 = sphi 0, %s254
      %s255 = sphi 0, %s252
      %s256 = sphi 0, %s255
      %s272 = sphi 0, %s256
      %s278 = sphi 0, %s280
      %s281 = sphi 0, %s278
      %s282 = sphi 0, %s281
      %s298 = sphi 0, %s282
      %s304 = sphi 0, %s306
      %s307 = sphi 0, %s304
      %s308 = sphi 0, %s307
      %s324 = sphi 0, %s308
      %s330 = sphi 0, %s332
      %s333 = sphi 0, %s330
      %s334 = sphi 0, %s333
      %s350 = sphi 0, %s334
      %s356 = sphi 0, %s358
      %s359 = sphi 0, %s356
      %s360 = sphi 0, %s359
      %s376 = sphi 0, %s360
      %s382 = sphi 0, %s384
      %s385 = sphi 0, %s382
      %s386 = sphi 0, %s385
      %s402 = sphi 0, %s386
      %s408 = sphi 0, %s410
      %s411 = sphi 0, %s408
      %s412 = sphi 0, %s411
      %s428 = sphi 0, %s412
      %s432 = sphi 0, %s432
      %s434 = sphi 0, %s432
      %s435 = sphi 0, %s434
      %s449 = sphi 0, %s435
      %s453 = sphi 0, %s453
      %s455 = sphi 0, %s453
      %s456 = sphi 0, %s455
      %s470 = sphi 0, %s456
      %s474 = sphi 0, %s474
      %s476 = sphi 0, %s474
      %s477 = sphi 0, %s476
      %s491 = sphi 0, %s477
      %s495 = sphi 0, %s495
      %s497 = sphi 0, %s495
      %s498 = sphi 0, %s497
      %s512 = sphi 0, %s498
    $region4: #{bert_forward.1} parent=1 // loop_header_branch
      %31 = sbr.rel (%p29) target = $region8
    $region5: #{bert_forward.1} parent=1 // loop_body
      %s33 = ssub.s32 %s28, 1
      %s34 = ssub.s32 %s28, 2
      %s35 = sadd.s32 %s28, 1
      %s37 = sadd.s32 %s36, 1
      %p40 = scmp.eq.s32.totalorder %s28, 1
      %p41 = scmp.ne.s32.totalorder %s36, %s38
      %p42 = scmp.eq.s32.totalorder %s28, 0
      %p43 = por %p41, %p42
      %p44 = scmp.ne.s32.totalorder %s36, %s38
      %p45 = scmp.eq.s32.totalorder %s33, 1
      %p46 = por %p44, %p45
      %p47 = scmp.ne.s32.totalorder %s38, %s39
      %p48 = scmp.eq.s32.totalorder %s33, 0
      %p49 = por %p47, %p48
      %p50 = scmp.ne.s32.totalorder %s38, %s39
      %p51 = scmp.eq.s32.totalorder %s34, 1
      %p52 = por %p50, %p51
      %p54 = scmp.ne.s32.totalorder %s39, %s53
      %p55 = scmp.eq.s32.totalorder %s34, 0
      %p56 = por %p54, %p55
      %s58 = sadd.s32 %s57, 1
      %p61 = scmp.eq.s32.totalorder %s28, 1
      %p62 = scmp.ne.s32.totalorder %s57, %s59
      %p63 = scmp.eq.s32.totalorder %s28, 0
      %p64 = por %p62, %p63
      %p65 = scmp.ne.s32.totalorder %s57, %s59
      %p66 = scmp.eq.s32.totalorder %s33, 1
      %p67 = por %p65, %p66
      %p68 = scmp.ne.s32.totalorder %s59, %s60
      %p69 = scmp.eq.s32.totalorder %s33, 0
      %p70 = por %p68, %p69
      %p71 = scmp.ne.s32.totalorder %s59, %s60
      %p72 = scmp.eq.s32.totalorder %s34, 1
      %p73 = por %p71, %p72
      %p75 = scmp.ne.s32.totalorder %s60, %s74
      %p76 = scmp.eq.s32.totalorder %s34, 0
      %p77 = por %p75, %p76
      %s79 = sadd.s32 %s78, 1
      %p82 = scmp.eq.s32.totalorder %s28, 1
      %p83 = scmp.ne.s32.totalorder %s78, %s80
      %p84 = scmp.eq.s32.totalorder %s28, 0
      %p85 = por %p83, %p84
      %p86 = scmp.ne.s32.totalorder %s78, %s80
      %p87 = scmp.eq.s32.totalorder %s33, 1
      %p88 = por %p86, %p87
      %p89 = scmp.ne.s32.totalorder %s80, %s81
      %p90 = scmp.eq.s32.totalorder %s33, 0
      %p91 = por %p89, %p90
      %p92 = scmp.ne.s32.totalorder %s80, %s81
      %p93 = scmp.eq.s32.totalorder %s34, 1
      %p94 = por %p92, %p93
      %p96 = scmp.ne.s32.totalorder %s81, %s95
      %p97 = scmp.eq.s32.totalorder %s34, 0
      %p98 = por %p96, %p97
      %s100 = sadd.s32 %s99, 1
      %p103 = scmp.eq.s32.totalorder %s28, 1
      %p104 = scmp.ne.s32.totalorder %s99, %s101
      %p105 = scmp.eq.s32.totalorder %s28, 0
      %p106 = por %p104, %p105
      %p107 = scmp.ne.s32.totalorder %s99, %s101
      %p108 = scmp.eq.s32.totalorder %s33, 1
      %p109 = por %p107, %p108
      %p110 = scmp.ne.s32.totalorder %s101, %s102
      %p111 = scmp.eq.s32.totalorder %s33, 0
      %p112 = por %p110, %p111
      %p113 = scmp.ne.s32.totalorder %s101, %s102
      %p114 = scmp.eq.s32.totalorder %s34, 1
      %p115 = por %p113, %p114
      %p117 = scmp.ne.s32.totalorder %s102, %s116
      %p118 = scmp.eq.s32.totalorder %s34, 0
      %p119 = por %p117, %p118
      %s120 = ssub.s32 %s28, %s35
      %p121 = scmp.eq.s32.totalorder %s120, 0
      %s123 = sadd.s32 %s122, 1
      %s124 = scalar_select %p121, %s122, %s123
      %p127 = pneg %p121
      %p128 = scmp.eq.s32.totalorder %s28, 1
      %p129 = por %p127, %p128
      %p130 = scmp.ne.s32.totalorder %s122, %s125
      %p131 = scmp.eq.s32.totalorder %s28, 0
      %p132 = por %p130, %p131
      %p133 = scmp.ne.s32.totalorder %s122, %s125
      %p134 = scmp.eq.s32.totalorder %s33, 1
      %p135 = por %p133, %p134
      %p136 = scmp.ne.s32.totalorder %s125, %s126
      %p137 = scmp.eq.s32.totalorder %s33, 0
      %p138 = por %p136, %p137
      %p139 = scmp.ne.s32.totalorder %s125, %s126
      %p140 = scmp.eq.s32.totalorder %s34, 1
      %p141 = por %p139, %p140
      %p143 = scmp.ne.s32.totalorder %s126, %s142
      %p144 = scmp.eq.s32.totalorder %s34, 0
      %p145 = por %p143, %p144
      %s146 = ssub.s32 %s28, %s35
      %p147 = scmp.eq.s32.totalorder %s146, 0
      %s149 = sadd.s32 %s148, 1
      %s150 = scalar_select %p147, %s148, %s149
      %p153 = pneg %p147
      %p154 = scmp.eq.s32.totalorder %s28, 1
      %p155 = por %p153, %p154
      %p156 = scmp.ne.s32.totalorder %s148, %s151
      %p157 = scmp.eq.s32.totalorder %s28, 0
      %p158 = por %p156, %p157
      %p159 = scmp.ne.s32.totalorder %s148, %s151
      %p160 = scmp.eq.s32.totalorder %s33, 1
      %p161 = por %p159, %p160
      %p162 = scmp.ne.s32.totalorder %s151, %s152
      %p163 = scmp.eq.s32.totalorder %s33, 0
      %p164 = por %p162, %p163
      %p165 = scmp.ne.s32.totalorder %s151, %s152
      %p166 = scmp.eq.s32.totalorder %s34, 1
      %p167 = por %p165, %p166
      %p169 = scmp.ne.s32.totalorder %s152, %s168
      %p170 = scmp.eq.s32.totalorder %s34, 0
      %p171 = por %p169, %p170
      %s172 = ssub.s32 %s28, %s35
      %p173 = scmp.eq.s32.totalorder %s172, 0
      %s175 = sadd.s32 %s174, 1
      %s176 = scalar_select %p173, %s174, %s175
      %p179 = pneg %p173
      %p180 = scmp.eq.s32.totalorder %s28, 1
      %p181 = por %p179, %p180
      %p182 = scmp.ne.s32.totalorder %s174, %s177
      %p183 = scmp.eq.s32.totalorder %s28, 0
      %p184 = por %p182, %p183
      %p185 = scmp.ne.s32.totalorder %s174, %s177
      %p186 = scmp.eq.s32.totalorder %s33, 1
      %p187 = por %p185, %p186
      %p188 = scmp.ne.s32.totalorder %s177, %s178
      %p189 = scmp.eq.s32.totalorder %s33, 0
      %p190 = por %p188, %p189
      %p191 = scmp.ne.s32.totalorder %s177, %s178
      %p192 = scmp.eq.s32.totalorder %s34, 1
      %p193 = por %p191, %p192
      %p195 = scmp.ne.s32.totalorder %s178, %s194
      %p196 = scmp.eq.s32.totalorder %s34, 0
      %p197 = por %p195, %p196
      %s198 = ssub.s32 %s28, %s35
      %p199 = scmp.eq.s32.totalorder %s198, 0
      %s201 = sadd.s32 %s200, 1
      %s202 = scalar_select %p199, %s200, %s201
      %p205 = pneg %p199
      %p206 = scmp.eq.s32.totalorder %s28, 1
      %p207 = por %p205, %p206
      %p208 = scmp.ne.s32.totalorder %s200, %s203
      %p209 = scmp.eq.s32.totalorder %s28, 0
      %p210 = por %p208, %p209
      %p211 = scmp.ne.s32.totalorder %s200, %s203
      %p212 = scmp.eq.s32.totalorder %s33, 1
      %p213 = por %p211, %p212
      %p214 = scmp.ne.s32.totalorder %s203, %s204
      %p215 = scmp.eq.s32.totalorder %s33, 0
      %p216 = por %p214, %p215
      %p217 = scmp.ne.s32.totalorder %s203, %s204
      %p218 = scmp.eq.s32.totalorder %s34, 1
      %p219 = por %p217, %p218
      %p221 = scmp.ne.s32.totalorder %s204, %s220
      %p222 = scmp.eq.s32.totalorder %s34, 0
      %p223 = por %p221, %p222
      %s224 = ssub.s32 %s28, %s35
      %p225 = scmp.eq.s32.totalorder %s224, 0
      %s227 = sadd.s32 %s226, 1
      %s228 = scalar_select %p225, %s226, %s227
      %p231 = pneg %p225
      %p232 = scmp.eq.s32.totalorder %s28, 1
      %p233 = por %p231, %p232
      %p234 = scmp.ne.s32.totalorder %s226, %s229
      %p235 = scmp.eq.s32.totalorder %s28, 0
      %p236 = por %p234, %p235
      %p237 = scmp.ne.s32.totalorder %s226, %s229
      %p238 = scmp.eq.s32.totalorder %s33, 1
      %p239 = por %p237, %p238
      %p240 = scmp.ne.s32.totalorder %s229, %s230
      %p241 = scmp.eq.s32.totalorder %s33, 0
      %p242 = por %p240, %p241
      %p243 = scmp.ne.s32.totalorder %s229, %s230
      %p244 = scmp.eq.s32.totalorder %s34, 1
      %p245 = por %p243, %p244
      %p247 = scmp.ne.s32.totalorder %s230, %s246
      %p248 = scmp.eq.s32.totalorder %s34, 0
      %p249 = por %p247, %p248
      %s250 = ssub.s32 %s28, %s35
      %p251 = scmp.eq.s32.totalorder %s250, 0
      %s253 = sadd.s32 %s252, 1
      %s254 = scalar_select %p251, %s252, %s253
      %p257 = pneg %p251
      %p258 = scmp.eq.s32.totalorder %s28, 1
      %p259 = por %p257, %p258
      %p260 = scmp.ne.s32.totalorder %s252, %s255
      %p261 = scmp.eq.s32.totalorder %s28, 0
      %p262 = por %p260, %p261
      %p263 = scmp.ne.s32.totalorder %s252, %s255
      %p264 = scmp.eq.s32.totalorder %s33, 1
      %p265 = por %p263, %p264
      %p266 = scmp.ne.s32.totalorder %s255, %s256
      %p267 = scmp.eq.s32.totalorder %s33, 0
      %p268 = por %p266, %p267
      %p269 = scmp.ne.s32.totalorder %s255, %s256
      %p270 = scmp.eq.s32.totalorder %s34, 1
      %p271 = por %p269, %p270
      %p273 = scmp.ne.s32.totalorder %s256, %s272
      %p274 = scmp.eq.s32.totalorder %s34, 0
      %p275 = por %p273, %p274
      %s276 = ssub.s32 %s28, %s35
      %p277 = scmp.eq.s32.totalorder %s276, 0
      %s279 = sadd.s32 %s278, 1
      %s280 = scalar_select %p277, %s278, %s279
      %p283 = pneg %p277
      %p284 = scmp.eq.s32.totalorder %s28, 1
      %p285 = por %p283, %p284
      %p286 = scmp.ne.s32.totalorder %s278, %s281
      %p287 = scmp.eq.s32.totalorder %s28, 0
      %p288 = por %p286, %p287
      %p289 = scmp.ne.s32.totalorder %s278, %s281
      %p290 = scmp.eq.s32.totalorder %s33, 1
      %p291 = por %p289, %p290
      %p292 = scmp.ne.s32.totalorder %s281, %s282
      %p293 = scmp.eq.s32.totalorder %s33, 0
      %p294 = por %p292, %p293
      %p295 = scmp.ne.s32.totalorder %s281, %s282
      %p296 = scmp.eq.s32.totalorder %s34, 1
      %p297 = por %p295, %p296
      %p299 = scmp.ne.s32.totalorder %s282, %s298
      %p300 = scmp.eq.s32.totalorder %s34, 0
      %p301 = por %p299, %p300
      %s302 = ssub.s32 %s28, %s35
      %p303 = scmp.eq.s32.totalorder %s302, 0
      %s305 = sadd.s32 %s304, 1
      %s306 = scalar_select %p303, %s304, %s305
      %p309 = pneg %p303
      %p310 = scmp.eq.s32.totalorder %s28, 1
      %p311 = por %p309, %p310
      %p312 = scmp.ne.s32.totalorder %s304, %s307
      %p313 = scmp.eq.s32.totalorder %s28, 0
      %p314 = por %p312, %p313
      %p315 = scmp.ne.s32.totalorder %s304, %s307
      %p316 = scmp.eq.s32.totalorder %s33, 1
      %p317 = por %p315, %p316
      %p318 = scmp.ne.s32.totalorder %s307, %s308
      %p319 = scmp.eq.s32.totalorder %s33, 0
      %p320 = por %p318, %p319
      %p321 = scmp.ne.s32.totalorder %s307, %s308
      %p322 = scmp.eq.s32.totalorder %s34, 1
      %p323 = por %p321, %p322
      %p325 = scmp.ne.s32.totalorder %s308, %s324
      %p326 = scmp.eq.s32.totalorder %s34, 0
      %p327 = por %p325, %p326
      %s328 = ssub.s32 %s28, %s35
      %p329 = scmp.eq.s32.totalorder %s328, 0
      %s331 = sadd.s32 %s330, 1
      %s332 = scalar_select %p329, %s330, %s331
      %p335 = pneg %p329
      %p336 = scmp.eq.s32.totalorder %s28, 1
      %p337 = por %p335, %p336
      %p338 = scmp.ne.s32.totalorder %s330, %s333
      %p339 = scmp.eq.s32.totalorder %s28, 0
      %p340 = por %p338, %p339
      %p341 = scmp.ne.s32.totalorder %s330, %s333
      %p342 = scmp.eq.s32.totalorder %s33, 1
      %p343 = por %p341, %p342
      %p344 = scmp.ne.s32.totalorder %s333, %s334
      %p345 = scmp.eq.s32.totalorder %s33, 0
      %p346 = por %p344, %p345
      %p347 = scmp.ne.s32.totalorder %s333, %s334
      %p348 = scmp.eq.s32.totalorder %s34, 1
      %p349 = por %p347, %p348
      %p351 = scmp.ne.s32.totalorder %s334, %s350
      %p352 = scmp.eq.s32.totalorder %s34, 0
      %p353 = por %p351, %p352
      %s354 = ssub.s32 %s28, %s35
      %p355 = scmp.eq.s32.totalorder %s354, 0
      %s357 = sadd.s32 %s356, 1
      %s358 = scalar_select %p355, %s356, %s357
      %p361 = pneg %p355
      %p362 = scmp.eq.s32.totalorder %s28, 1
      %p363 = por %p361, %p362
      %p364 = scmp.ne.s32.totalorder %s356, %s359
      %p365 = scmp.eq.s32.totalorder %s28, 0
      %p366 = por %p364, %p365
      %p367 = scmp.ne.s32.totalorder %s356, %s359
      %p368 = scmp.eq.s32.totalorder %s33, 1
      %p369 = por %p367, %p368
      %p370 = scmp.ne.s32.totalorder %s359, %s360
      %p371 = scmp.eq.s32.totalorder %s33, 0
      %p372 = por %p370, %p371
      %p373 = scmp.ne.s32.totalorder %s359, %s360
      %p374 = scmp.eq.s32.totalorder %s34, 1
      %p375 = por %p373, %p374
      %p377 = scmp.ne.s32.totalorder %s360, %s376
      %p378 = scmp.eq.s32.totalorder %s34, 0
      %p379 = por %p377, %p378
      %s380 = ssub.s32 %s28, %s35
      %p381 = scmp.eq.s32.totalorder %s380, 0
      %s383 = sadd.s32 %s382, 1
      %s384 = scalar_select %p381, %s382, %s383
      %p387 = pneg %p381
      %p388 = scmp.eq.s32.totalorder %s28, 1
      %p389 = por %p387, %p388
      %p390 = scmp.ne.s32.totalorder %s382, %s385
      %p391 = scmp.eq.s32.totalorder %s28, 0
      %p392 = por %p390, %p391
      %p393 = scmp.ne.s32.totalorder %s382, %s385
      %p394 = scmp.eq.s32.totalorder %s33, 1
      %p395 = por %p393, %p394
      %p396 = scmp.ne.s32.totalorder %s385, %s386
      %p397 = scmp.eq.s32.totalorder %s33, 0
      %p398 = por %p396, %p397
      %p399 = scmp.ne.s32.totalorder %s385, %s386
      %p400 = scmp.eq.s32.totalorder %s34, 1
      %p401 = por %p399, %p400
      %p403 = scmp.ne.s32.totalorder %s386, %s402
      %p404 = scmp.eq.s32.totalorder %s34, 0
      %p405 = por %p403, %p404
      %s406 = ssub.s32 %s28, %s35
      %p407 = scmp.eq.s32.totalorder %s406, 0
      %s409 = sadd.s32 %s408, 1
      %s410 = scalar_select %p407, %s408, %s409
      %p413 = pneg %p407
      %p414 = scmp.eq.s32.totalorder %s28, 1
      %p415 = por %p413, %p414
      %p416 = scmp.ne.s32.totalorder %s408, %s411
      %p417 = scmp.eq.s32.totalorder %s28, 0
      %p418 = por %p416, %p417
      %p419 = scmp.ne.s32.totalorder %s408, %s411
      %p420 = scmp.eq.s32.totalorder %s33, 1
      %p421 = por %p419, %p420
      %p422 = scmp.ne.s32.totalorder %s411, %s412
      %p423 = scmp.eq.s32.totalorder %s33, 0
      %p424 = por %p422, %p423
      %p425 = scmp.ne.s32.totalorder %s411, %s412
      %p426 = scmp.eq.s32.totalorder %s34, 1
      %p427 = por %p425, %p426
      %p429 = scmp.ne.s32.totalorder %s412, %s428
      %p430 = scmp.eq.s32.totalorder %s34, 0
      %p431 = por %p429, %p430
      %s433 = sadd.s32 %s432, 1
      %p436 = scmp.eq.s32.totalorder %s28, 1
      %p437 = scmp.ne.s32.totalorder %s432, %s434
      %p438 = scmp.eq.s32.totalorder %s28, 0
      %p439 = por %p437, %p438
      %p440 = scmp.ne.s32.totalorder %s432, %s434
      %p441 = scmp.eq.s32.totalorder %s33, 1
      %p442 = por %p440, %p441
      %p443 = scmp.ne.s32.totalorder %s434, %s435
      %p444 = scmp.eq.s32.totalorder %s33, 0
      %p445 = por %p443, %p444
      %p446 = scmp.ne.s32.totalorder %s434, %s435
      %p447 = scmp.eq.s32.totalorder %s34, 1
      %p448 = por %p446, %p447
      %p450 = scmp.ne.s32.totalorder %s435, %s449
      %p451 = scmp.eq.s32.totalorder %s34, 0
      %p452 = por %p450, %p451
      %s454 = sadd.s32 %s453, 1
      %p457 = scmp.eq.s32.totalorder %s28, 1
      %p458 = scmp.ne.s32.totalorder %s453, %s455
      %p459 = scmp.eq.s32.totalorder %s28, 0
      %p460 = por %p458, %p459
      %p461 = scmp.ne.s32.totalorder %s453, %s455
      %p462 = scmp.eq.s32.totalorder %s33, 1
      %p463 = por %p461, %p462
      %p464 = scmp.ne.s32.totalorder %s455, %s456
      %p465 = scmp.eq.s32.totalorder %s33, 0
      %p466 = por %p464, %p465
      %p467 = scmp.ne.s32.totalorder %s455, %s456
      %p468 = scmp.eq.s32.totalorder %s34, 1
      %p469 = por %p467, %p468
      %p471 = scmp.ne.s32.totalorder %s456, %s470
      %p472 = scmp.eq.s32.totalorder %s34, 0
      %p473 = por %p471, %p472
      %s475 = sadd.s32 %s474, 1
      %p478 = scmp.eq.s32.totalorder %s28, 1
      %p479 = scmp.ne.s32.totalorder %s474, %s476
      %p480 = scmp.eq.s32.totalorder %s28, 0
      %p481 = por %p479, %p480
      %p482 = scmp.ne.s32.totalorder %s474, %s476
      %p483 = scmp.eq.s32.totalorder %s33, 1
      %p484 = por %p482, %p483
      %p485 = scmp.ne.s32.totalorder %s476, %s477
      %p486 = scmp.eq.s32.totalorder %s33, 0
      %p487 = por %p485, %p486
      %p488 = scmp.ne.s32.totalorder %s476, %s477
      %p489 = scmp.eq.s32.totalorder %s34, 1
      %p490 = por %p488, %p489
      %p492 = scmp.ne.s32.totalorder %s477, %s491
      %p493 = scmp.eq.s32.totalorder %s34, 0
      %p494 = por %p492, %p493
      %s496 = sadd.s32 %s495, 1
      %p499 = scmp.eq.s32.totalorder %s28, 1
      %p500 = scmp.ne.s32.totalorder %s495, %s497
      %p501 = scmp.eq.s32.totalorder %s28, 0
      %p502 = por %p500, %p501
      %p503 = scmp.ne.s32.totalorder %s495, %s497
      %p504 = scmp.eq.s32.totalorder %s33, 1
      %p505 = por %p503, %p504
      %p506 = scmp.ne.s32.totalorder %s497, %s498
      %p507 = scmp.eq.s32.totalorder %s33, 0
      %p508 = por %p506, %p507
      %p509 = scmp.ne.s32.totalorder %s497, %s498
      %p510 = scmp.eq.s32.totalorder %s34, 1
      %p511 = por %p509, %p510
      %p513 = scmp.ne.s32.totalorder %s498, %s512
      %p514 = scmp.eq.s32.totalorder %s34, 0
      %p515 = por %p513, %p514
      %p516 = scmp.le.s32.totalorder 1, %s28
      %p517 = scmp.lt.s32.totalorder %s28, 3
      %p518 = pnand %p516, %p517
      %p519 = pneg %p518
      // Predicated region
      $region9: #{bert_forward.1} parent=5 // pred_check
        _
      $region10: #{bert_forward.1} parent=5 // pred_check_branch
        %521 = sbr.rel (%p518) target = $region12
      $region11: #{bert_forward.1} parent=5 // pred_region
        %s522 = ssub.s32 %s28, 1
        // Predicated region
        $region13: #{bert_forward.1} parent=11 // pred_check
          %p523 = pneg %p49
        $region14: #{bert_forward.1} parent=11 // pred_check_branch
          %525 = sbr.rel (%p523) target = $region16
        $region15: #{bert_forward.1} parent=11 // pred_region
          _
        $region16: #{bert_forward.1} parent=11 // pred_fallthru
          _
        // Predicated region
        $region17: #{bert_forward.1} parent=11 // pred_check
          %p526 = pneg %p70
        $region18: #{bert_forward.1} parent=11 // pred_check_branch
          %528 = sbr.rel (%p526) target = $region20
        $region19: #{bert_forward.1} parent=11 // pred_region
          _
        $region20: #{bert_forward.1} parent=11 // pred_fallthru
          _
        // Predicated region
        $region21: #{bert_forward.1} parent=11 // pred_check
          %p529 = pneg %p91
        $region22: #{bert_forward.1} parent=11 // pred_check_branch
          %531 = sbr.rel (%p529) target = $region24
        $region23: #{bert_forward.1} parent=11 // pred_region
          _
        $region24: #{bert_forward.1} parent=11 // pred_fallthru
          _
        // Predicated region
        $region25: #{bert_forward.1} parent=11 // pred_check
          %p532 = pneg %p112
        $region26: #{bert_forward.1} parent=11 // pred_check_branch
          %534 = sbr.rel (%p532) target = $region28
        $region27: #{bert_forward.1} parent=11 // pred_region
          _
        $region28: #{bert_forward.1} parent=11 // pred_fallthru
          _
        // Predicated region
        $region29: #{bert_forward.1} parent=11 // pred_check
          %p535 = pneg %p445
        $region30: #{bert_forward.1} parent=11 // pred_check_branch
          %537 = sbr.rel (%p535) target = $region32
        $region31: #{bert_forward.1} parent=11 // pred_region
          _
        $region32: #{bert_forward.1} parent=11 // pred_fallthru
          _
        // Predicated region
        $region33: #{bert_forward.1} parent=11 // pred_check
          %p538 = pneg %p466
        $region34: #{bert_forward.1} parent=11 // pred_check_branch
          %540 = sbr.rel (%p538) target = $region36
        $region35: #{bert_forward.1} parent=11 // pred_region
          _
        $region36: #{bert_forward.1} parent=11 // pred_fallthru
          _
      $region12: #{bert_forward.1} parent=5 // pred_fallthru
        _
      %p541 = scmp.lt.s32.totalorder %s28, 2
      // Predicated region
      $region37: #{bert_forward.1} parent=5 // pred_check
        %p542 = pneg %p541
      $region38: #{bert_forward.1} parent=5 // pred_check_branch
        %544 = sbr.rel (%p542) target = $region40
      $region39: #{bert_forward.1} parent=5 // pred_region
        // Predicated region
        $region41: #{bert_forward.1} parent=39 // pred_check
          %p545 = pneg %p132
        $region42: #{bert_forward.1} parent=39 // pred_check_branch
          %547 = sbr.rel (%p545) target = $region44
        $region43: #{bert_forward.1} parent=39 // pred_region
          %p548 = scmp.lt.s32.totalorder %s28, 1
          %s549 = scalar_select %p548, %s28, 1
          %s550 = smul.addr %s549, 4
          %s551 = smul.addr %s550, 4
          %s552 = scalar_lea.vmem %s4, %s551
        $region44: #{bert_forward.1} parent=39 // pred_fallthru
          _
        // Predicated region
        $region45: #{bert_forward.1} parent=39 // pred_check
          %p553 = pneg %p158
        $region46: #{bert_forward.1} parent=39 // pred_check_branch
          %555 = sbr.rel (%p553) target = $region48
        $region47: #{bert_forward.1} parent=39 // pred_region
          %p556 = scmp.lt.s32.totalorder %s28, 1
          %s557 = scalar_select %p556, %s28, 1
          %s558 = scalar_lea.vmem %s5, %s557
        $region48: #{bert_forward.1} parent=39 // pred_fallthru
          _
        // Predicated region
        $region49: #{bert_forward.1} parent=39 // pred_check
          %p559 = pneg %p184
        $region50: #{bert_forward.1} parent=39 // pred_check_branch
          %561 = sbr.rel (%p559) target = $region52
        $region51: #{bert_forward.1} parent=39 // pred_region
          %p562 = scmp.lt.s32.totalorder %s28, 1
          %s563 = scalar_select %p562, %s28, 1
          %s564 = smul.addr %s563, 4
          %s565 = smul.addr %s564, 4
          %s566 = scalar_lea.vmem %s6, %s565
        $region52: #{bert_forward.1} parent=39 // pred_fallthru
          _
        // Predicated region
        $region53: #{bert_forward.1} parent=39 // pred_check
          %p567 = pneg %p210
        $region54: #{bert_forward.1} parent=39 // pred_check_branch
          %569 = sbr.rel (%p567) target = $region56
        $region55: #{bert_forward.1} parent=39 // pred_region
          %p570 = scmp.lt.s32.totalorder %s28, 1
          %s571 = scalar_select %p570, %s28, 1
          %s572 = scalar_lea.vmem %s7, %s571
        $region56: #{bert_forward.1} parent=39 // pred_fallthru
          _
        // Predicated region
        $region57: #{bert_forward.1} parent=39 // pred_check
          %p573 = pneg %p236
        $region58: #{bert_forward.1} parent=39 // pred_check_branch
          %575 = sbr.rel (%p573) target = $region60
        $region59: #{bert_forward.1} parent=39 // pred_region
          %p576 = scmp.lt.s32.totalorder %s28, 1
          %s577 = scalar_select %p576, %s28, 1
          %s578 = scalar_lea.vmem %s8, %s577
        $region60: #{bert_forward.1} parent=39 // pred_fallthru
          _
        // Predicated region
        $region61: #{bert_forward.1} parent=39 // pred_check
          %p579 = pneg %p262
        $region62: #{bert_forward.1} parent=39 // pred_check_branch
          %581 = sbr.rel (%p579) target = $region64
        $region63: #{bert_forward.1} parent=39 // pred_region
          %p582 = scmp.lt.s32.totalorder %s28, 1
          %s583 = scalar_select %p582, %s28, 1
          %s584 = scalar_lea.vmem %s9, %s583
        $region64: #{bert_forward.1} parent=39 // pred_fallthru
          _
        // Predicated region
        $region65: #{bert_forward.1} parent=39 // pred_check
          %p585 = pneg %p288
        $region66: #{bert_forward.1} parent=39 // pred_check_branch
          %587 = sbr.rel (%p585) target = $region68
        $region67: #{bert_forward.1} parent=39 // pred_region
          %p588 = scmp.lt.s32.totalorder %s28, 1
          %s589 = scalar_select %p588, %s28, 1
          %s590 = smul.addr %s589, 4
          %s591 = smul.addr %s590, 4
          %s592 = scalar_lea.vmem %s10, %s591
        $region68: #{bert_forward.1} parent=39 // pred_fallthru
          _
        // Predicated region
        $region69: #{bert_forward.1} parent=39 // pred_check
          %p593 = pneg %p314
        $region70: #{bert_forward.1} parent=39 // pred_check_branch
          %595 = sbr.rel (%p593) target = $region72
        $region71: #{bert_forward.1} parent=39 // pred_region
          %p596 = scmp.lt.s32.totalorder %s28, 1
          %s597 = scalar_select %p596, %s28, 1
          %s598 = scalar_lea.vmem %s11, %s597
        $region72: #{bert_forward.1} parent=39 // pred_fallthru
          _
        // Predicated region
        $region73: #{bert_forward.1} parent=39 // pred_check
          %p599 = pneg %p340
        $region74: #{bert_forward.1} parent=39 // pred_check_branch
          %601 = sbr.rel (%p599) target = $region76
        $region75: #{bert_forward.1} parent=39 // pred_region
          %p602 = scmp.lt.s32.totalorder %s28, 1
          %s603 = scalar_select %p602, %s28, 1
          %s604 = smul.addr %s603, 8
          %s605 = smul.addr %s604, 4
          %s606 = scalar_lea.vmem %s12, %s605
        $region76: #{bert_forward.1} parent=39 // pred_fallthru
          _
        // Predicated region
        $region77: #{bert_forward.1} parent=39 // pred_check
          %p607 = pneg %p366
        $region78: #{bert_forward.1} parent=39 // pred_check_branch
          %609 = sbr.rel (%p607) target = $region80
        $region79: #{bert_forward.1} parent=39 // pred_region
          %p610 = scmp.lt.s32.totalorder %s28, 1
          %s611 = scalar_select %p610, %s28, 1
          %s612 = scalar_lea.vmem %s13, %s611
        $region80: #{bert_forward.1} parent=39 // pred_fallthru
          _
        // Predicated region
        $region81: #{bert_forward.1} parent=39 // pred_check
          %p613 = pneg %p392
        $region82: #{bert_forward.1} parent=39 // pred_check_branch
          %615 = sbr.rel (%p613) target = $region84
        $region83: #{bert_forward.1} parent=39 // pred_region
          %p616 = scmp.lt.s32.totalorder %s28, 1
          %s617 = scalar_select %p616, %s28, 1
          %s618 = scalar_lea.vmem %s14, %s617
        $region84: #{bert_forward.1} parent=39 // pred_fallthru
          _
        // Predicated region
        $region85: #{bert_forward.1} parent=39 // pred_check
          %p619 = pneg %p418
        $region86: #{bert_forward.1} parent=39 // pred_check_branch
          %621 = sbr.rel (%p619) target = $region88
        $region87: #{bert_forward.1} parent=39 // pred_region
          %p622 = scmp.lt.s32.totalorder %s28, 1
          %s623 = scalar_select %p622, %s28, 1
          %s624 = scalar_lea.vmem %s15, %s623
        $region88: #{bert_forward.1} parent=39 // pred_fallthru
          _
      $region40: #{bert_forward.1} parent=5 // pred_fallthru
        _
      %p625 = scmp.le.s32.totalorder 1, %s28
      %p626 = scmp.lt.s32.totalorder %s28, 3
      %p627 = pnand %p625, %p626
      %p628 = pneg %p627
      // Predicated region
      $region89: #{bert_forward.1} parent=5 // pred_check
        _
      $region90: #{bert_forward.1} parent=5 // pred_check_branch
        %630 = sbr.rel (%p627) target = $region92
      $region91: #{bert_forward.1} parent=5 // pred_region
        %s631 = ssub.s32 %s28, 1
        %p632 = pneg %p49
        %p633 = pneg %p46
        %p634 = pneg %p70
        %p635 = pneg %p67
        %p636 = pneg %p91
        %p637 = pneg %p88
        %p638 = pneg %p112
        %p639 = pneg %p109
        %p640 = scmp.lt.s32.totalorder %s33, 1
        %s641 = scalar_select %p640, %s33, 1
        %s642 = smul.addr %s641, 4
        %s643 = smul.addr %s642, 4
        %s644 = scalar_lea.vmem %s4, %s643
        %p645 = pneg %p138
        %p646 = pneg %p135
        %p647 = scmp.lt.s32.totalorder %s33, 1
        %s648 = scalar_select %p647, %s33, 1
        %s649 = scalar_lea.vmem %s5, %s648
        %p650 = pneg %p164
        %p651 = pneg %p161
        %p652 = scmp.lt.s32.totalorder %s33, 1
        %s653 = scalar_select %p652, %s33, 1
        %s654 = smul.addr %s653, 4
        %s655 = smul.addr %s654, 4
        %s656 = scalar_lea.vmem %s6, %s655
        %p657 = pneg %p190
        %p658 = pneg %p187
        %p659 = scmp.lt.s32.totalorder %s33, 1
        %s660 = scalar_select %p659, %s33, 1
        %s661 = scalar_lea.vmem %s7, %s660
        %p662 = pneg %p216
        %p663 = pneg %p213
        %p664 = scmp.lt.s32.totalorder %s33, 1
        %s665 = scalar_select %p664, %s33, 1
        %s666 = scalar_lea.vmem %s8, %s665
        %p667 = pneg %p242
        %p668 = pneg %p239
        %p669 = scmp.lt.s32.totalorder %s33, 1
        %s670 = scalar_select %p669, %s33, 1
        %s671 = scalar_lea.vmem %s9, %s670
        %p672 = pneg %p268
        %p673 = pneg %p265
        %p674 = scmp.lt.s32.totalorder %s33, 1
        %s675 = scalar_select %p674, %s33, 1
        %s676 = smul.addr %s675, 4
        %s677 = smul.addr %s676, 4
        %s678 = scalar_lea.vmem %s10, %s677
        %p679 = pneg %p294
        %p680 = pneg %p291
        %p681 = scmp.lt.s32.totalorder %s33, 1
        %s682 = scalar_select %p681, %s33, 1
        %s683 = scalar_lea.vmem %s11, %s682
        %p684 = pneg %p320
        %p685 = pneg %p317
        %p686 = scmp.lt.s32.totalorder %s33, 1
        %s687 = scalar_select %p686, %s33, 1
        %s688 = smul.addr %s687, 8
        %s689 = smul.addr %s688, 4
        %s690 = scalar_lea.vmem %s12, %s689
        %p691 = pneg %p346
        %p692 = pneg %p343
        %p693 = scmp.lt.s32.totalorder %s33, 1
        %s694 = scalar_select %p693, %s33, 1
        %s695 = scalar_lea.vmem %s13, %s694
        %p696 = pneg %p372
        %p697 = pneg %p369
        %p698 = scmp.lt.s32.totalorder %s33, 1
        %s699 = scalar_select %p698, %s33, 1
        %s700 = scalar_lea.vmem %s14, %s699
        %p701 = pneg %p398
        %p702 = pneg %p395
        %p703 = scmp.lt.s32.totalorder %s33, 1
        %s704 = scalar_select %p703, %s33, 1
        %s705 = scalar_lea.vmem %s15, %s704
        %p706 = pneg %p424
        %p707 = pneg %p421
        %p708 = pneg %p445
        %p709 = pneg %p442
        %p710 = pneg %p466
        %p711 = pneg %p463
        %p712 = pneg %p487
        %p713 = pneg %p484
        %p714 = pneg %p508
        %p715 = pneg %p505
        %p716 = scmp.lt.s32.totalorder %s33, 1
        %s717 = scalar_select %p716, %s33, 1
        %s718 = smul.addr %s717, 4
        %s719 = smul.addr %s718, 4
        %s720 = scalar_lea.vmem %s4, %s719
        %p721 = scmp.lt.s32.totalorder %s33, 1
        %s722 = scalar_select %p721, %s33, 1
        %s723 = scalar_lea.vmem %s5, %s722
        %p724 = scmp.lt.s32.totalorder %s33, 1
        %s725 = scalar_select %p724, %s33, 1
        %s726 = smul.addr %s725, 4
        %s727 = smul.addr %s726, 4
        %s728 = scalar_lea.vmem %s6, %s727
        %p729 = scmp.lt.s32.totalorder %s33, 1
        %s730 = scalar_select %p729, %s33, 1
        %s731 = scalar_lea.vmem %s7, %s730
        %p732 = scmp.lt.s32.totalorder %s33, 1
        %s733 = scalar_select %p732, %s33, 1
        %s734 = scalar_lea.vmem %s8, %s733
        %p735 = scmp.lt.s32.totalorder %s33, 1
        %s736 = scalar_select %p735, %s33, 1
        %s737 = scalar_lea.vmem %s9, %s736
        %p738 = scmp.lt.s32.totalorder %s33, 1
        %s739 = scalar_select %p738, %s33, 1
        %s740 = smul.addr %s739, 4
        %s741 = smul.addr %s740, 4
        %s742 = scalar_lea.vmem %s10, %s741
        %p743 = scmp.lt.s32.totalorder %s33, 1
        %s744 = scalar_select %p743, %s33, 1
        %s745 = scalar_lea.vmem %s11, %s744
        %p746 = scmp.lt.s32.totalorder %s33, 1
        %s747 = scalar_select %p746, %s33, 1
        %s748 = smul.addr %s747, 8
        %s749 = smul.addr %s748, 4
        %s750 = scalar_lea.vmem %s12, %s749
        %p751 = scmp.lt.s32.totalorder %s33, 1
        %s752 = scalar_select %p751, %s33, 1
        %s753 = scalar_lea.vmem %s13, %s752
        %p754 = scmp.lt.s32.totalorder %s33, 1
        %s755 = scalar_select %p754, %s33, 1
        %s756 = scalar_lea.vmem %s14, %s755
        %p757 = scmp.lt.s32.totalorder %s33, 1
        %s758 = scalar_select %p757, %s33, 1
        %s759 = scalar_lea.vmem %s15, %s758
        %p761 = scmp.eq.s32.totalorder %s33, 0
        // Predicated region
        $region93: #{bert_forward.1} parent=91 // pred_check
          %p762 = pneg %p761
        $region94: #{bert_forward.1} parent=91 // pred_check_branch
          %764 = sbr.rel (%p762) target = $region96
        $region95: #{bert_forward.1} parent=91 // pred_region
          %v765 = vld [vmem:[%s0] sm:$0xff]
          %v766 = vld [vmem:[%s0 + $0x8] sm:$0xff]
          %v767 = vld [vmem:[%s2] sm:$0x1]
          %v768 = vld [vmem:[%s3] sm:$0x1]
          %vm769 = vcmask 261120
          %v770 = vsel %vm769, %v765, 0.0
          %771 = vadd.xlane.f32.xlu0 %v770
          %v772 = vpop.xlane.xlu0 %771
          %v773 = vsel %vm769, %v766, 0.0
          %774 = vadd.xlane.f32.xlu0 %v773
          %v775 = vpop.xlane.xlu0 %774
          %v776 = vrcp.pop 32.0
          %v777 = vmul.f32 %v772, %v776
          %v778 = vmul.f32 %v775, %v776
          %v779 = vmul.f32 %v765, %v765
          %v780 = vmul.f32 %v766, %v766
          %v781 = vsel %vm769, %v779, 0.0
          %782 = vadd.xlane.f32.xlu0 %v781
          %v783 = vpop.xlane.xlu0 %782
          %v784 = vsel %vm769, %v780, 0.0
          %785 = vadd.xlane.f32.xlu0 %v784
          %v786 = vpop.xlane.xlu0 %785
          %v787 = vmul.f32 %v783, %v776
          %v788 = vmul.f32 %v786, %v776
          %v789 = vmul.f32 %v777, %v777
          %v790 = vmul.f32 %v778, %v778
          %v791 = vsub.f32 %v787, %v789
          %v792 = vsub.f32 %v788, %v790
          %v793 = vmax.f32 %v791, 0.0
          %v794 = vmax.f32 %v792, 0.0
          %v795 = vsub.f32 %v765, %v777
          %v796 = vsub.f32 %v766, %v778
          %v797 = vadd.f32 %v793, 1e-12
          %v798 = vadd.f32 %v794, 1e-12
          %v799 = vrsqrt.pop %v797
          %v800 = vrsqrt.pop %v798
          %v801 = vmul.f32 %v795, %v799
          %v802 = vmul.f32 %v796, %v800
          %v804 = vlaneseq
          %v805 = vshrl.u32 %v804, 7
          %v806 = vsub.s32 0, %v805
          %v807 = vrot.slane %v767, %v806
          %v809 = vmul.f32 %v801, %v807
          %v810 = vmul.f32 %v802, %v807
          %v812 = vlaneseq
          %v813 = vshrl.u32 %v812, 7
          %v814 = vsub.s32 0, %v813
          %v815 = vrot.slane %v768, %v814
          %v817 = vadd.f32 %v809, %v815
          %v818 = vadd.f32 %v810, %v815
          %819 = vst.msk [vmem:[#allocation2] sm:$0xff] %vm769, %v817
          %820 = vst.msk [vmem:[#allocation2 + $0x8] sm:$0xff] %vm769, %v818
        $region96: #{bert_forward.1} parent=91 // pred_fallthru
          _
        %v821 = vld [vmem:[#allocation2] sm:$0xff]
        %v822 = vld [vmem:[#allocation2 + $0x8] sm:$0xff]
        %v823 = vpack.c.bf16 %v822, %v821
        %v824 = vld [vmem:[%s720] sm:$0xf]
        %v825 = vld [vmem:[%s720 + $0x4] sm:$0xf]
        %v826 = vld [vmem:[%s720 + $0x8] sm:$0xf]
        %v827 = vld [vmem:[%s720 + $0xc] sm:$0xf]
        %v828 = vld [vmem:[%s723] sm:$0x1]
        %v830 = vlaneseq
        %v831 = vshrl.u32 %v830, 7
        %v832 = vsub.s32 0, %v831
        %v833 = vrot.slane %v828, %v832
        %v839 = vunpack.c.l.b16 %v824
        %v840 = vunpack.c.l.b16 %v825
        %v841 = vunpack.c.l.b16 %v826
        %v842 = vunpack.c.l.b16 %v827
        %v843 = vpack.c.b16 %v840, %v839
        %v844 = vpack.c.b16 %v842, %v841
        %vm847 = vcmask 261120
        %v849 = vsel %vm847, %v823, 0
        %851 = vmatprep.subr.bf16.mxu0 0
        %852 = vmatpush1.bf16.msra.mxu0 0
        %853 = vmatprep.subr.bf16.mxu0 0
        %854 = vmatpush1.bf16.msra.mxu0 0
        %855 = vmatprep.subr.bf16.mxu0 0
        %856 = vmatpush1.bf16.msra.mxu0 0
        %857 = vmatprep.subr.bf16.mxu0 0
        %858 = vmatpush1.bf16.msra.mxu0 0
        %859 = vmatprep.subr.bf16.mxu0 0
        %860 = vmatpush1.bf16.msra.mxu0 0
        %861 = vmatprep.subr.bf16.mxu0 0
        %862 = vmatpush1.bf16.msra.mxu0 0
        %863 = vmatprep.subr.bf16.mxu0 0
        %864 = vmatpush1.bf16.msra.mxu0 %v844
        %865 = vmatprep.subr.bf16.mxu0 0
        %866 = vmatpush1.bf16.msra.mxu0 %v843
        %867 = vmatprep.subr.bf16.mxu0 0
        %868 = vmatpush2.bf16.msra.mxu0 0
        %869 = vmatprep.subr.bf16.mxu0 0
        %870 = vmatpush2.bf16.msra.mxu0 0
        %871 = vmatprep.subr.bf16.mxu0 0
        %872 = vmatpush2.bf16.msra.mxu0 0
        %873 = vmatprep.subr.bf16.mxu0 0
        %874 = vmatpush2.bf16.msra.mxu0 0
        %875 = vmatprep.subr.bf16.mxu0 0
        %876 = vmatpush2.bf16.msra.mxu0 0
        %877 = vmatprep.subr.bf16.mxu0 0
        %878 = vmatpush2.bf16.msra.mxu0 0
        %879 = vmatprep.subr.bf16.mxu0 0
        %880 = vmatpush2.bf16.msra.mxu0 0
        %881 = vmatprep.subr.bf16.mxu0 0
        %882 = vmatpush2.bf16.msra.mxu0 0
        %883 = vmatprep.mubr.bf16.mxu0 0
        %884 = vmatmul.mubr.bf16.gmra.mxu0 %v849
        %v885 = vpop.f32.mrf.mxu0
        %v886 = vadd.f32 %v833, %v885
        %v887 = vpop.f32.mrf.mxu0
        %v888 = vpop.f32.mrf.mxu0
        %v889 = vadd.f32 %v833, %v888
        %v890 = vpop.f32.mrf.mxu0
        %891 = vdwg.mxu0
        %v892 = vmul.f32 %v886, 0.35355338
        %v893 = vmul.f32 %v889, 0.35355338
        %895 = vrot.lane.b32.xlu0 %v892, 120
        %v896 = vpop.permute.xlu0 %895
        %897 = vrot.lane.b32.xlu0 %v892, 112
        %v898 = vpop.permute.xlu0 %897
        %899 = vrot.lane.b32.xlu0 %v892, 104
        %v900 = vpop.permute.xlu0 %899
        %902 = vrot.lane.b32.xlu0 %v893, 120
        %v903 = vpop.permute.xlu0 %902
        %904 = vrot.lane.b32.xlu0 %v893, 112
        %v905 = vpop.permute.xlu0 %904
        %906 = vrot.lane.b32.xlu0 %v893, 104
        %v907 = vpop.permute.xlu0 %906
        %909 = vrot.lane.b32.xlu0 %v886, 120
        %v910 = vpop.permute.xlu0 %909
        %911 = vrot.lane.b32.xlu0 %v886, 112
        %v912 = vpop.permute.xlu0 %911
        %913 = vrot.lane.b32.xlu0 %v886, 104
        %v914 = vpop.permute.xlu0 %913
        %916 = vrot.lane.b32.xlu0 %v889, 120
        %v917 = vpop.permute.xlu0 %916
        %918 = vrot.lane.b32.xlu0 %v889, 112
        %v919 = vpop.permute.xlu0 %918
        %920 = vrot.lane.b32.xlu0 %v889, 104
        %v921 = vpop.permute.xlu0 %920
        %v922 = vld [vmem:[%s1] sm:$0x1]
        %v923 = vld [vmem:[%s1 + $0x1] sm:$0x1]
        %v924 = vld [vmem:[%s1 + $0x2] sm:$0x1]
        %v925 = vld [vmem:[%s1 + $0x3] sm:$0x1]
        %v926 = vld [vmem:[%s1 + $0x4] sm:$0x1]
        %v927 = vld [vmem:[%s1 + $0x5] sm:$0x1]
        %v928 = vld [vmem:[%s1 + $0x6] sm:$0x1]
        %v929 = vld [vmem:[%s1 + $0x7] sm:$0x1]
        %v938 = vlaneseq
        %v939 = vshrl.u32 %v938, 7
        %v940 = vsub.s32 0, %v939
        %v941 = vrot.slane %v922, %v940
        %v942 = vlaneseq
        %v943 = vshrl.u32 %v942, 7
        %v944 = vsub.s32 0, %v943
        %v945 = vrot.slane %v923, %v944
        %v946 = vlaneseq
        %v947 = vshrl.u32 %v946, 7
        %v948 = vsub.s32 0, %v947
        %v949 = vrot.slane %v924, %v948
        %v950 = vlaneseq
        %v951 = vshrl.u32 %v950, 7
        %v952 = vsub.s32 0, %v951
        %v953 = vrot.slane %v925, %v952
        %v954 = vlaneseq
        %v955 = vshrl.u32 %v954, 7
        %v956 = vsub.s32 0, %v955
        %v957 = vrot.slane %v926, %v956
        %v958 = vlaneseq
        %v959 = vshrl.u32 %v958, 7
        %v960 = vsub.s32 0, %v959
        %v961 = vrot.slane %v927, %v960
        %v962 = vlaneseq
        %v963 = vshrl.u32 %v962, 7
        %v964 = vsub.s32 0, %v963
        %v965 = vrot.slane %v928, %v964
        %v966 = vlaneseq
        %v967 = vshrl.u32 %v966, 7
        %v968 = vsub.s32 0, %v967
        %v969 = vrot.slane %v929, %v968
        %978 = vrot.lane.b32.xlu0 %v886, 96
        %v979 = vpop.permute.xlu0 %978
        %vm980 = vcmask 64512
        %v981 = vsel %vm980, %v892, 0
        %v983 = vsel %vm980, %v979, 0
        %985 = vmatprep.subr.mxu0 0.0
        %986 = vmatpush1.xpose.msra.mxu0 0.0
        %987 = vmatprep.subr.mxu0 0.0
        %988 = vmatpush1.xpose.msra.mxu0 0.0
        %989 = vmatprep.subr.mxu0 0.0
        %990 = vmatpush1.xpose.msra.mxu0 0.0
        %991 = vmatprep.subr.mxu0 0.0
        %992 = vmatpush1.xpose.msra.mxu0 0.0
        %993 = vmatprep.subr.mxu0 0.0
        %994 = vmatpush1.xpose.msra.mxu0 0.0
        %995 = vmatprep.subr.mxu0 0.0
        %996 = vmatpush1.xpose.msra.mxu0 0.0
        %997 = vmatprep.subr.mxu0 0.0
        %998 = vmatpush1.xpose.msra.mxu0 0.0
        %999 = vmatprep.subr.mxu0 0.0
        %1000 = vmatpush1.xpose.msra.mxu0 0.0
        %1001 = vmatprep.subr.mxu0 0.0
        %1002 = vmatpush1.xpose.msra.mxu0 0.0
        %1003 = vmatprep.subr.mxu0 0.0
        %1004 = vmatpush1.xpose.msra.mxu0 0.0
        %1005 = vmatprep.subr.mxu0 0.0
        %1006 = vmatpush1.xpose.msra.mxu0 0.0
        %1007 = vmatprep.subr.mxu0 0.0
        %1008 = vmatpush1.xpose.msra.mxu0 0.0
        %1009 = vmatprep.subr.mxu0 0.0
        %1010 = vmatpush1.xpose.msra.mxu0 0.0
        %1011 = vmatprep.subr.mxu0 0.0
        %1012 = vmatpush1.xpose.msra.mxu0 0.0
        %1013 = vmatprep.subr.mxu0 0.0
        %1014 = vmatpush1.xpose.msra.mxu0 0.0
        %1015 = vmatprep.subr.mxu0 0.0
        %1016 = vmatpush1.xpose.msra.mxu0 %v983
        %1017 = vmatprep.subr.mxu0 0.0
        %1018 = vmatpush2.xpose.msra.mxu0 0.0
        %1019 = vmatprep.subr.mxu0 0.0
        %1020 = vmatpush2.xpose.msra.mxu0 0.0
        %1021 = vmatprep.subr.mxu0 0.0
        %1022 = vmatpush2.xpose.msra.mxu0 0.0
        %1023 = vmatprep.subr.mxu0 0.0
        %1024 = vmatpush2.xpose.msra.mxu0 0.0
        %1025 = vmatprep.subr.mxu0 0.0
        %1026 = vmatpush2.xpose.msra.mxu0 0.0
        %1027 = vmatprep.subr.mxu0 0.0
        %1028 = vmatpush2.xpose.msra.mxu0 0.0
        %1029 = vmatprep.subr.mxu0 0.0
        %1030 = vmatpush2.xpose.msra.mxu0 0.0
        %1031 = vmatprep.subr.mxu0 0.0
        %1032 = vmatpush2.xpose.msra.mxu0 0.0
        %1033 = vmatprep.subr.mxu0 0.0
        %1034 = vmatpush2.xpose.msra.mxu0 0.0
        %1035 = vmatprep.subr.mxu0 0.0
        %1036 = vmatpush2.xpose.msra.mxu0 0.0
        %1037 = vmatprep.subr.mxu0 0.0
        %1038 = vmatpush2.xpose.msra.mxu0 0.0
        %1039 = vmatprep.subr.mxu0 0.0
        %1040 = vmatpush2.xpose.msra.mxu0 0.0
        %1041 = vmatprep.subr.mxu0 0.0
        %1042 = vmatpush2.xpose.msra.mxu0 0.0
        %1043 = vmatprep.subr.mxu0 0.0
        %1044 = vmatpush2.xpose.msra.mxu0 0.0
        %1045 = vmatprep.subr.mxu0 0.0
        %1046 = vmatpush2.xpose.msra.mxu0 0.0
        %1047 = vmatprep.subr.mxu0 0.0
        %1048 = vmatpush2.xpose.msra.mxu0 0.0
        %1049 = vmatprep.mubr.f32.mxu0 0.0
        %1050 = vmatmul.mubr.f32.gmra.mxu0 %v981
        %v1051 = vpop.f32.mrf.mxu0
        %v1052 = vadd.f32 %v941, %v1051
        %v1053 = vpop.f32.mrf.mxu0
        %1054 = vdwg.mxu0
        %1055 = vrot.lane.b32.xlu0 %v910, 96
        %v1056 = vpop.permute.xlu0 %1055
        %v1057 = vsel %vm980, %v896, 0
        %v1059 = vsel %vm980, %v1056, 0
        %1061 = vmatprep.subr.mxu0 0.0
        %1062 = vmatpush1.xpose.msra.mxu0 0.0
        %1063 = vmatprep.subr.mxu0 0.0
        %1064 = vmatpush1.xpose.msra.mxu0 0.0
        %1065 = vmatprep.subr.mxu0 0.0
        %1066 = vmatpush1.xpose.msra.mxu0 0.0
        %1067 = vmatprep.subr.mxu0 0.0
        %1068 = vmatpush1.xpose.msra.mxu0 0.0
        %1069 = vmatprep.subr.mxu0 0.0
        %1070 = vmatpush1.xpose.msra.mxu0 0.0
        %1071 = vmatprep.subr.mxu0 0.0
        %1072 = vmatpush1.xpose.msra.mxu0 0.0
        %1073 = vmatprep.subr.mxu0 0.0
        %1074 = vmatpush1.xpose.msra.mxu0 0.0
        %1075 = vmatprep.subr.mxu0 0.0
        %1076 = vmatpush1.xpose.msra.mxu0 0.0
        %1077 = vmatprep.subr.mxu0 0.0
        %1078 = vmatpush1.xpose.msra.mxu0 0.0
        %1079 = vmatprep.subr.mxu0 0.0
        %1080 = vmatpush1.xpose.msra.mxu0 0.0
        %1081 = vmatprep.subr.mxu0 0.0
        %1082 = vmatpush1.xpose.msra.mxu0 0.0
        %1083 = vmatprep.subr.mxu0 0.0
        %1084 = vmatpush1.xpose.msra.mxu0 0.0
        %1085 = vmatprep.subr.mxu0 0.0
        %1086 = vmatpush1.xpose.msra.mxu0 0.0
        %1087 = vmatprep.subr.mxu0 0.0
        %1088 = vmatpush1.xpose.msra.mxu0 0.0
        %1089 = vmatprep.subr.mxu0 0.0
        %1090 = vmatpush1.xpose.msra.mxu0 0.0
        %1091 = vmatprep.subr.mxu0 0.0
        %1092 = vmatpush1.xpose.msra.mxu0 %v1059
        %1093 = vmatprep.subr.mxu0 0.0
        %1094 = vmatpush2.xpose.msra.mxu0 0.0
        %1095 = vmatprep.subr.mxu0 0.0
        %1096 = vmatpush2.xpose.msra.mxu0 0.0
        %1097 = vmatprep.subr.mxu0 0.0
        %1098 = vmatpush2.xpose.msra.mxu0 0.0
        %1099 = vmatprep.subr.mxu0 0.0
        %1100 = vmatpush2.xpose.msra.mxu0 0.0
        %1101 = vmatprep.subr.mxu0 0.0
        %1102 = vmatpush2.xpose.msra.mxu0 0.0
        %1103 = vmatprep.subr.mxu0 0.0
        %1104 = vmatpush2.xpose.msra.mxu0 0.0
        %1105 = vmatprep.subr.mxu0 0.0
        %1106 = vmatpush2.xpose.msra.mxu0 0.0
        %1107 = vmatprep.subr.mxu0 0.0
        %1108 = vmatpush2.xpose.msra.mxu0 0.0
        %1109 = vmatprep.subr.mxu0 0.0
        %1110 = vmatpush2.xpose.msra.mxu0 0.0
        %1111 = vmatprep.subr.mxu0 0.0
        %1112 = vmatpush2.xpose.msra.mxu0 0.0
        %1113 = vmatprep.subr.mxu0 0.0
        %1114 = vmatpush2.xpose.msra.mxu0 0.0
        %1115 = vmatprep.subr.mxu0 0.0
        %1116 = vmatpush2.xpose.msra.mxu0 0.0
        %1117 = vmatprep.subr.mxu0 0.0
        %1118 = vmatpush2.xpose.msra.mxu0 0.0
        %1119 = vmatprep.subr.mxu0 0.0
        %1120 = vmatpush2.xpose.msra.mxu0 0.0
        %1121 = vmatprep.subr.mxu0 0.0
        %1122 = vmatpush2.xpose.msra.mxu0 0.0
        %1123 = vmatprep.subr.mxu0 0.0
        %1124 = vmatpush2.xpose.msra.mxu0 0.0
        %1125 = vmatprep.mubr.f32.mxu0 0.0
        %1126 = vmatmul.mubr.f32.gmra.mxu0 %v1057
        %v1127 = vpop.f32.mrf.mxu0
        %v1128 = vadd.f32 %v945, %v1127
        %v1129 = vpop.f32.mrf.mxu0
        %1130 = vdwg.mxu0
        %1131 = vrot.lane.b32.xlu0 %v912, 96
        %v1132 = vpop.permute.xlu0 %1131
        %v1133 = vsel %vm980, %v898, 0
        %v1135 = vsel %vm980, %v1132, 0
        %1137 = vmatprep.subr.mxu0 0.0
        %1138 = vmatpush1.xpose.msra.mxu0 0.0
        %1139 = vmatprep.subr.mxu0 0.0
        %1140 = vmatpush1.xpose.msra.mxu0 0.0
        %1141 = vmatprep.subr.mxu0 0.0
        %1142 = vmatpush1.xpose.msra.mxu0 0.0
        %1143 = vmatprep.subr.mxu0 0.0
        %1144 = vmatpush1.xpose.msra.mxu0 0.0
        %1145 = vmatprep.subr.mxu0 0.0
        %1146 = vmatpush1.xpose.msra.mxu0 0.0
        %1147 = vmatprep.subr.mxu0 0.0
        %1148 = vmatpush1.xpose.msra.mxu0 0.0
        %1149 = vmatprep.subr.mxu0 0.0
        %1150 = vmatpush1.xpose.msra.mxu0 0.0
        %1151 = vmatprep.subr.mxu0 0.0
        %1152 = vmatpush1.xpose.msra.mxu0 0.0
        %1153 = vmatprep.subr.mxu0 0.0
        %1154 = vmatpush1.xpose.msra.mxu0 0.0
        %1155 = vmatprep.subr.mxu0 0.0
        %1156 = vmatpush1.xpose.msra.mxu0 0.0
        %1157 = vmatprep.subr.mxu0 0.0
        %1158 = vmatpush1.xpose.msra.mxu0 0.0
        %1159 = vmatprep.subr.mxu0 0.0
        %1160 = vmatpush1.xpose.msra.mxu0 0.0
        %1161 = vmatprep.subr.mxu0 0.0
        %1162 = vmatpush1.xpose.msra.mxu0 0.0
        %1163 = vmatprep.subr.mxu0 0.0
        %1164 = vmatpush1.xpose.msra.mxu0 0.0
        %1165 = vmatprep.subr.mxu0 0.0
        %1166 = vmatpush1.xpose.msra.mxu0 0.0
        %1167 = vmatprep.subr.mxu0 0.0
        %1168 = vmatpush1.xpose.msra.mxu0 %v1135
        %1169 = vmatprep.subr.mxu0 0.0
        %1170 = vmatpush2.xpose.msra.mxu0 0.0
        %1171 = vmatprep.subr.mxu0 0.0
        %1172 = vmatpush2.xpose.msra.mxu0 0.0
        %1173 = vmatprep.subr.mxu0 0.0
        %1174 = vmatpush2.xpose.msra.mxu0 0.0
        %1175 = vmatprep.subr.mxu0 0.0
        %1176 = vmatpush2.xpose.msra.mxu0 0.0
        %1177 = vmatprep.subr.mxu0 0.0
        %1178 = vmatpush2.xpose.msra.mxu0 0.0
        %1179 = vmatprep.subr.mxu0 0.0
        %1180 = vmatpush2.xpose.msra.mxu0 0.0
        %1181 = vmatprep.subr.mxu0 0.0
        %1182 = vmatpush2.xpose.msra.mxu0 0.0
        %1183 = vmatprep.subr.mxu0 0.0
        %1184 = vmatpush2.xpose.msra.mxu0 0.0
        %1185 = vmatprep.subr.mxu0 0.0
        %1186 = vmatpush2.xpose.msra.mxu0 0.0
        %1187 = vmatprep.subr.mxu0 0.0
        %1188 = vmatpush2.xpose.msra.mxu0 0.0
        %1189 = vmatprep.subr.mxu0 0.0
        %1190 = vmatpush2.xpose.msra.mxu0 0.0
        %1191 = vmatprep.subr.mxu0 0.0
        %1192 = vmatpush2.xpose.msra.mxu0 0.0
        %1193 = vmatprep.subr.mxu0 0.0
        %1194 = vmatpush2.xpose.msra.mxu0 0.0
        %1195 = vmatprep.subr.mxu0 0.0
        %1196 = vmatpush2.xpose.msra.mxu0 0.0
        %1197 = vmatprep.subr.mxu0 0.0
        %1198 = vmatpush2.xpose.msra.mxu0 0.0
        %1199 = vmatprep.subr.mxu0 0.0
        %1200 = vmatpush2.xpose.msra.mxu0 0.0
        %1201 = vmatprep.mubr.f32.mxu0 0.0
        %1202 = vmatmul.mubr.f32.gmra.mxu0 %v1133
        %v1203 = vpop.f32.mrf.mxu0
        %v1204 = vadd.f32 %v949, %v1203
        %v1205 = vpop.f32.mrf.mxu0
        %1206 = vdwg.mxu0
        %1207 = vrot.lane.b32.xlu0 %v914, 96
        %v1208 = vpop.permute.xlu0 %1207
        %v1209 = vsel %vm980, %v900, 0
        %v1211 = vsel %vm980, %v1208, 0
        %1213 = vmatprep.subr.mxu0 0.0
        %1214 = vmatpush1.xpose.msra.mxu0 0.0
        %1215 = vmatprep.subr.mxu0 0.0
        %1216 = vmatpush1.xpose.msra.mxu0 0.0
        %1217 = vmatprep.subr.mxu0 0.0
        %1218 = vmatpush1.xpose.msra.mxu0 0.0
        %1219 = vmatprep.subr.mxu0 0.0
        %1220 = vmatpush1.xpose.msra.mxu0 0.0
        %1221 = vmatprep.subr.mxu0 0.0
        %1222 = vmatpush1.xpose.msra.mxu0 0.0
        %1223 = vmatprep.subr.mxu0 0.0
        %1224 = vmatpush1.xpose.msra.mxu0 0.0
        %1225 = vmatprep.subr.mxu0 0.0
        %1226 = vmatpush1.xpose.msra.mxu0 0.0
        %1227 = vmatprep.subr.mxu0 0.0
        %1228 = vmatpush1.xpose.msra.mxu0 0.0
        %1229 = vmatprep.subr.mxu0 0.0
        %1230 = vmatpush1.xpose.msra.mxu0 0.0
        %1231 = vmatprep.subr.mxu0 0.0
        %1232 = vmatpush1.xpose.msra.mxu0 0.0
        %1233 = vmatprep.subr.mxu0 0.0
        %1234 = vmatpush1.xpose.msra.mxu0 0.0
        %1235 = vmatprep.subr.mxu0 0.0
        %1236 = vmatpush1.xpose.msra.mxu0 0.0
        %1237 = vmatprep.subr.mxu0 0.0
        %1238 = vmatpush1.xpose.msra.mxu0 0.0
        %1239 = vmatprep.subr.mxu0 0.0
        %1240 = vmatpush1.xpose.msra.mxu0 0.0
        %1241 = vmatprep.subr.mxu0 0.0
        %1242 = vmatpush1.xpose.msra.mxu0 0.0
        %1243 = vmatprep.subr.mxu0 0.0
        %1244 = vmatpush1.xpose.msra.mxu0 %v1211
        %1245 = vmatprep.subr.mxu0 0.0
        %1246 = vmatpush2.xpose.msra.mxu0 0.0
        %1247 = vmatprep.subr.mxu0 0.0
        %1248 = vmatpush2.xpose.msra.mxu0 0.0
        %1249 = vmatprep.subr.mxu0 0.0
        %1250 = vmatpush2.xpose.msra.mxu0 0.0
        %1251 = vmatprep.subr.mxu0 0.0
        %1252 = vmatpush2.xpose.msra.mxu0 0.0
        %1253 = vmatprep.subr.mxu0 0.0
        %1254 = vmatpush2.xpose.msra.mxu0 0.0
        %1255 = vmatprep.subr.mxu0 0.0
        %1256 = vmatpush2.xpose.msra.mxu0 0.0
        %1257 = vmatprep.subr.mxu0 0.0
        %1258 = vmatpush2.xpose.msra.mxu0 0.0
        %1259 = vmatprep.subr.mxu0 0.0
        %1260 = vmatpush2.xpose.msra.mxu0 0.0
        %1261 = vmatprep.subr.mxu0 0.0
        %1262 = vmatpush2.xpose.msra.mxu0 0.0
        %1263 = vmatprep.subr.mxu0 0.0
        %1264 = vmatpush2.xpose.msra.mxu0 0.0
        %1265 = vmatprep.subr.mxu0 0.0
        %1266 = vmatpush2.xpose.msra.mxu0 0.0
        %1267 = vmatprep.subr.mxu0 0.0
        %1268 = vmatpush2.xpose.msra.mxu0 0.0
        %1269 = vmatprep.subr.mxu0 0.0
        %1270 = vmatpush2.xpose.msra.mxu0 0.0
        %1271 = vmatprep.subr.mxu0 0.0
        %1272 = vmatpush2.xpose.msra.mxu0 0.0
        %1273 = vmatprep.subr.mxu0 0.0
        %1274 = vmatpush2.xpose.msra.mxu0 0.0
        %1275 = vmatprep.subr.mxu0 0.0
        %1276 = vmatpush2.xpose.msra.mxu0 0.0
        %1277 = vmatprep.mubr.f32.mxu0 0.0
        %1278 = vmatmul.mubr.f32.gmra.mxu0 %v1209
        %v1279 = vpop.f32.mrf.mxu0
        %v1280 = vadd.f32 %v953, %v1279
        %v1281 = vpop.f32.mrf.mxu0
        %1282 = vdwg.mxu0
        %1283 = vrot.lane.b32.xlu0 %v889, 96
        %v1284 = vpop.permute.xlu0 %1283
        %v1285 = vsel %vm980, %v893, 0
        %v1287 = vsel %vm980, %v1284, 0
        %1289 = vmatprep.subr.mxu0 0.0
        %1290 = vmatpush1.xpose.msra.mxu0 0.0
        %1291 = vmatprep.subr.mxu0 0.0
        %1292 = vmatpush1.xpose.msra.mxu0 0.0
        %1293 = vmatprep.subr.mxu0 0.0
        %1294 = vmatpush1.xpose.msra.mxu0 0.0
        %1295 = vmatprep.subr.mxu0 0.0
        %1296 = vmatpush1.xpose.msra.mxu0 0.0
        %1297 = vmatprep.subr.mxu0 0.0
        %1298 = vmatpush1.xpose.msra.mxu0 0.0
        %1299 = vmatprep.subr.mxu0 0.0
        %1300 = vmatpush1.xpose.msra.mxu0 0.0
        %1301 = vmatprep.subr.mxu0 0.0
        %1302 = vmatpush1.xpose.msra.mxu0 0.0
        %1303 = vmatprep.subr.mxu0 0.0
        %1304 = vmatpush1.xpose.msra.mxu0 0.0
        %1305 = vmatprep.subr.mxu0 0.0
        %1306 = vmatpush1.xpose.msra.mxu0 0.0
        %1307 = vmatprep.subr.mxu0 0.0
        %1308 = vmatpush1.xpose.msra.mxu0 0.0
        %1309 = vmatprep.subr.mxu0 0.0
        %1310 = vmatpush1.xpose.msra.mxu0 0.0
        %1311 = vmatprep.subr.mxu0 0.0
        %1312 = vmatpush1.xpose.msra.mxu0 0.0
        %1313 = vmatprep.subr.mxu0 0.0
        %1314 = vmatpush1.xpose.msra.mxu0 0.0
        %1315 = vmatprep.subr.mxu0 0.0
        %1316 = vmatpush1.xpose.msra.mxu0 0.0
        %1317 = vmatprep.subr.mxu0 0.0
        %1318 = vmatpush1.xpose.msra.mxu0 0.0
        %1319 = vmatprep.subr.mxu0 0.0
        %1320 = vmatpush1.xpose.msra.mxu0 %v1287
        %1321 = vmatprep.subr.mxu0 0.0
        %1322 = vmatpush2.xpose.msra.mxu0 0.0
        %1323 = vmatprep.subr.mxu0 0.0
        %1324 = vmatpush2.xpose.msra.mxu0 0.0
        %1325 = vmatprep.subr.mxu0 0.0
        %1326 = vmatpush2.xpose.msra.mxu0 0.0
        %1327 = vmatprep.subr.mxu0 0.0
        %1328 = vmatpush2.xpose.msra.mxu0 0.0
        %1329 = vmatprep.subr.mxu0 0.0
        %1330 = vmatpush2.xpose.msra.mxu0 0.0
        %1331 = vmatprep.subr.mxu0 0.0
        %1332 = vmatpush2.xpose.msra.mxu0 0.0
        %1333 = vmatprep.subr.mxu0 0.0
        %1334 = vmatpush2.xpose.msra.mxu0 0.0
        %1335 = vmatprep.subr.mxu0 0.0
        %1336 = vmatpush2.xpose.msra.mxu0 0.0
        %1337 = vmatprep.subr.mxu0 0.0
        %1338 = vmatpush2.xpose.msra.mxu0 0.0
        %1339 = vmatprep.subr.mxu0 0.0
        %1340 = vmatpush2.xpose.msra.mxu0 0.0
        %1341 = vmatprep.subr.mxu0 0.0
        %1342 = vmatpush2.xpose.msra.mxu0 0.0
        %1343 = vmatprep.subr.mxu0 0.0
        %1344 = vmatpush2.xpose.msra.mxu0 0.0
        %1345 = vmatprep.subr.mxu0 0.0
        %1346 = vmatpush2.xpose.msra.mxu0 0.0
        %1347 = vmatprep.subr.mxu0 0.0
        %1348 = vmatpush2.xpose.msra.mxu0 0.0
        %1349 = vmatprep.subr.mxu0 0.0
        %1350 = vmatpush2.xpose.msra.mxu0 0.0
        %1351 = vmatprep.subr.mxu0 0.0
        %1352 = vmatpush2.xpose.msra.mxu0 0.0
        %1353 = vmatprep.mubr.f32.mxu0 0.0
        %1354 = vmatmul.mubr.f32.gmra.mxu0 %v1285
        %v1355 = vpop.f32.mrf.mxu0
        %v1356 = vadd.f32 %v957, %v1355
        %v1357 = vpop.f32.mrf.mxu0
        %1358 = vdwg.mxu0
        %1359 = vrot.lane.b32.xlu0 %v917, 96
        %v1360 = vpop.permute.xlu0 %1359
        %v1361 = vsel %vm980, %v903, 0
        %v1363 = vsel %vm980, %v1360, 0
        %1365 = vmatprep.subr.mxu0 0.0
        %1366 = vmatpush1.xpose.msra.mxu0 0.0
        %1367 = vmatprep.subr.mxu0 0.0
        %1368 = vmatpush1.xpose.msra.mxu0 0.0
        %1369 = vmatprep.subr.mxu0 0.0
        %1370 = vmatpush1.xpose.msra.mxu0 0.0
        %1371 = vmatprep.subr.mxu0 0.0
        %1372 = vmatpush1.xpose.msra.mxu0 0.0
        %1373 = vmatprep.subr.mxu0 0.0
        %1374 = vmatpush1.xpose.msra.mxu0 0.0
        %1375 = vmatprep.subr.mxu0 0.0
        %1376 = vmatpush1.xpose.msra.mxu0 0.0
        %1377 = vmatprep.subr.mxu0 0.0
        %1378 = vmatpush1.xpose.msra.mxu0 0.0
        %1379 = vmatprep.subr.mxu0 0.0
        %1380 = vmatpush1.xpose.msra.mxu0 0.0
        %1381 = vmatprep.subr.mxu0 0.0
        %1382 = vmatpush1.xpose.msra.mxu0 0.0
        %1383 = vmatprep.subr.mxu0 0.0
        %1384 = vmatpush1.xpose.msra.mxu0 0.0
        %1385 = vmatprep.subr.mxu0 0.0
        %1386 = vmatpush1.xpose.msra.mxu0 0.0
        %1387 = vmatprep.subr.mxu0 0.0
        %1388 = vmatpush1.xpose.msra.mxu0 0.0
        %1389 = vmatprep.subr.mxu0 0.0
        %1390 = vmatpush1.xpose.msra.mxu0 0.0
        %1391 = vmatprep.subr.mxu0 0.0
        %1392 = vmatpush1.xpose.msra.mxu0 0.0
        %1393 = vmatprep.subr.mxu0 0.0
        %1394 = vmatpush1.xpose.msra.mxu0 0.0
        %1395 = vmatprep.subr.mxu0 0.0
        %1396 = vmatpush1.xpose.msra.mxu0 %v1363
        %1397 = vmatprep.subr.mxu0 0.0
        %1398 = vmatpush2.xpose.msra.mxu0 0.0
        %1399 = vmatprep.subr.mxu0 0.0
        %1400 = vmatpush2.xpose.msra.mxu0 0.0
        %1401 = vmatprep.subr.mxu0 0.0
        %1402 = vmatpush2.xpose.msra.mxu0 0.0
        %1403 = vmatprep.subr.mxu0 0.0
        %1404 = vmatpush2.xpose.msra.mxu0 0.0
        %1405 = vmatprep.subr.mxu0 0.0
        %1406 = vmatpush2.xpose.msra.mxu0 0.0
        %1407 = vmatprep.subr.mxu0 0.0
        %1408 = vmatpush2.xpose.msra.mxu0 0.0
        %1409 = vmatprep.subr.mxu0 0.0
        %1410 = vmatpush2.xpose.msra.mxu0 0.0
        %1411 = vmatprep.subr.mxu0 0.0
        %1412 = vmatpush2.xpose.msra.mxu0 0.0
        %1413 = vmatprep.subr.mxu0 0.0
        %1414 = vmatpush2.xpose.msra.mxu0 0.0
        %1415 = vmatprep.subr.mxu0 0.0
        %1416 = vmatpush2.xpose.msra.mxu0 0.0
        %1417 = vmatprep.subr.mxu0 0.0
        %1418 = vmatpush2.xpose.msra.mxu0 0.0
        %1419 = vmatprep.subr.mxu0 0.0
        %1420 = vmatpush2.xpose.msra.mxu0 0.0
        %1421 = vmatprep.subr.mxu0 0.0
        %1422 = vmatpush2.xpose.msra.mxu0 0.0
        %1423 = vmatprep.subr.mxu0 0.0
        %1424 = vmatpush2.xpose.msra.mxu0 0.0
        %1425 = vmatprep.subr.mxu0 0.0
        %1426 = vmatpush2.xpose.msra.mxu0 0.0
        %1427 = vmatprep.subr.mxu0 0.0
        %1428 = vmatpush2.xpose.msra.mxu0 0.0
        %1429 = vmatprep.mubr.f32.mxu0 0.0
        %1430 = vmatmul.mubr.f32.gmra.mxu0 %v1361
        %v1431 = vpop.f32.mrf.mxu0
        %v1432 = vadd.f32 %v961, %v1431
        %v1433 = vpop.f32.mrf.mxu0
        %1434 = vdwg.mxu0
        %1435 = vrot.lane.b32.xlu0 %v919, 96
        %v1436 = vpop.permute.xlu0 %1435
        %v1437 = vsel %vm980, %v905, 0
        %v1439 = vsel %vm980, %v1436, 0
        %1441 = vmatprep.subr.mxu0 0.0
        %1442 = vmatpush1.xpose.msra.mxu0 0.0
        %1443 = vmatprep.subr.mxu0 0.0
        %1444 = vmatpush1.xpose.msra.mxu0 0.0
        %1445 = vmatprep.subr.mxu0 0.0
        %1446 = vmatpush1.xpose.msra.mxu0 0.0
        %1447 = vmatprep.subr.mxu0 0.0
        %1448 = vmatpush1.xpose.msra.mxu0 0.0
        %1449 = vmatprep.subr.mxu0 0.0
        %1450 = vmatpush1.xpose.msra.mxu0 0.0
        %1451 = vmatprep.subr.mxu0 0.0
        %1452 = vmatpush1.xpose.msra.mxu0 0.0
        %1453 = vmatprep.subr.mxu0 0.0
        %1454 = vmatpush1.xpose.msra.mxu0 0.0
        %1455 = vmatprep.subr.mxu0 0.0
        %1456 = vmatpush1.xpose.msra.mxu0 0.0
        %1457 = vmatprep.subr.mxu0 0.0
        %1458 = vmatpush1.xpose.msra.mxu0 0.0
        %1459 = vmatprep.subr.mxu0 0.0
        %1460 = vmatpush1.xpose.msra.mxu0 0.0
        %1461 = vmatprep.subr.mxu0 0.0
        %1462 = vmatpush1.xpose.msra.mxu0 0.0
        %1463 = vmatprep.subr.mxu0 0.0
        %1464 = vmatpush1.xpose.msra.mxu0 0.0
        %1465 = vmatprep.subr.mxu0 0.0
        %1466 = vmatpush1.xpose.msra.mxu0 0.0
        %1467 = vmatprep.subr.mxu0 0.0
        %1468 = vmatpush1.xpose.msra.mxu0 0.0
        %1469 = vmatprep.subr.mxu0 0.0
        %1470 = vmatpush1.xpose.msra.mxu0 0.0
        %1471 = vmatprep.subr.mxu0 0.0
        %1472 = vmatpush1.xpose.msra.mxu0 %v1439
        %1473 = vmatprep.subr.mxu0 0.0
        %1474 = vmatpush2.xpose.msra.mxu0 0.0
        %1475 = vmatprep.subr.mxu0 0.0
        %1476 = vmatpush2.xpose.msra.mxu0 0.0
        %1477 = vmatprep.subr.mxu0 0.0
        %1478 = vmatpush2.xpose.msra.mxu0 0.0
        %1479 = vmatprep.subr.mxu0 0.0
        %1480 = vmatpush2.xpose.msra.mxu0 0.0
        %1481 = vmatprep.subr.mxu0 0.0
        %1482 = vmatpush2.xpose.msra.mxu0 0.0
        %1483 = vmatprep.subr.mxu0 0.0
        %1484 = vmatpush2.xpose.msra.mxu0 0.0
        %1485 = vmatprep.subr.mxu0 0.0
        %1486 = vmatpush2.xpose.msra.mxu0 0.0
        %1487 = vmatprep.subr.mxu0 0.0
        %1488 = vmatpush2.xpose.msra.mxu0 0.0
        %1489 = vmatprep.subr.mxu0 0.0
        %1490 = vmatpush2.xpose.msra.mxu0 0.0
        %1491 = vmatprep.subr.mxu0 0.0
        %1492 = vmatpush2.xpose.msra.mxu0 0.0
        %1493 = vmatprep.subr.mxu0 0.0
        %1494 = vmatpush2.xpose.msra.mxu0 0.0
        %1495 = vmatprep.subr.mxu0 0.0
        %1496 = vmatpush2.xpose.msra.mxu0 0.0
        %1497 = vmatprep.subr.mxu0 0.0
        %1498 = vmatpush2.xpose.msra.mxu0 0.0
        %1499 = vmatprep.subr.mxu0 0.0
        %1500 = vmatpush2.xpose.msra.mxu0 0.0
        %1501 = vmatprep.subr.mxu0 0.0
        %1502 = vmatpush2.xpose.msra.mxu0 0.0
        %1503 = vmatprep.subr.mxu0 0.0
        %1504 = vmatpush2.xpose.msra.mxu0 0.0
        %1505 = vmatprep.mubr.f32.mxu0 0.0
        %1506 = vmatmul.mubr.f32.gmra.mxu0 %v1437
        %v1507 = vpop.f32.mrf.mxu0
        %v1508 = vadd.f32 %v965, %v1507
        %v1509 = vpop.f32.mrf.mxu0
        %1510 = vdwg.mxu0
        %1511 = vrot.lane.b32.xlu0 %v921, 96
        %v1512 = vpop.permute.xlu0 %1511
        %v1513 = vsel %vm980, %v907, 0
        %v1515 = vsel %vm980, %v1512, 0
        %1517 = vmatprep.subr.mxu0 0.0
        %1518 = vmatpush1.xpose.msra.mxu0 0.0
        %1519 = vmatprep.subr.mxu0 0.0
        %1520 = vmatpush1.xpose.msra.mxu0 0.0
        %1521 = vmatprep.subr.mxu0 0.0
        %1522 = vmatpush1.xpose.msra.mxu0 0.0
        %1523 = vmatprep.subr.mxu0 0.0
        %1524 = vmatpush1.xpose.msra.mxu0 0.0
        %1525 = vmatprep.subr.mxu0 0.0
        %1526 = vmatpush1.xpose.msra.mxu0 0.0
        %1527 = vmatprep.subr.mxu0 0.0
        %1528 = vmatpush1.xpose.msra.mxu0 0.0
        %1529 = vmatprep.subr.mxu0 0.0
        %1530 = vmatpush1.xpose.msra.mxu0 0.0
        %1531 = vmatprep.subr.mxu0 0.0
        %1532 = vmatpush1.xpose.msra.mxu0 0.0
        %1533 = vmatprep.subr.mxu0 0.0
        %1534 = vmatpush1.xpose.msra.mxu0 0.0
        %1535 = vmatprep.subr.mxu0 0.0
        %1536 = vmatpush1.xpose.msra.mxu0 0.0
        %1537 = vmatprep.subr.mxu0 0.0
        %1538 = vmatpush1.xpose.msra.mxu0 0.0
        %1539 = vmatprep.subr.mxu0 0.0
        %1540 = vmatpush1.xpose.msra.mxu0 0.0
        %1541 = vmatprep.subr.mxu0 0.0
        %1542 = vmatpush1.xpose.msra.mxu0 0.0
        %1543 = vmatprep.subr.mxu0 0.0
        %1544 = vmatpush1.xpose.msra.mxu0 0.0
        %1545 = vmatprep.subr.mxu0 0.0
        %1546 = vmatpush1.xpose.msra.mxu0 0.0
        %1547 = vmatprep.subr.mxu0 0.0
        %1548 = vmatpush1.xpose.msra.mxu0 %v1515
        %1549 = vmatprep.subr.mxu0 0.0
        %1550 = vmatpush2.xpose.msra.mxu0 0.0
        %1551 = vmatprep.subr.mxu0 0.0
        %1552 = vmatpush2.xpose.msra.mxu0 0.0
        %1553 = vmatprep.subr.mxu0 0.0
        %1554 = vmatpush2.xpose.msra.mxu0 0.0
        %1555 = vmatprep.subr.mxu0 0.0
        %1556 = vmatpush2.xpose.msra.mxu0 0.0
        %1557 = vmatprep.subr.mxu0 0.0
        %1558 = vmatpush2.xpose.msra.mxu0 0.0
        %1559 = vmatprep.subr.mxu0 0.0
        %1560 = vmatpush2.xpose.msra.mxu0 0.0
        %1561 = vmatprep.subr.mxu0 0.0
        %1562 = vmatpush2.xpose.msra.mxu0 0.0
        %1563 = vmatprep.subr.mxu0 0.0
        %1564 = vmatpush2.xpose.msra.mxu0 0.0
        %1565 = vmatprep.subr.mxu0 0.0
        %1566 = vmatpush2.xpose.msra.mxu0 0.0
        %1567 = vmatprep.subr.mxu0 0.0
        %1568 = vmatpush2.xpose.msra.mxu0 0.0
        %1569 = vmatprep.subr.mxu0 0.0
        %1570 = vmatpush2.xpose.msra.mxu0 0.0
        %1571 = vmatprep.subr.mxu0 0.0
        %1572 = vmatpush2.xpose.msra.mxu0 0.0
        %1573 = vmatprep.subr.mxu0 0.0
        %1574 = vmatpush2.xpose.msra.mxu0 0.0
        %1575 = vmatprep.subr.mxu0 0.0
        %1576 = vmatpush2.xpose.msra.mxu0 0.0
        %1577 = vmatprep.subr.mxu0 0.0
        %1578 = vmatpush2.xpose.msra.mxu0 0.0
        %1579 = vmatprep.subr.mxu0 0.0
        %1580 = vmatpush2.xpose.msra.mxu0 0.0
        %1581 = vmatprep.mubr.f32.mxu0 0.0
        %1582 = vmatmul.mubr.f32.gmra.mxu0 %v1513
        %v1583 = vpop.f32.mrf.mxu0
        %v1584 = vadd.f32 %v969, %v1583
        %v1585 = vpop.f32.mrf.mxu0
        %1586 = vdwg.mxu0
        %v1587 = vsel %vm980, %v1052, -inf
        %1588 = vmax.xlane.f32.xlu0 %v1587
        %v1589 = vpop.xlane.xlu0 %1588
        %v1590 = vsel %vm980, %v1128, -inf
        %1591 = vmax.xlane.f32.xlu0 %v1590
        %v1592 = vpop.xlane.xlu0 %1591
        %v1593 = vsel %vm980, %v1204, -inf
        %1594 = vmax.xlane.f32.xlu0 %v1593
        %v1595 = vpop.xlane.xlu0 %1594
        %v1596 = vsel %vm980, %v1280, -inf
        %1597 = vmax.xlane.f32.xlu0 %v1596
        %v1598 = vpop.xlane.xlu0 %1597
        %v1599 = vsel %vm980, %v1356, -inf
        %1600 = vmax.xlane.f32.xlu0 %v1599
        %v1601 = vpop.xlane.xlu0 %1600
        %v1602 = vsel %vm980, %v1432, -inf
        %1603 = vmax.xlane.f32.xlu0 %v1602
        %v1604 = vpop.xlane.xlu0 %1603
        %v1605 = vsel %vm980, %v1508, -inf
        %1606 = vmax.xlane.f32.xlu0 %v1605
        %v1607 = vpop.xlane.xlu0 %1606
        %v1608 = vsel %vm980, %v1584, -inf
        %1609 = vmax.xlane.f32.xlu0 %v1608
        %v1610 = vpop.xlane.xlu0 %1609
        %v1611 = vsub.f32 %v1052, %v1589
        %v1612 = vsub.f32 %v1128, %v1592
        %v1613 = vsub.f32 %v1204, %v1595
        %v1614 = vsub.f32 %v1280, %v1598
        %v1615 = vsub.f32 %v1356, %v1601
        %v1616 = vsub.f32 %v1432, %v1604
        %v1617 = vsub.f32 %v1508, %v1607
        %v1618 = vsub.f32 %v1584, %v1610
        %v1619 = vmul.f32 %v1611, 1.442695
        %v1620 = vpow.pop %v1619
        %v1621 = vmul.f32 %v1612, 1.442695
        %v1622 = vpow.pop %v1621
        %v1623 = vmul.f32 %v1613, 1.442695
        %v1624 = vpow.pop %v1623
        %v1625 = vmul.f32 %v1614, 1.442695
        %v1626 = vpow.pop %v1625
        %v1627 = vmul.f32 %v1615, 1.442695
        %v1628 = vpow.pop %v1627
        %v1629 = vmul.f32 %v1616, 1.442695
        %v1630 = vpow.pop %v1629
        %v1631 = vmul.f32 %v1617, 1.442695
        %v1632 = vpow.pop %v1631
        %v1633 = vmul.f32 %v1618, 1.442695
        %v1634 = vpow.pop %v1633
        %v1635 = vsel %vm980, %v1620, 0.0
        %1636 = vadd.xlane.f32.xlu0 %v1635
        %v1637 = vpop.xlane.xlu0 %1636
        %v1638 = vsel %vm980, %v1622, 0.0
        %1639 = vadd.xlane.f32.xlu0 %v1638
        %v1640 = vpop.xlane.xlu0 %1639
        %v1641 = vsel %vm980, %v1624, 0.0
        %1642 = vadd.xlane.f32.xlu0 %v1641
        %v1643 = vpop.xlane.xlu0 %1642
        %v1644 = vsel %vm980, %v1626, 0.0
        %1645 = vadd.xlane.f32.xlu0 %v1644
        %v1646 = vpop.xlane.xlu0 %1645
        %v1647 = vsel %vm980, %v1628, 0.0
        %1648 = vadd.xlane.f32.xlu0 %v1647
        %v1649 = vpop.xlane.xlu0 %1648
        %v1650 = vsel %vm980, %v1630, 0.0
        %1651 = vadd.xlane.f32.xlu0 %v1650
        %v1652 = vpop.xlane.xlu0 %1651
        %v1653 = vsel %vm980, %v1632, 0.0
        %1654 = vadd.xlane.f32.xlu0 %v1653
        %v1655 = vpop.xlane.xlu0 %1654
        %v1656 = vsel %vm980, %v1634, 0.0
        %1657 = vadd.xlane.f32.xlu0 %v1656
        %v1658 = vpop.xlane.xlu0 %1657
        %v1659 = vrcp.pop %v1637
        %v1660 = vrcp.pop %v1640
        %v1661 = vrcp.pop %v1643
        %v1662 = vrcp.pop %v1646
        %v1663 = vrcp.pop %v1649
        %v1664 = vrcp.pop %v1652
        %v1665 = vrcp.pop %v1655
        %v1666 = vrcp.pop %v1658
        %v1667 = vmul.f32 %v1620, %v1659
        %v1668 = vmul.f32 %v1622, %v1660
        %v1669 = vmul.f32 %v1624, %v1661
        %v1670 = vmul.f32 %v1626, %v1662
        %v1671 = vmul.f32 %v1628, %v1663
        %v1672 = vmul.f32 %v1630, %v1664
        %v1673 = vmul.f32 %v1632, %v1665
        %v1674 = vmul.f32 %v1634, %v1666
        %1675 = vrot.lane.b32.xlu0 %v886, 64
        %v1676 = vpop.permute.xlu0 %1675
        %v1679 = vsel %vm980, %v1667, 0
        %1681 = vmatprep.subr.mxu0 0.0
        %1682 = vmatpush1.msra.mxu0 0.0
        %1683 = vmatprep.subr.mxu0 0.0
        %1684 = vmatpush1.msra.mxu0 0.0
        %1685 = vmatprep.subr.mxu0 0.0
        %1686 = vmatpush1.msra.mxu0 0.0
        %1687 = vmatprep.subr.mxu0 0.0
        %1688 = vmatpush1.msra.mxu0 0.0
        %1689 = vmatprep.subr.mxu0 0.0
        %1690 = vmatpush1.msra.mxu0 0.0
        %1691 = vmatprep.subr.mxu0 0.0
        %1692 = vmatpush1.msra.mxu0 0.0
        %1693 = vmatprep.subr.mxu0 0.0
        %1694 = vmatpush1.msra.mxu0 0.0
        %1695 = vmatprep.subr.mxu0 0.0
        %1696 = vmatpush1.msra.mxu0 0.0
        %1697 = vmatprep.subr.mxu0 0.0
        %1698 = vmatpush1.msra.mxu0 0.0
        %1699 = vmatprep.subr.mxu0 0.0
        %1700 = vmatpush1.msra.mxu0 0.0
        %1701 = vmatprep.subr.mxu0 0.0
        %1702 = vmatpush1.msra.mxu0 0.0
        %1703 = vmatprep.subr.mxu0 0.0
        %1704 = vmatpush1.msra.mxu0 0.0
        %1705 = vmatprep.subr.mxu0 0.0
        %1706 = vmatpush1.msra.mxu0 0.0
        %1707 = vmatprep.subr.mxu0 0.0
        %1708 = vmatpush1.msra.mxu0 0.0
        %1709 = vmatprep.subr.mxu0 0.0
        %1710 = vmatpush1.msra.mxu0 0.0
        %1711 = vmatprep.subr.mxu0 0.0
        %1712 = vmatpush1.msra.mxu0 %v1676
        %1713 = vmatprep.subr.mxu0 0.0
        %1714 = vmatpush2.msra.mxu0 0.0
        %1715 = vmatprep.subr.mxu0 0.0
        %1716 = vmatpush2.msra.mxu0 0.0
        %1717 = vmatprep.subr.mxu0 0.0
        %1718 = vmatpush2.msra.mxu0 0.0
        %1719 = vmatprep.subr.mxu0 0.0
        %1720 = vmatpush2.msra.mxu0 0.0
        %1721 = vmatprep.subr.mxu0 0.0
        %1722 = vmatpush2.msra.mxu0 0.0
        %1723 = vmatprep.subr.mxu0 0.0
        %1724 = vmatpush2.msra.mxu0 0.0
        %1725 = vmatprep.subr.mxu0 0.0
        %1726 = vmatpush2.msra.mxu0 0.0
        %1727 = vmatprep.subr.mxu0 0.0
        %1728 = vmatpush2.msra.mxu0 0.0
        %1729 = vmatprep.subr.mxu0 0.0
        %1730 = vmatpush2.msra.mxu0 0.0
        %1731 = vmatprep.subr.mxu0 0.0
        %1732 = vmatpush2.msra.mxu0 0.0
        %1733 = vmatprep.subr.mxu0 0.0
        %1734 = vmatpush2.msra.mxu0 0.0
        %1735 = vmatprep.subr.mxu0 0.0
        %1736 = vmatpush2.msra.mxu0 0.0
        %1737 = vmatprep.subr.mxu0 0.0
        %1738 = vmatpush2.msra.mxu0 0.0
        %1739 = vmatprep.subr.mxu0 0.0
        %1740 = vmatpush2.msra.mxu0 0.0
        %1741 = vmatprep.subr.mxu0 0.0
        %1742 = vmatpush2.msra.mxu0 0.0
        %1743 = vmatprep.subr.mxu0 0.0
        %1744 = vmatpush2.msra.mxu0 0.0
        %1745 = vmatprep.mubr.f32.mxu0 0.0
        %1746 = vmatmul.mubr.f32.gmra.mxu0 %v1679
        %v1747 = vpop.f32.mrf.mxu0
        %v1748 = vadd.f32 0.0, %v1747
        %v1749 = vpop.f32.mrf.mxu0
        %1750 = vdwg.mxu0
        %1751 = vrot.lane.b32.xlu0 %v910, 64
        %v1752 = vpop.permute.xlu0 %1751
        %v1755 = vsel %vm980, %v1668, 0
        %1757 = vmatprep.subr.mxu0 0.0
        %1758 = vmatpush1.msra.mxu0 0.0
        %1759 = vmatprep.subr.mxu0 0.0
        %1760 = vmatpush1.msra.mxu0 0.0
        %1761 = vmatprep.subr.mxu0 0.0
        %1762 = vmatpush1.msra.mxu0 0.0
        %1763 = vmatprep.subr.mxu0 0.0
        %1764 = vmatpush1.msra.mxu0 0.0
        %1765 = vmatprep.subr.mxu0 0.0
        %1766 = vmatpush1.msra.mxu0 0.0
        %1767 = vmatprep.subr.mxu0 0.0
        %1768 = vmatpush1.msra.mxu0 0.0
        %1769 = vmatprep.subr.mxu0 0.0
        %1770 = vmatpush1.msra.mxu0 0.0
        %1771 = vmatprep.subr.mxu0 0.0
        %1772 = vmatpush1.msra.mxu0 0.0
        %1773 = vmatprep.subr.mxu0 0.0
        %1774 = vmatpush1.msra.mxu0 0.0
        %1775 = vmatprep.subr.mxu0 0.0
        %1776 = vmatpush1.msra.mxu0 0.0
        %1777 = vmatprep.subr.mxu0 0.0
        %1778 = vmatpush1.msra.mxu0 0.0
        %1779 = vmatprep.subr.mxu0 0.0
        %1780 = vmatpush1.msra.mxu0 0.0
        %1781 = vmatprep.subr.mxu0 0.0
        %1782 = vmatpush1.msra.mxu0 0.0
        %1783 = vmatprep.subr.mxu0 0.0
        %1784 = vmatpush1.msra.mxu0 0.0
        %1785 = vmatprep.subr.mxu0 0.0
        %1786 = vmatpush1.msra.mxu0 0.0
        %1787 = vmatprep.subr.mxu0 0.0
        %1788 = vmatpush1.msra.mxu0 %v1752
        %1789 = vmatprep.subr.mxu0 0.0
        %1790 = vmatpush2.msra.mxu0 0.0
        %1791 = vmatprep.subr.mxu0 0.0
        %1792 = vmatpush2.msra.mxu0 0.0
        %1793 = vmatprep.subr.mxu0 0.0
        %1794 = vmatpush2.msra.mxu0 0.0
        %1795 = vmatprep.subr.mxu0 0.0
        %1796 = vmatpush2.msra.mxu0 0.0
        %1797 = vmatprep.subr.mxu0 0.0
        %1798 = vmatpush2.msra.mxu0 0.0
        %1799 = vmatprep.subr.mxu0 0.0
        %1800 = vmatpush2.msra.mxu0 0.0
        %1801 = vmatprep.subr.mxu0 0.0
        %1802 = vmatpush2.msra.mxu0 0.0
        %1803 = vmatprep.subr.mxu0 0.0
        %1804 = vmatpush2.msra.mxu0 0.0
        %1805 = vmatprep.subr.mxu0 0.0
        %1806 = vmatpush2.msra.mxu0 0.0
        %1807 = vmatprep.subr.mxu0 0.0
        %1808 = vmatpush2.msra.mxu0 0.0
        %1809 = vmatprep.subr.mxu0 0.0
        %1810 = vmatpush2.msra.mxu0 0.0
        %1811 = vmatprep.subr.mxu0 0.0
        %1812 = vmatpush2.msra.mxu0 0.0
        %1813 = vmatprep.subr.mxu0 0.0
        %1814 = vmatpush2.msra.mxu0 0.0
        %1815 = vmatprep.subr.mxu0 0.0
        %1816 = vmatpush2.msra.mxu0 0.0
        %1817 = vmatprep.subr.mxu0 0.0
        %1818 = vmatpush2.msra.mxu0 0.0
        %1819 = vmatprep.subr.mxu0 0.0
        %1820 = vmatpush2.msra.mxu0 0.0
        %1821 = vmatprep.mubr.f32.mxu0 0.0
        %1822 = vmatmul.mubr.f32.gmra.mxu0 %v1755
        %v1823 = vpop.f32.mrf.mxu0
        %v1824 = vadd.f32 0.0, %v1823
        %v1825 = vpop.f32.mrf.mxu0
        %1826 = vdwg.mxu0
        %1827 = vrot.lane.b32.xlu0 %v912, 64
        %v1828 = vpop.permute.xlu0 %1827
        %v1831 = vsel %vm980, %v1669, 0
        %1833 = vmatprep.subr.mxu0 0.0
        %1834 = vmatpush1.msra.mxu0 0.0
        %1835 = vmatprep.subr.mxu0 0.0
        %1836 = vmatpush1.msra.mxu0 0.0
        %1837 = vmatprep.subr.mxu0 0.0
        %1838 = vmatpush1.msra.mxu0 0.0
        %1839 = vmatprep.subr.mxu0 0.0
        %1840 = vmatpush1.msra.mxu0 0.0
        %1841 = vmatprep.subr.mxu0 0.0
        %1842 = vmatpush1.msra.mxu0 0.0
        %1843 = vmatprep.subr.mxu0 0.0
        %1844 = vmatpush1.msra.mxu0 0.0
        %1845 = vmatprep.subr.mxu0 0.0
        %1846 = vmatpush1.msra.mxu0 0.0
        %1847 = vmatprep.subr.mxu0 0.0
        %1848 = vmatpush1.msra.mxu0 0.0
        %1849 = vmatprep.subr.mxu0 0.0
        %1850 = vmatpush1.msra.mxu0 0.0
        %1851 = vmatprep.subr.mxu0 0.0
        %1852 = vmatpush1.msra.mxu0 0.0
        %1853 = vmatprep.subr.mxu0 0.0
        %1854 = vmatpush1.msra.mxu0 0.0
        %1855 = vmatprep.subr.mxu0 0.0
        %1856 = vmatpush1.msra.mxu0 0.0
        %1857 = vmatprep.subr.mxu0 0.0
        %1858 = vmatpush1.msra.mxu0 0.0
        %1859 = vmatprep.subr.mxu0 0.0
        %1860 = vmatpush1.msra.mxu0 0.0
        %1861 = vmatprep.subr.mxu0 0.0
        %1862 = vmatpush1.msra.mxu0 0.0
        %1863 = vmatprep.subr.mxu0 0.0
        %1864 = vmatpush1.msra.mxu0 %v1828
        %1865 = vmatprep.subr.mxu0 0.0
        %1866 = vmatpush2.msra.mxu0 0.0
        %1867 = vmatprep.subr.mxu0 0.0
        %1868 = vmatpush2.msra.mxu0 0.0
        %1869 = vmatprep.subr.mxu0 0.0
        %1870 = vmatpush2.msra.mxu0 0.0
        %1871 = vmatprep.subr.mxu0 0.0
        %1872 = vmatpush2.msra.mxu0 0.0
        %1873 = vmatprep.subr.mxu0 0.0
        %1874 = vmatpush2.msra.mxu0 0.0
        %1875 = vmatprep.subr.mxu0 0.0
        %1876 = vmatpush2.msra.mxu0 0.0
        %1877 = vmatprep.subr.mxu0 0.0
        %1878 = vmatpush2.msra.mxu0 0.0
        %1879 = vmatprep.subr.mxu0 0.0
        %1880 = vmatpush2.msra.mxu0 0.0
        %1881 = vmatprep.subr.mxu0 0.0
        %1882 = vmatpush2.msra.mxu0 0.0
        %1883 = vmatprep.subr.mxu0 0.0
        %1884 = vmatpush2.msra.mxu0 0.0
        %1885 = vmatprep.subr.mxu0 0.0
        %1886 = vmatpush2.msra.mxu0 0.0
        %1887 = vmatprep.subr.mxu0 0.0
        %1888 = vmatpush2.msra.mxu0 0.0
        %1889 = vmatprep.subr.mxu0 0.0
        %1890 = vmatpush2.msra.mxu0 0.0
        %1891 = vmatprep.subr.mxu0 0.0
        %1892 = vmatpush2.msra.mxu0 0.0
        %1893 = vmatprep.subr.mxu0 0.0
        %1894 = vmatpush2.msra.mxu0 0.0
        %1895 = vmatprep.subr.mxu0 0.0
        %1896 = vmatpush2.msra.mxu0 0.0
        %1897 = vmatprep.mubr.f32.mxu0 0.0
        %1898 = vmatmul.mubr.f32.gmra.mxu0 %v1831
        %v1899 = vpop.f32.mrf.mxu0
        %v1900 = vadd.f32 0.0, %v1899
        %v1901 = vpop.f32.mrf.mxu0
        %1902 = vdwg.mxu0
        %1903 = vrot.lane.b32.xlu0 %v914, 64
        %v1904 = vpop.permute.xlu0 %1903
        %v1907 = vsel %vm980, %v1670, 0
        %1909 = vmatprep.subr.mxu0 0.0
        %1910 = vmatpush1.msra.mxu0 0.0
        %1911 = vmatprep.subr.mxu0 0.0
        %1912 = vmatpush1.msra.mxu0 0.0
        %1913 = vmatprep.subr.mxu0 0.0
        %1914 = vmatpush1.msra.mxu0 0.0
        %1915 = vmatprep.subr.mxu0 0.0
        %1916 = vmatpush1.msra.mxu0 0.0
        %1917 = vmatprep.subr.mxu0 0.0
        %1918 = vmatpush1.msra.mxu0 0.0
        %1919 = vmatprep.subr.mxu0 0.0
        %1920 = vmatpush1.msra.mxu0 0.0
        %1921 = vmatprep.subr.mxu0 0.0
        %1922 = vmatpush1.msra.mxu0 0.0
        %1923 = vmatprep.subr.mxu0 0.0
        %1924 = vmatpush1.msra.mxu0 0.0
        %1925 = vmatprep.subr.mxu0 0.0
        %1926 = vmatpush1.msra.mxu0 0.0
        %1927 = vmatprep.subr.mxu0 0.0
        %1928 = vmatpush1.msra.mxu0 0.0
        %1929 = vmatprep.subr.mxu0 0.0
        %1930 = vmatpush1.msra.mxu0 0.0
        %1931 = vmatprep.subr.mxu0 0.0
        %1932 = vmatpush1.msra.mxu0 0.0
        %1933 = vmatprep.subr.mxu0 0.0
        %1934 = vmatpush1.msra.mxu0 0.0
        %1935 = vmatprep.subr.mxu0 0.0
        %1936 = vmatpush1.msra.mxu0 0.0
        %1937 = vmatprep.subr.mxu0 0.0
        %1938 = vmatpush1.msra.mxu0 0.0
        %1939 = vmatprep.subr.mxu0 0.0
        %1940 = vmatpush1.msra.mxu0 %v1904
        %1941 = vmatprep.subr.mxu0 0.0
        %1942 = vmatpush2.msra.mxu0 0.0
        %1943 = vmatprep.subr.mxu0 0.0
        %1944 = vmatpush2.msra.mxu0 0.0
        %1945 = vmatprep.subr.mxu0 0.0
        %1946 = vmatpush2.msra.mxu0 0.0
        %1947 = vmatprep.subr.mxu0 0.0
        %1948 = vmatpush2.msra.mxu0 0.0
        %1949 = vmatprep.subr.mxu0 0.0
        %1950 = vmatpush2.msra.mxu0 0.0
        %1951 = vmatprep.subr.mxu0 0.0
        %1952 = vmatpush2.msra.mxu0 0.0
        %1953 = vmatprep.subr.mxu0 0.0
        %1954 = vmatpush2.msra.mxu0 0.0
        %1955 = vmatprep.subr.mxu0 0.0
        %1956 = vmatpush2.msra.mxu0 0.0
        %1957 = vmatprep.subr.mxu0 0.0
        %1958 = vmatpush2.msra.mxu0 0.0
        %1959 = vmatprep.subr.mxu0 0.0
        %1960 = vmatpush2.msra.mxu0 0.0
        %1961 = vmatprep.subr.mxu0 0.0
        %1962 = vmatpush2.msra.mxu0 0.0
        %1963 = vmatprep.subr.mxu0 0.0
        %1964 = vmatpush2.msra.mxu0 0.0
        %1965 = vmatprep.subr.mxu0 0.0
        %1966 = vmatpush2.msra.mxu0 0.0
        %1967 = vmatprep.subr.mxu0 0.0
        %1968 = vmatpush2.msra.mxu0 0.0
        %1969 = vmatprep.subr.mxu0 0.0
        %1970 = vmatpush2.msra.mxu0 0.0
        %1971 = vmatprep.subr.mxu0 0.0
        %1972 = vmatpush2.msra.mxu0 0.0
        %1973 = vmatprep.mubr.f32.mxu0 0.0
        %1974 = vmatmul.mubr.f32.gmra.mxu0 %v1907
        %v1975 = vpop.f32.mrf.mxu0
        %v1976 = vadd.f32 0.0, %v1975
        %v1977 = vpop.f32.mrf.mxu0
        %1978 = vdwg.mxu0
        %1979 = vrot.lane.b32.xlu0 %v889, 64
        %v1980 = vpop.permute.xlu0 %1979
        %v1983 = vsel %vm980, %v1671, 0
        %1985 = vmatprep.subr.mxu0 0.0
        %1986 = vmatpush1.msra.mxu0 0.0
        %1987 = vmatprep.subr.mxu0 0.0
        %1988 = vmatpush1.msra.mxu0 0.0
        %1989 = vmatprep.subr.mxu0 0.0
        %1990 = vmatpush1.msra.mxu0 0.0
        %1991 = vmatprep.subr.mxu0 0.0
        %1992 = vmatpush1.msra.mxu0 0.0
        %1993 = vmatprep.subr.mxu0 0.0
        %1994 = vmatpush1.msra.mxu0 0.0
        %1995 = vmatprep.subr.mxu0 0.0
        %1996 = vmatpush1.msra.mxu0 0.0
        %1997 = vmatprep.subr.mxu0 0.0
        %1998 = vmatpush1.msra.mxu0 0.0
        %1999 = vmatprep.subr.mxu0 0.0
        %2000 = vmatpush1.msra.mxu0 0.0
        %2001 = vmatprep.subr.mxu0 0.0
        %2002 = vmatpush1.msra.mxu0 0.0
        %2003 = vmatprep.subr.mxu0 0.0
        %2004 = vmatpush1.msra.mxu0 0.0
        %2005 = vmatprep.subr.mxu0 0.0
        %2006 = vmatpush1.msra.mxu0 0.0
        %2007 = vmatprep.subr.mxu0 0.0
        %2008 = vmatpush1.msra.mxu0 0.0
        %2009 = vmatprep.subr.mxu0 0.0
        %2010 = vmatpush1.msra.mxu0 0.0
        %2011 = vmatprep.subr.mxu0 0.0
        %2012 = vmatpush1.msra.mxu0 0.0
        %2013 = vmatprep.subr.mxu0 0.0
        %2014 = vmatpush1.msra.mxu0 0.0
        %2015 = vmatprep.subr.mxu0 0.0
        %2016 = vmatpush1.msra.mxu0 %v1980
        %2017 = vmatprep.subr.mxu0 0.0
        %2018 = vmatpush2.msra.mxu0 0.0
        %2019 = vmatprep.subr.mxu0 0.0
        %2020 = vmatpush2.msra.mxu0 0.0
        %2021 = vmatprep.subr.mxu0 0.0
        %2022 = vmatpush2.msra.mxu0 0.0
        %2023 = vmatprep.subr.mxu0 0.0
        %2024 = vmatpush2.msra.mxu0 0.0
        %2025 = vmatprep.subr.mxu0 0.0
        %2026 = vmatpush2.msra.mxu0 0.0
        %2027 = vmatprep.subr.mxu0 0.0
        %2028 = vmatpush2.msra.mxu0 0.0
        %2029 = vmatprep.subr.mxu0 0.0
        %2030 = vmatpush2.msra.mxu0 0.0
        %2031 = vmatprep.subr.mxu0 0.0
        %2032 = vmatpush2.msra.mxu0 0.0
        %2033 = vmatprep.subr.mxu0 0.0
        %2034 = vmatpush2.msra.mxu0 0.0
        %2035 = vmatprep.subr.mxu0 0.0
        %2036 = vmatpush2.msra.mxu0 0.0
        %2037 = vmatprep.subr.mxu0 0.0
        %2038 = vmatpush2.msra.mxu0 0.0
        %2039 = vmatprep.subr.mxu0 0.0
        %2040 = vmatpush2.msra.mxu0 0.0
        %2041 = vmatprep.subr.mxu0 0.0
        %2042 = vmatpush2.msra.mxu0 0.0
        %2043 = vmatprep.subr.mxu0 0.0
        %2044 = vmatpush2.msra.mxu0 0.0
        %2045 = vmatprep.subr.mxu0 0.0
        %2046 = vmatpush2.msra.mxu0 0.0
        %2047 = vmatprep.subr.mxu0 0.0
        %2048 = vmatpush2.msra.mxu0 0.0
        %2049 = vmatprep.mubr.f32.mxu0 0.0
        %2050 = vmatmul.mubr.f32.gmra.mxu0 %v1983
        %v2051 = vpop.f32.mrf.mxu0
        %v2052 = vadd.f32 0.0, %v2051
        %v2053 = vpop.f32.mrf.mxu0
        %2054 = vdwg.mxu0
        %2055 = vrot.lane.b32.xlu0 %v917, 64
        %v2056 = vpop.permute.xlu0 %2055
        %v2059 = vsel %vm980, %v1672, 0
        %2061 = vmatprep.subr.mxu0 0.0
        %2062 = vmatpush1.msra.mxu0 0.0
        %2063 = vmatprep.subr.mxu0 0.0
        %2064 = vmatpush1.msra.mxu0 0.0
        %2065 = vmatprep.subr.mxu0 0.0
        %2066 = vmatpush1.msra.mxu0 0.0
        %2067 = vmatprep.subr.mxu0 0.0
        %2068 = vmatpush1.msra.mxu0 0.0
        %2069 = vmatprep.subr.mxu0 0.0
        %2070 = vmatpush1.msra.mxu0 0.0
        %2071 = vmatprep.subr.mxu0 0.0
        %2072 = vmatpush1.msra.mxu0 0.0
        %2073 = vmatprep.subr.mxu0 0.0
        %2074 = vmatpush1.msra.mxu0 0.0
        %2075 = vmatprep.subr.mxu0 0.0
        %2076 = vmatpush1.msra.mxu0 0.0
        %2077 = vmatprep.subr.mxu0 0.0
        %2078 = vmatpush1.msra.mxu0 0.0
        %2079 = vmatprep.subr.mxu0 0.0
        %2080 = vmatpush1.msra.mxu0 0.0
        %2081 = vmatprep.subr.mxu0 0.0
        %2082 = vmatpush1.msra.mxu0 0.0
        %2083 = vmatprep.subr.mxu0 0.0
        %2084 = vmatpush1.msra.mxu0 0.0
        %2085 = vmatprep.subr.mxu0 0.0
        %2086 = vmatpush1.msra.mxu0 0.0
        %2087 = vmatprep.subr.mxu0 0.0
        %2088 = vmatpush1.msra.mxu0 0.0
        %2089 = vmatprep.subr.mxu0 0.0
        %2090 = vmatpush1.msra.mxu0 0.0
        %2091 = vmatprep.subr.mxu0 0.0
        %2092 = vmatpush1.msra.mxu0 %v2056
        %2093 = vmatprep.subr.mxu0 0.0
        %2094 = vmatpush2.msra.mxu0 0.0
        %2095 = vmatprep.subr.mxu0 0.0
        %2096 = vmatpush2.msra.mxu0 0.0
        %2097 = vmatprep.subr.mxu0 0.0
        %2098 = vmatpush2.msra.mxu0 0.0
        %2099 = vmatprep.subr.mxu0 0.0
        %2100 = vmatpush2.msra.mxu0 0.0
        %2101 = vmatprep.subr.mxu0 0.0
        %2102 = vmatpush2.msra.mxu0 0.0
        %2103 = vmatprep.subr.mxu0 0.0
        %2104 = vmatpush2.msra.mxu0 0.0
        %2105 = vmatprep.subr.mxu0 0.0
        %2106 = vmatpush2.msra.mxu0 0.0
        %2107 = vmatprep.subr.mxu0 0.0
        %2108 = vmatpush2.msra.mxu0 0.0
        %2109 = vmatprep.subr.mxu0 0.0
        %2110 = vmatpush2.msra.mxu0 0.0
        %2111 = vmatprep.subr.mxu0 0.0
        %2112 = vmatpush2.msra.mxu0 0.0
        %2113 = vmatprep.subr.mxu0 0.0
        %2114 = vmatpush2.msra.mxu0 0.0
        %2115 = vmatprep.subr.mxu0 0.0
        %2116 = vmatpush2.msra.mxu0 0.0
        %2117 = vmatprep.subr.mxu0 0.0
        %2118 = vmatpush2.msra.mxu0 0.0
        %2119 = vmatprep.subr.mxu0 0.0
        %2120 = vmatpush2.msra.mxu0 0.0
        %2121 = vmatprep.subr.mxu0 0.0
        %2122 = vmatpush2.msra.mxu0 0.0
        %2123 = vmatprep.subr.mxu0 0.0
        %2124 = vmatpush2.msra.mxu0 0.0
        %2125 = vmatprep.mubr.f32.mxu0 0.0
        %2126 = vmatmul.mubr.f32.gmra.mxu0 %v2059
        %v2127 = vpop.f32.mrf.mxu0
        %v2128 = vadd.f32 0.0, %v2127
        %v2129 = vpop.f32.mrf.mxu0
        %2130 = vdwg.mxu0
        %2131 = vrot.lane.b32.xlu0 %v919, 64
        %v2132 = vpop.permute.xlu0 %2131
        %v2135 = vsel %vm980, %v1673, 0
        %2137 = vmatprep.subr.mxu0 0.0
        %2138 = vmatpush1.msra.mxu0 0.0
        %2139 = vmatprep.subr.mxu0 0.0
        %2140 = vmatpush1.msra.mxu0 0.0
        %2141 = vmatprep.subr.mxu0 0.0
        %2142 = vmatpush1.msra.mxu0 0.0
        %2143 = vmatprep.subr.mxu0 0.0
        %2144 = vmatpush1.msra.mxu0 0.0
        %2145 = vmatprep.subr.mxu0 0.0
        %2146 = vmatpush1.msra.mxu0 0.0
        %2147 = vmatprep.subr.mxu0 0.0
        %2148 = vmatpush1.msra.mxu0 0.0
        %2149 = vmatprep.subr.mxu0 0.0
        %2150 = vmatpush1.msra.mxu0 0.0
        %2151 = vmatprep.subr.mxu0 0.0
        %2152 = vmatpush1.msra.mxu0 0.0
        %2153 = vmatprep.subr.mxu0 0.0
        %2154 = vmatpush1.msra.mxu0 0.0
        %2155 = vmatprep.subr.mxu0 0.0
        %2156 = vmatpush1.msra.mxu0 0.0
        %2157 = vmatprep.subr.mxu0 0.0
        %2158 = vmatpush1.msra.mxu0 0.0
        %2159 = vmatprep.subr.mxu0 0.0
        %2160 = vmatpush1.msra.mxu0 0.0
        %2161 = vmatprep.subr.mxu0 0.0
        %2162 = vmatpush1.msra.mxu0 0.0
        %2163 = vmatprep.subr.mxu0 0.0
        %2164 = vmatpush1.msra.mxu0 0.0
        %2165 = vmatprep.subr.mxu0 0.0
        %2166 = vmatpush1.msra.mxu0 0.0
        %2167 = vmatprep.subr.mxu0 0.0
        %2168 = vmatpush1.msra.mxu0 %v2132
        %2169 = vmatprep.subr.mxu0 0.0
        %2170 = vmatpush2.msra.mxu0 0.0
        %2171 = vmatprep.subr.mxu0 0.0
        %2172 = vmatpush2.msra.mxu0 0.0
        %2173 = vmatprep.subr.mxu0 0.0
        %2174 = vmatpush2.msra.mxu0 0.0
        %2175 = vmatprep.subr.mxu0 0.0
        %2176 = vmatpush2.msra.mxu0 0.0
        %2177 = vmatprep.subr.mxu0 0.0
        %2178 = vmatpush2.msra.mxu0 0.0
        %2179 = vmatprep.subr.mxu0 0.0
        %2180 = vmatpush2.msra.mxu0 0.0
        %2181 = vmatprep.subr.mxu0 0.0
        %2182 = vmatpush2.msra.mxu0 0.0
        %2183 = vmatprep.subr.mxu0 0.0
        %2184 = vmatpush2.msra.mxu0 0.0
        %2185 = vmatprep.subr.mxu0 0.0
        %2186 = vmatpush2.msra.mxu0 0.0
        %2187 = vmatprep.subr.mxu0 0.0
        %2188 = vmatpush2.msra.mxu0 0.0
        %2189 = vmatprep.subr.mxu0 0.0
        %2190 = vmatpush2.msra.mxu0 0.0
        %2191 = vmatprep.subr.mxu0 0.0
        %2192 = vmatpush2.msra.mxu0 0.0
        %2193 = vmatprep.subr.mxu0 0.0
        %2194 = vmatpush2.msra.mxu0 0.0
        %2195 = vmatprep.subr.mxu0 0.0
        %2196 = vmatpush2.msra.mxu0 0.0
        %2197 = vmatprep.subr.mxu0 0.0
        %2198 = vmatpush2.msra.mxu0 0.0
        %2199 = vmatprep.subr.mxu0 0.0
        %2200 = vmatpush2.msra.mxu0 0.0
        %2201 = vmatprep.mubr.f32.mxu0 0.0
        %2202 = vmatmul.mubr.f32.gmra.mxu0 %v2135
        %v2203 = vpop.f32.mrf.mxu0
        %v2204 = vadd.f32 0.0, %v2203
        %v2205 = vpop.f32.mrf.mxu0
        %2206 = vdwg.mxu0
        %2207 = vrot.lane.b32.xlu0 %v921, 64
        %v2208 = vpop.permute.xlu0 %2207
        %v2211 = vsel %vm980, %v1674, 0
        %2213 = vmatprep.subr.mxu0 0.0
        %2214 = vmatpush1.msra.mxu0 0.0
        %2215 = vmatprep.subr.mxu0 0.0
        %2216 = vmatpush1.msra.mxu0 0.0
        %2217 = vmatprep.subr.mxu0 0.0
        %2218 = vmatpush1.msra.mxu0 0.0
        %2219 = vmatprep.subr.mxu0 0.0
        %2220 = vmatpush1.msra.mxu0 0.0
        %2221 = vmatprep.subr.mxu0 0.0
        %2222 = vmatpush1.msra.mxu0 0.0
        %2223 = vmatprep.subr.mxu0 0.0
        %2224 = vmatpush1.msra.mxu0 0.0
        %2225 = vmatprep.subr.mxu0 0.0
        %2226 = vmatpush1.msra.mxu0 0.0
        %2227 = vmatprep.subr.mxu0 0.0
        %2228 = vmatpush1.msra.mxu0 0.0
        %2229 = vmatprep.subr.mxu0 0.0
        %2230 = vmatpush1.msra.mxu0 0.0
        %2231 = vmatprep.subr.mxu0 0.0
        %2232 = vmatpush1.msra.mxu0 0.0
        %2233 = vmatprep.subr.mxu0 0.0
        %2234 = vmatpush1.msra.mxu0 0.0
        %2235 = vmatprep.subr.mxu0 0.0
        %2236 = vmatpush1.msra.mxu0 0.0
        %2237 = vmatprep.subr.mxu0 0.0
        %2238 = vmatpush1.msra.mxu0 0.0
        %2239 = vmatprep.subr.mxu0 0.0
        %2240 = vmatpush1.msra.mxu0 0.0
        %2241 = vmatprep.subr.mxu0 0.0
        %2242 = vmatpush1.msra.mxu0 0.0
        %2243 = vmatprep.subr.mxu0 0.0
        %2244 = vmatpush1.msra.mxu0 %v2208
        %2245 = vmatprep.subr.mxu0 0.0
        %2246 = vmatpush2.msra.mxu0 0.0
        %2247 = vmatprep.subr.mxu0 0.0
        %2248 = vmatpush2.msra.mxu0 0.0
        %2249 = vmatprep.subr.mxu0 0.0
        %2250 = vmatpush2.msra.mxu0 0.0
        %2251 = vmatprep.subr.mxu0 0.0
        %2252 = vmatpush2.msra.mxu0 0.0
        %2253 = vmatprep.subr.mxu0 0.0
        %2254 = vmatpush2.msra.mxu0 0.0
        %2255 = vmatprep.subr.mxu0 0.0
        %2256 = vmatpush2.msra.mxu0 0.0
        %2257 = vmatprep.subr.mxu0 0.0
        %2258 = vmatpush2.msra.mxu0 0.0
        %2259 = vmatprep.subr.mxu0 0.0
        %2260 = vmatpush2.msra.mxu0 0.0
        %2261 = vmatprep.subr.mxu0 0.0
        %2262 = vmatpush2.msra.mxu0 0.0
        %2263 = vmatprep.subr.mxu0 0.0
        %2264 = vmatpush2.msra.mxu0 0.0
        %2265 = vmatprep.subr.mxu0 0.0
        %2266 = vmatpush2.msra.mxu0 0.0
        %2267 = vmatprep.subr.mxu0 0.0
        %2268 = vmatpush2.msra.mxu0 0.0
        %2269 = vmatprep.subr.mxu0 0.0
        %2270 = vmatpush2.msra.mxu0 0.0
        %2271 = vmatprep.subr.mxu0 0.0
        %2272 = vmatpush2.msra.mxu0 0.0
        %2273 = vmatprep.subr.mxu0 0.0
        %2274 = vmatpush2.msra.mxu0 0.0
        %2275 = vmatprep.subr.mxu0 0.0
        %2276 = vmatpush2.msra.mxu0 0.0
        %2277 = vmatprep.mubr.f32.mxu0 0.0
        %2278 = vmatmul.mubr.f32.gmra.mxu0 %v2211
        %v2279 = vpop.f32.mrf.mxu0
        %v2280 = vadd.f32 0.0, %v2279
        %v2281 = vpop.f32.mrf.mxu0
        %2282 = vdwg.mxu0
        %2284 = vrot.lane.b32.xlu0 %v1824, 8
        %v2285 = vpop.permute.xlu0 %2284
        %2288 = vrot.lane.b32.xlu0 %v1900, 16
        %v2289 = vpop.permute.xlu0 %2288
        %2292 = vrot.lane.b32.xlu0 %v1976, 24
        %v2293 = vpop.permute.xlu0 %2292
        %v2295 = vsel %vm980, %v1748, %v2285
        %vm2296 = vcmask 130048
        %v2297 = vsel %vm2296, %v2295, %v2289
        %vm2298 = vcmask 195584
        %v2299 = vsel %vm2298, %v2297, %v2293
        %2301 = vrot.lane.b32.xlu0 %v2128, 8
        %v2302 = vpop.permute.xlu0 %2301
        %2305 = vrot.lane.b32.xlu0 %v2204, 16
        %v2306 = vpop.permute.xlu0 %2305
        %2309 = vrot.lane.b32.xlu0 %v2280, 24
        %v2310 = vpop.permute.xlu0 %2309
        %v2312 = vsel %vm980, %v2052, %v2302
        %v2313 = vsel %vm2296, %v2312, %v2306
        %v2314 = vsel %vm2298, %v2313, %v2310
        %v2315 = vpack.c.bf16 %v2314, %v2299
        %v2316 = vld [vmem:[%s728] sm:$0xf]
        %v2317 = vld [vmem:[%s728 + $0x4] sm:$0xf]
        %v2318 = vld [vmem:[%s728 + $0x8] sm:$0xf]
        %v2319 = vld [vmem:[%s728 + $0xc] sm:$0xf]
        %v2320 = vld [vmem:[%s731] sm:$0x1]
        %v2322 = vlaneseq
        %v2323 = vshrl.u32 %v2322, 7
        %v2324 = vsub.s32 0, %v2323
        %v2325 = vrot.slane %v2320, %v2324
        %v2331 = vunpack.c.l.b16 %v2316
        %v2332 = vunpack.c.l.b16 %v2317
        %v2333 = vunpack.c.l.b16 %v2318
        %v2334 = vunpack.c.l.b16 %v2319
        %v2335 = vpack.c.b16 %v2332, %v2331
        %v2336 = vpack.c.b16 %v2334, %v2333
        %v2340 = vsel %vm847, %v2315, 0
        %2342 = vmatprep.subr.bf16.mxu0 0
        %2343 = vmatpush1.bf16.msra.mxu0 0
        %2344 = vmatprep.subr.bf16.mxu0 0
        %2345 = vmatpush1.bf16.msra.mxu0 0
        %2346 = vmatprep.subr.bf16.mxu0 0
        %2347 = vmatpush1.bf16.msra.mxu0 0
        %2348 = vmatprep.subr.bf16.mxu0 0
        %2349 = vmatpush1.bf16.msra.mxu0 0
        %2350 = vmatprep.subr.bf16.mxu0 0
        %2351 = vmatpush1.bf16.msra.mxu0 0
        %2352 = vmatprep.subr.bf16.mxu0 0
        %2353 = vmatpush1.bf16.msra.mxu0 0
        %2354 = vmatprep.subr.bf16.mxu0 0
        %2355 = vmatpush1.bf16.msra.mxu0 %v2336
        %2356 = vmatprep.subr.bf16.mxu0 0
        %2357 = vmatpush1.bf16.msra.mxu0 %v2335
        %2358 = vmatprep.subr.bf16.mxu0 0
        %2359 = vmatpush2.bf16.msra.mxu0 0
        %2360 = vmatprep.subr.bf16.mxu0 0
        %2361 = vmatpush2.bf16.msra.mxu0 0
        %2362 = vmatprep.subr.bf16.mxu0 0
        %2363 = vmatpush2.bf16.msra.mxu0 0
        %2364 = vmatprep.subr.bf16.mxu0 0
        %2365 = vmatpush2.bf16.msra.mxu0 0
        %2366 = vmatprep.subr.bf16.mxu0 0
        %2367 = vmatpush2.bf16.msra.mxu0 0
        %2368 = vmatprep.subr.bf16.mxu0 0
        %2369 = vmatpush2.bf16.msra.mxu0 0
        %2370 = vmatprep.subr.bf16.mxu0 0
        %2371 = vmatpush2.bf16.msra.mxu0 0
        %2372 = vmatprep.subr.bf16.mxu0 0
        %2373 = vmatpush2.bf16.msra.mxu0 0
        %2374 = vmatprep.mubr.bf16.mxu0 0
        %2375 = vmatmul.mubr.bf16.gmra.mxu0 %v2340
        %v2376 = vpop.f32.mrf.mxu0
        %v2377 = vadd.f32 %v2325, %v2376
        %v2378 = vpop.f32.mrf.mxu0
        %v2379 = vpop.f32.mrf.mxu0
        %v2380 = vadd.f32 %v2325, %v2379
        %v2381 = vpop.f32.mrf.mxu0
        %2382 = vdwg.mxu0
        %v2383 = vadd.f32 %v2377, %v821
        %v2384 = vadd.f32 %v2380, %v822
        %v2385 = vld [vmem:[%s734] sm:$0x1]
        %v2386 = vld [vmem:[%s737] sm:$0x1]
        %v2387 = vsel %vm847, %v2383, 0.0
        %2388 = vadd.xlane.f32.xlu0 %v2387
        %v2389 = vpop.xlane.xlu0 %2388
        %v2390 = vsel %vm847, %v2384, 0.0
        %2391 = vadd.xlane.f32.xlu0 %v2390
        %v2392 = vpop.xlane.xlu0 %2391
        %v2393 = vrcp.pop 32.0
        %v2394 = vmul.f32 %v2389, %v2393
        %v2395 = vmul.f32 %v2392, %v2393
        %v2396 = vmul.f32 %v2383, %v2383
        %v2397 = vmul.f32 %v2384, %v2384
        %v2398 = vsel %vm847, %v2396, 0.0
        %2399 = vadd.xlane.f32.xlu0 %v2398
        %v2400 = vpop.xlane.xlu0 %2399
        %v2401 = vsel %vm847, %v2397, 0.0
        %2402 = vadd.xlane.f32.xlu0 %v2401
        %v2403 = vpop.xlane.xlu0 %2402
        %v2404 = vmul.f32 %v2400, %v2393
        %v2405 = vmul.f32 %v2403, %v2393
        %v2406 = vmul.f32 %v2394, %v2394
        %v2407 = vmul.f32 %v2395, %v2395
        %v2408 = vsub.f32 %v2404, %v2406
        %v2409 = vsub.f32 %v2405, %v2407
        %v2410 = vmax.f32 %v2408, 0.0
        %v2411 = vmax.f32 %v2409, 0.0
        %v2412 = vsub.f32 %v2383, %v2394
        %v2413 = vsub.f32 %v2384, %v2395
        %v2414 = vadd.f32 %v2410, 1e-12
        %v2415 = vadd.f32 %v2411, 1e-12
        %v2416 = vrsqrt.pop %v2414
        %v2417 = vrsqrt.pop %v2415
        %v2418 = vmul.f32 %v2412, %v2416
        %v2419 = vmul.f32 %v2413, %v2417
        %v2421 = vlaneseq
        %v2422 = vshrl.u32 %v2421, 7
        %v2423 = vsub.s32 0, %v2422
        %v2424 = vrot.slane %v2385, %v2423
        %v2426 = vmul.f32 %v2418, %v2424
        %v2427 = vmul.f32 %v2419, %v2424
        %v2429 = vlaneseq
        %v2430 = vshrl.u32 %v2429, 7
        %v2431 = vsub.s32 0, %v2430
        %v2432 = vrot.slane %v2386, %v2431
        %v2434 = vadd.f32 %v2426, %v2432
        %v2435 = vadd.f32 %v2427, %v2432
        %v2436 = vpack.c.bf16 %v2435, %v2434
        %v2437 = vld [vmem:[%s742] sm:$0xf]
        %v2438 = vld [vmem:[%s742 + $0x4] sm:$0xf]
        %v2439 = vld [vmem:[%s742 + $0x8] sm:$0xf]
        %v2440 = vld [vmem:[%s742 + $0xc] sm:$0xf]
        %v2441 = vld [vmem:[%s745] sm:$0x1]
        %v2443 = vlaneseq
        %v2444 = vshrl.u32 %v2443, 7
        %v2445 = vsub.s32 0, %v2444
        %v2446 = vrot.slane %v2441, %v2445
        %v2452 = vunpack.c.l.b16 %v2437
        %v2453 = vunpack.c.l.b16 %v2438
        %v2454 = vunpack.c.l.b16 %v2439
        %v2455 = vunpack.c.l.b16 %v2440
        %v2456 = vpack.c.b16 %v2453, %v2452
        %v2457 = vpack.c.b16 %v2455, %v2454
        %v2461 = vsel %vm847, %v2436, 0
        %2463 = vmatprep.subr.bf16.mxu0 0
        %2464 = vmatpush1.bf16.msra.mxu0 0
        %2465 = vmatprep.subr.bf16.mxu0 0
        %2466 = vmatpush1.bf16.msra.mxu0 0
        %2467 = vmatprep.subr.bf16.mxu0 0
        %2468 = vmatpush1.bf16.msra.mxu0 0
        %2469 = vmatprep.subr.bf16.mxu0 0
        %2470 = vmatpush1.bf16.msra.mxu0 0
        %2471 = vmatprep.subr.bf16.mxu0 0
        %2472 = vmatpush1.bf16.msra.mxu0 0
        %2473 = vmatprep.subr.bf16.mxu0 0
        %2474 = vmatpush1.bf16.msra.mxu0 0
        %2475 = vmatprep.subr.bf16.mxu0 0
        %2476 = vmatpush1.bf16.msra.mxu0 %v2457
        %2477 = vmatprep.subr.bf16.mxu0 0
        %2478 = vmatpush1.bf16.msra.mxu0 %v2456
        %2479 = vmatprep.subr.bf16.mxu0 0
        %2480 = vmatpush2.bf16.msra.mxu0 0
        %2481 = vmatprep.subr.bf16.mxu0 0
        %2482 = vmatpush2.bf16.msra.mxu0 0
        %2483 = vmatprep.subr.bf16.mxu0 0
        %2484 = vmatpush2.bf16.msra.mxu0 0
        %2485 = vmatprep.subr.bf16.mxu0 0
        %2486 = vmatpush2.bf16.msra.mxu0 0
        %2487 = vmatprep.subr.bf16.mxu0 0
        %2488 = vmatpush2.bf16.msra.mxu0 0
        %2489 = vmatprep.subr.bf16.mxu0 0
        %2490 = vmatpush2.bf16.msra.mxu0 0
        %2491 = vmatprep.subr.bf16.mxu0 0
        %2492 = vmatpush2.bf16.msra.mxu0 0
        %2493 = vmatprep.subr.bf16.mxu0 0
        %2494 = vmatpush2.bf16.msra.mxu0 0
        %2495 = vmatprep.mubr.bf16.mxu0 0
        %2496 = vmatmul.mubr.bf16.gmra.mxu0 %v2461
        %v2497 = vpop.f32.mrf.mxu0
        %v2498 = vadd.f32 %v2446, %v2497
        %v2499 = vpop.f32.mrf.mxu0
        %v2500 = vpop.f32.mrf.mxu0
        %v2501 = vadd.f32 %v2446, %v2500
        %v2502 = vpop.f32.mrf.mxu0
        %2503 = vdwg.mxu0
        %v2504 = vmul.f32 %v2498, 0.5
        %v2505 = vmul.f32 %v2501, 0.5
        %v2506 = vmul.f32 %v2498, 0.70710677
        %v2507 = vmul.f32 %v2501, 0.70710677
        %v2508 = verf.f32.pop %v2506
        %v2509 = verf.f32.pop %v2507
        %v2510 = vadd.f32 %v2508, 1.0
        %v2511 = vadd.f32 %v2509, 1.0
        %v2512 = vmul.f32 %v2504, %v2510
        %v2513 = vmul.f32 %v2505, %v2511
        %v2514 = vpack.c.bf16 %v2513, %v2512
        %v2515 = vld [vmem:[%s750] sm:$0xf]
        %v2516 = vld [vmem:[%s750 + $0x4] sm:$0xf]
        %v2517 = vld [vmem:[%s750 + $0x8] sm:$0xf]
        %v2518 = vld [vmem:[%s750 + $0xc] sm:$0xf]
        %v2519 = vld [vmem:[%s750 + $0x10] sm:$0xf]
        %v2520 = vld [vmem:[%s750 + $0x14] sm:$0xf]
        %v2521 = vld [vmem:[%s750 + $0x18] sm:$0xf]
        %v2522 = vld [vmem:[%s750 + $0x1c] sm:$0xf]
        %v2523 = vld [vmem:[%s753] sm:$0x1]
        %v2525 = vlaneseq
        %v2526 = vshrl.u32 %v2525, 7
        %v2527 = vsub.s32 0, %v2526
        %v2528 = vrot.slane %v2523, %v2527
        %v2538 = vunpack.c.l.b16 %v2515
        %v2539 = vunpack.c.l.b16 %v2516
        %v2540 = vunpack.c.l.b16 %v2517
        %v2541 = vunpack.c.l.b16 %v2518
        %v2542 = vunpack.c.l.b16 %v2519
        %v2543 = vunpack.c.l.b16 %v2520
        %v2544 = vunpack.c.l.b16 %v2521
        %v2545 = vunpack.c.l.b16 %v2522
        %v2546 = vpack.c.b16 %v2539, %v2538
        %v2547 = vpack.c.b16 %v2541, %v2540
        %v2548 = vpack.c.b16 %v2543, %v2542
        %v2549 = vpack.c.b16 %v2545, %v2544
        %vm2554 = vcmask 523264
        %v2556 = vsel %vm2554, %v2514, 0
        %2558 = vmatprep.subr.bf16.mxu0 0
        %2559 = vmatpush1.bf16.msra.mxu0 0
        %2560 = vmatprep.subr.bf16.mxu0 0
        %2561 = vmatpush1.bf16.msra.mxu0 0
        %2562 = vmatprep.subr.bf16.mxu0 0
        %2563 = vmatpush1.bf16.msra.mxu0 0
        %2564 = vmatprep.subr.bf16.mxu0 0
        %2565 = vmatpush1.bf16.msra.mxu0 0
        %2566 = vmatprep.subr.bf16.mxu0 0
        %2567 = vmatpush1.bf16.msra.mxu0 %v2549
        %2568 = vmatprep.subr.bf16.mxu0 0
        %2569 = vmatpush1.bf16.msra.mxu0 %v2548
        %2570 = vmatprep.subr.bf16.mxu0 0
        %2571 = vmatpush1.bf16.msra.mxu0 %v2547
        %2572 = vmatprep.subr.bf16.mxu0 0
        %2573 = vmatpush1.bf16.msra.mxu0 %v2546
        %2574 = vmatprep.subr.bf16.mxu0 0
        %2575 = vmatpush2.bf16.msra.mxu0 0
        %2576 = vmatprep.subr.bf16.mxu0 0
        %2577 = vmatpush2.bf16.msra.mxu0 0
        %2578 = vmatprep.subr.bf16.mxu0 0
        %2579 = vmatpush2.bf16.msra.mxu0 0
        %2580 = vmatprep.subr.bf16.mxu0 0
        %2581 = vmatpush2.bf16.msra.mxu0 0
        %2582 = vmatprep.subr.bf16.mxu0 0
        %2583 = vmatpush2.bf16.msra.mxu0 0
        %2584 = vmatprep.subr.bf16.mxu0 0
        %2585 = vmatpush2.bf16.msra.mxu0 0
        %2586 = vmatprep.subr.bf16.mxu0 0
        %2587 = vmatpush2.bf16.msra.mxu0 0
        %2588 = vmatprep.subr.bf16.mxu0 0
        %2589 = vmatpush2.bf16.msra.mxu0 0
        %2590 = vmatprep.mubr.bf16.mxu0 0
        %2591 = vmatmul.mubr.bf16.gmra.mxu0 %v2556
        %v2592 = vpop.f32.mrf.mxu0
        %v2593 = vadd.f32 %v2528, %v2592
        %v2594 = vpop.f32.mrf.mxu0
        %v2595 = vpop.f32.mrf.mxu0
        %v2596 = vadd.f32 %v2528, %v2595
        %v2597 = vpop.f32.mrf.mxu0
        %2598 = vdwg.mxu0
        %v2599 = vadd.f32 %v2593, %v2434
        %v2600 = vadd.f32 %v2596, %v2435
        %v2601 = vld [vmem:[%s756] sm:$0x1]
        %v2602 = vld [vmem:[%s759] sm:$0x1]
        %v2603 = vsel %vm847, %v2599, 0.0
        %2604 = vadd.xlane.f32.xlu0 %v2603
        %v2605 = vpop.xlane.xlu0 %2604
        %v2606 = vsel %vm847, %v2600, 0.0
        %2607 = vadd.xlane.f32.xlu0 %v2606
        %v2608 = vpop.xlane.xlu0 %2607
        %v2609 = vmul.f32 %v2605, %v2393
        %v2610 = vmul.f32 %v2608, %v2393
        %v2611 = vmul.f32 %v2599, %v2599
        %v2612 = vmul.f32 %v2600, %v2600
        %v2613 = vsel %vm847, %v2611, 0.0
        %2614 = vadd.xlane.f32.xlu0 %v2613
        %v2615 = vpop.xlane.xlu0 %2614
        %v2616 = vsel %vm847, %v2612, 0.0
        %2617 = vadd.xlane.f32.xlu0 %v2616
        %v2618 = vpop.xlane.xlu0 %2617
        %v2619 = vmul.f32 %v2615, %v2393
        %v2620 = vmul.f32 %v2618, %v2393
        %v2621 = vmul.f32 %v2609, %v2609
        %v2622 = vmul.f32 %v2610, %v2610
        %v2623 = vsub.f32 %v2619, %v2621
        %v2624 = vsub.f32 %v2620, %v2622
        %v2625 = vmax.f32 %v2623, 0.0
        %v2626 = vmax.f32 %v2624, 0.0
        %v2627 = vsub.f32 %v2599, %v2609
        %v2628 = vsub.f32 %v2600, %v2610
        %v2629 = vadd.f32 %v2625, 1e-12
        %v2630 = vadd.f32 %v2626, 1e-12
        %v2631 = vrsqrt.pop %v2629
        %v2632 = vrsqrt.pop %v2630
        %v2633 = vmul.f32 %v2627, %v2631
        %v2634 = vmul.f32 %v2628, %v2632
        %v2636 = vlaneseq
        %v2637 = vshrl.u32 %v2636, 7
        %v2638 = vsub.s32 0, %v2637
        %v2639 = vrot.slane %v2601, %v2638
        %v2641 = vmul.f32 %v2633, %v2639
        %v2642 = vmul.f32 %v2634, %v2639
        %v2644 = vlaneseq
        %v2645 = vshrl.u32 %v2644, 7
        %v2646 = vsub.s32 0, %v2645
        %v2647 = vrot.slane %v2602, %v2646
        %v2649 = vadd.f32 %v2641, %v2647
        %v2650 = vadd.f32 %v2642, %v2647
        %2651 = vst.msk [vmem:[#allocation2] sm:$0xff] %vm847, %v2649
        %2652 = vst.msk [vmem:[#allocation2 + $0x8] sm:$0xff] %vm847, %v2650
        %p2653 = scmp.eq.s32.totalorder %s33, 1
        // Predicated region
        $region97: #{bert_forward.1} parent=91 // pred_check
          %p2654 = pneg %p2653
        $region98: #{bert_forward.1} parent=91 // pred_check_branch
          %2656 = sbr.rel (%p2654) target = $region100
        $region99: #{bert_forward.1} parent=91 // pred_region
          %v2658 = vrot.slane %v2650, 7
          %vm2660 = vcmask 1040384
          %v2661 = vsel %vm2660, %v2649, %v2658
          %vm2662 = vcmask 254976
          %2663 = vst.msk [vmem:[#allocation3] sm:$0x3] %vm2662, %v2661
          %v2664 = vpack.c.bf16 %v2661, %v2661
          %v2665 = vld [vmem:[%s16] sm:$0xf]
          %v2666 = vld [vmem:[%s16 + $0x4] sm:$0xf]
          %v2667 = vld [vmem:[%s16 + $0x8] sm:$0xf]
          %v2668 = vld [vmem:[%s16 + $0xc] sm:$0xf]
          %v2669 = vld [vmem:[%s17] sm:$0x1]
          %v2671 = vlaneseq
          %v2672 = vshrl.u32 %v2671, 7
          %v2673 = vsub.s32 0, %v2672
          %v2674 = vrot.slane %v2669, %v2673
          %v2680 = vunpack.c.l.b16 %v2665
          %v2681 = vunpack.c.l.b16 %v2666
          %v2682 = vunpack.c.l.b16 %v2667
          %v2683 = vunpack.c.l.b16 %v2668
          %v2684 = vpack.c.b16 %v2681, %v2680
          %v2685 = vpack.c.b16 %v2683, %v2682
          %v2689 = vsel %vm847, %v2664, 0
          %2691 = vmatprep.subr.bf16.mxu0 0
          %2692 = vmatpush1.bf16.msra.mxu0 0
          %2693 = vmatprep.subr.bf16.mxu0 0
          %2694 = vmatpush1.bf16.msra.mxu0 0
          %2695 = vmatprep.subr.bf16.mxu0 0
          %2696 = vmatpush1.bf16.msra.mxu0 0
          %2697 = vmatprep.subr.bf16.mxu0 0
          %2698 = vmatpush1.bf16.msra.mxu0 0
          %2699 = vmatprep.subr.bf16.mxu0 0
          %2700 = vmatpush1.bf16.msra.mxu0 0
          %2701 = vmatprep.subr.bf16.mxu0 0
          %2702 = vmatpush1.bf16.msra.mxu0 0
          %2703 = vmatprep.subr.bf16.mxu0 0
          %2704 = vmatpush1.bf16.msra.mxu0 %v2685
          %2705 = vmatprep.subr.bf16.mxu0 0
          %2706 = vmatpush1.bf16.msra.mxu0 %v2684
          %2707 = vmatprep.subr.bf16.mxu0 0
          %2708 = vmatpush2.bf16.msra.mxu0 0
          %2709 = vmatprep.subr.bf16.mxu0 0
          %2710 = vmatpush2.bf16.msra.mxu0 0
          %2711 = vmatprep.subr.bf16.mxu0 0
          %2712 = vmatpush2.bf16.msra.mxu0 0
          %2713 = vmatprep.subr.bf16.mxu0 0
          %2714 = vmatpush2.bf16.msra.mxu0 0
          %2715 = vmatprep.subr.bf16.mxu0 0
          %2716 = vmatpush2.bf16.msra.mxu0 0
          %2717 = vmatprep.subr.bf16.mxu0 0
          %2718 = vmatpush2.bf16.msra.mxu0 0
          %2719 = vmatprep.subr.bf16.mxu0 0
          %2720 = vmatpush2.bf16.msra.mxu0 0
          %2721 = vmatprep.subr.bf16.mxu0 0
          %2722 = vmatpush2.bf16.msra.mxu0 0
          %2723 = vmatprep.mubr.bf16.mxu0 0
          %2724 = vmatmul.mubr.bf16.gmra.mxu0 %v2689
          %v2725 = vpop.f32.mrf.mxu0
          %v2726 = vadd.f32 %v2674, %v2725
          %v2727 = vpop.f32.mrf.mxu0
          %v2728 = vpop.f32.mrf.mxu0
          %v2729 = vpop.f32.mrf.mxu0
          %2730 = vdwg.mxu0
          %vm2731 = vcmask 9216
          %2732 = vst.msk [vmem:[#allocation5] sm:$0x3] %vm2731, %v2726
        $region100: #{bert_forward.1} parent=91 // pred_fallthru
          _
        // Predicated region
        $region101: #{bert_forward.1} parent=91 // pred_check
          %p2733 = pneg %p484
        $region102: #{bert_forward.1} parent=91 // pred_check_branch
          %2735 = sbr.rel (%p2733) target = $region104
        $region103: #{bert_forward.1} parent=91 // pred_region
          %s2737 = ssub.s32 32, 32
          %2738 = vsyncadd [#allocation4], %s2737
          %s2740 = sshll.u32 [#allocation3], 4
          %s2741 = int_to_ptr.vmem [resolvable:$true] %s2740
          %2743 = dma.vmem_to_hbm [thread:$0]  %s2741, 32, %s18, [#allocation4]
        $region104: #{bert_forward.1} parent=91 // pred_fallthru
          _
        // Predicated region
        $region105: #{bert_forward.1} parent=91 // pred_check
          %p2744 = pneg %p505
        $region106: #{bert_forward.1} parent=91 // pred_check_branch
          %2746 = sbr.rel (%p2744) target = $region108
        $region107: #{bert_forward.1} parent=91 // pred_region
          %s2748 = ssub.s32 32, 32
          %2749 = vsyncadd [#allocation6], %s2748
          %s2751 = sshll.u32 [#allocation5], 4
          %s2752 = int_to_ptr.vmem [resolvable:$true] %s2751
          %2754 = dma.vmem_to_hbm [thread:$0]  %s2752, 32, %s19, [#allocation6]
        $region108: #{bert_forward.1} parent=91 // pred_fallthru
          _
        // Predicated region
        $region109: #{bert_forward.1} parent=91 // pred_check
          %p2755 = pneg %p484
        $region110: #{bert_forward.1} parent=91 // pred_check_branch
          %2757 = sbr.rel (%p2755) target = $region112
        $region111: #{bert_forward.1} parent=91 // pred_region
          %2758 = dma.done [#allocation4], 32
        $region112: #{bert_forward.1} parent=91 // pred_fallthru
          _
        // Predicated region
        $region113: #{bert_forward.1} parent=91 // pred_check
          %p2759 = pneg %p505
        $region114: #{bert_forward.1} parent=91 // pred_check_branch
          %2761 = sbr.rel (%p2759) target = $region116
        $region115: #{bert_forward.1} parent=91 // pred_region
          %2762 = dma.done [#allocation6], 32
        $region116: #{bert_forward.1} parent=91 // pred_fallthru
          _
      $region92: #{bert_forward.1} parent=5 // pred_fallthru
        _
      %p2763 = scmp.le.s32.totalorder 2, %s28
      // Predicated region
      $region117: #{bert_forward.1} parent=5 // pred_check
        %p2764 = pneg %p2763
      $region118: #{bert_forward.1} parent=5 // pred_check_branch
        %2766 = sbr.rel (%p2764) target = $region120
      $region119: #{bert_forward.1} parent=5 // pred_region
        %s2767 = ssub.s32 %s28, 2
      $region120: #{bert_forward.1} parent=5 // pred_fallthru
        _
    $region6: #{bert_forward.1} parent=1 // loop_footer
      %s32 = sadd.s32 1, %s28
    $region7: #{bert_forward.1} parent=1 // loop_footer_branch
      %27 = sbr.rel target = $region3
    $region8: #{bert_forward.1} parent=1 // loop_exit
      _
    %2768 = vsyncpa [#allocation4], 1
    %s2769 = scalar_lea.sflag [#allocation4], 1
    %2770 = vsyncpa %s2769, 1
    %2771 = vsyncpa [#allocation6], 1

</llo_original>
